<compile_context>
chip_gen: v5e
topology: v5e:2x2
jax: 0.10.0
libtpu: 0.0.40
codegen_flags: <defaults>
</compile_context>

<pallas_src>
import jax
import jax.numpy as jnp
import numpy as np
from jax.experimental import pallas as pl
from jax.experimental.pallas import tpu as pltpu

CPAD = 128                      # lane-dense padding for channels / dense features
VMEM_LIMIT = 32 * 1024 * 1024   # safe on v5e/v6e (128 MiB) and v7x (64 MiB physical)


def _round_up(x, m):
    return ((x + m - 1) // m) * m


def _pool_perm(h):
    """(h*h, h*h) 0/1 matrix reordering raster rows (y, x) into
    (pool_window, pooled_raster) order for a 2x2 / stride-2 max pool.

    In-kernel:  yp = perm @ y ;  pooled = max of the 4 contiguous row blocks.
    A matmul with a 0/1 matrix is an exact f32 row gather on the MXU, which
    avoids strided slicing / sublane relayouts entirely.
    """
    hw = h * h
    ph = h // 2
    perm = np.zeros((hw, hw), np.float32)
    for pi in range(2):
        for pj in range(2):
            for yy in range(ph):
                for xx in range(ph):
                    r_new = (pi * 2 + pj) * (ph * ph) + yy * ph + xx
                    r_old = (2 * yy + pi) * h + (2 * xx + pj)
                    perm[r_new, r_old] = 1.0
    return jnp.asarray(perm)


# ------------------------------ fused kernel --------------------------------

def _make_fused_kernel(conv_specs, num_dense):
    """Builds the whole-network kernel.

    conv_specs: static list of (spatial_in, cin_pad) per conv layer.
    Ref order: x, [w, b, perm] * n_conv, [w, b] * num_dense, out,
               [xpad scratch] * n_conv, pooled scratch.
    """
    n_conv = len(conv_specs)

    def kernel(*refs):
        i = 0
        x_ref = refs[i]; i += 1
        conv_refs = [(refs[i + 3 * l], refs[i + 3 * l + 1], refs[i + 3 * l + 2])
                     for l in range(n_conv)]
        i += 3 * n_conv
        dense_refs = [(refs[i + 2 * l], refs[i + 2 * l + 1]) for l in range(num_dense)]
        i += 2 * num_dense
        o_ref = refs[i]; i += 1
        xpad_refs = [refs[i + l] for l in range(n_conv)]
        i += n_conv
        pool_ref = refs[i]

        act2d = None
        for l, (h, _cin_pad) in enumerate(conv_specs):
            w_ref, b_ref, perm_ref = conv_refs[l]
            xpad = xpad_refs[l]

            # Stage the zero-padded ('same' 3x3) conv input in VMEM.
            xpad[...] = jnp.zeros_like(xpad)
            if l == 0:
                xpad[pl.ds(1, h), pl.ds(1, h), :] = x_ref[0]
            else:
                xpad[pl.ds(1, h), pl.ds(1, h), :] = act2d.reshape(h, h, CPAD)

            # Conv2d as 9 shifted-tap matmuls accumulated in f32 (in-kernel im2col).
            hw = h * h
            acc = jnp.zeros((hw, CPAD), jnp.float32)
            for t in range(9):
                di, dj = t // 3, t % 3
                tap = xpad[pl.ds(di, h), pl.ds(dj, h), :]
                lhs = tap.reshape(hw, tap.shape[-1]).astype(jnp.bfloat16)
                acc = acc + jnp.dot(lhs, w_ref[t],
                                    preferred_element_type=jnp.float32)

            # Folded BatchNorm(eval) bias + ReLU.
            y = jnp.maximum(acc + b_ref[...], 0.0)

            # MaxPool2d(2, 2): permute rows into pool-window-major order (exact
            # f32 0/1 matmul), then max over the 4 contiguous row blocks.
            yp = jnp.dot(perm_ref[...], y, preferred_element_type=jnp.float32)
            q = hw // 4
            act2d = jnp.maximum(jnp.maximum(yp[0:q], yp[q:2 * q]),
                                jnp.maximum(yp[2 * q:3 * q], yp[3 * q:4 * q]))

        # Flatten (NCHW order folded into the first dense weight at init) + dense
        # stack, all on-chip.
        pool_ref[...] = act2d                       # (S*S, CPAD), rows = spatial raster
        wd0_ref, bd0_ref = dense_refs[0]
        ns = pool_ref.shape[0]
        hvec = bd0_ref[...]                         # (1, CPAD) f32
        for s in range(ns):
            row = pool_ref[pl.ds(s, 1), :].astype(jnp.bfloat16)
            hvec = hvec + jnp.dot(row, wd0_ref[s],
                                  preferred_element_type=jnp.float32)
        hvec = jnp.maximum(hvec, 0.0)               # ReLU after every Linear
        for l in range(1, num_dense):
            w_ref, b_ref = dense_refs[l]
            hvec = jnp.dot(hvec.astype(jnp.bfloat16), w_ref[...],
                           preferred_element_type=jnp.float32) + b_ref[...]
            hvec = jnp.maximum(hvec, 0.0)

        # Lane-dense (8, 128) output block; row 0 holds the logits.
        o_ref[0] = jnp.broadcast_to(hvec, (o_ref.shape[1], CPAD))

    return kernel


# ------------------------------ parameters ----------------------------------

def init_params(key, in_channels, num_conv_layers, base_out_channels, ksz,
                spatial, temp_dense_dim, dense_layers, num_output):
    assert ksz == 3, "kernel built for 3x3 'same' convolutions"
    eps = 1e-5
    params = {"conv": [], "dense": [], "num_output": num_output}
    cin, cout = in_channels, base_out_channels
    cin_pad = _round_up(cin, 8)
    h = spatial
    for _ in range(num_conv_layers):
        assert cout <= CPAD and h % 2 == 0
        key, k1, k2, k3, k4, k5 = jax.random.split(key, 6)
        w_conv = 0.1 * jax.random.normal(k1, (ksz, ksz, cin, cout), jnp.float32)
        conv_b = 0.1 * jax.random.normal(k2, (cout,), jnp.float32)
        gamma = 1.0 + 0.1 * jax.random.normal(k3, (cout,), jnp.float32)
        beta = 0.1 * jax.random.normal(k4, (cout,), jnp.float32)
        running_mean = 0.1 * jax.random.normal(k5, (cout,), jnp.float32)
        running_var = jnp.ones((cout,), jnp.float32)
        scale = gamma / jnp.sqrt(running_var + eps)          # BN(eval) scale
        bias = (conv_b - running_mean) * scale + beta        # BN(eval) bias
        # Fold the BN scale straight into the conv weights (review item) and
        # zero-pad to (9, cin_pad, CPAD) so every tap matmul is lane-dense.
        w_fold = (w_conv * scale).reshape(ksz * ksz, cin, cout)
        w = jnp.zeros((ksz * ksz, cin_pad, CPAD), jnp.float32)
        w = w.at[:, :cin, :cout].set(w_fold)
        b = jnp.zeros((1, CPAD), jnp.float32).at[0, :cout].set(bias)
        params["conv"].append({"w": w.astype(jnp.bfloat16), "b": b,
                               "perm": _pool_perm(h),
                               "h": h, "cin_pad": cin_pad, "cout": cout})
        cin, cout = cout, cout * 2
        cin_pad = CPAD          # inter-layer activations carry 128 (zero-padded) lanes
        h = h // 2

    c_last, s_last = params["conv"][-1]["cout"], h
    flat_dim = c_last * s_last * s_last
    assert flat_dim == temp_dense_dim, (flat_dim, temp_dense_dim)
    dims = [flat_dim] + list(dense_layers) + [num_output]
    for i in range(len(dims) - 1):
        din, dout = dims[i], dims[i + 1]
        assert dout <= CPAD
        key, k1, k2 = jax.random.split(key, 3)
        w_t = 0.1 * jax.random.normal(k1, (din, dout), jnp.float32)
        b_t = 0.1 * jax.random.normal(k2, (dout,), jnp.float32)
        if i == 0:
            # Fold nn.Flatten's NCHW (c-major) ordering into the weight layout:
            # wd[s, c, o] = W[c * (s_last*s_last) + s, o], so the kernel never
            # transposes the activation (review item).
            ns = s_last * s_last
            w_sco = jnp.transpose(w_t.reshape(c_last, ns, dout), (1, 0, 2))
            w = jnp.zeros((ns, CPAD, CPAD), jnp.float32)
            w = w.at[:, :c_last, :dout].set(w_sco)
        else:
            w = jnp.zeros((CPAD, CPAD), jnp.float32).at[:din, :dout].set(w_t)
        b = jnp.zeros((1, CPAD), jnp.float32).at[0, :dout].set(b_t)
        params["dense"].append({"w": w.astype(jnp.bfloat16), "b": b})
    return params


# ------------------------------ forward pass --------------------------------

def conv2d_forward(x_nchw, params):
    n, cin = x_nchw.shape[0], x_nchw.shape[1]
    cin_pad0 = params["conv"][0]["cin_pad"]
    # Only host-side glue: NCHW -> NHWC + channel pad of the (tiny) input.
    x = jnp.transpose(x_nchw, (0, 2, 3, 1))
    if cin_pad0 != cin:
        x = jnp.pad(x, ((0, 0), (0, 0), (0, 0), (0, cin_pad0 - cin)))

    conv_specs = [(c["h"], c["cin_pad"]) for c in params["conv"]]
    num_dense = len(params["dense"])
    s_last = conv_specs[-1][0] // 2
    kernel = _make_fused_kernel(conv_specs, num_dense)

    in_specs = [pl.BlockSpec((1,) + x.shape[1:], lambda b: (b, 0, 0, 0))]
    args = [x]
    for c in params["conv"]:
        in_specs += [pl.BlockSpec(c["w"].shape, lambda b: (0, 0, 0)),
                     pl.BlockSpec(c["b"].shape, lambda b: (0, 0)),
                     pl.BlockSpec(c["perm"].shape, lambda b: (0, 0))]
        args += [c["w"], c["b"], c["perm"]]
    for d in params["dense"]:
        wmap = (lambda b: (0, 0, 0)) if d["w"].ndim == 3 else (lambda b: (0, 0))
        in_specs += [pl.BlockSpec(d["w"].shape, wmap),
                     pl.BlockSpec(d["b"].shape, lambda b: (0, 0))]
        args += [d["w"], d["b"]]

    scratch_shapes = [pltpu.VMEM((h + 2, h + 2, cp), jnp.float32)
                      for (h, cp) in conv_specs]
    scratch_shapes.append(pltpu.VMEM((s_last * s_last, CPAD), jnp.float32))

    out = pl.pallas_call(
        kernel,
        out_shape=jax.ShapeDtypeStruct((n, 8, CPAD), jnp.float32),
        grid_spec=pltpu.PrefetchScalarGridSpec(
            num_scalar_prefetch=0,
            grid=(n,),                              # >= 2 steps -> both v7x TCs used
            in_specs=in_specs,
            out_specs=pl.BlockSpec((1, 8, CPAD), lambda b: (b, 0, 0)),
            scratch_shapes=scratch_shapes,
        ),
        compiler_params=pltpu.CompilerParams(
            dimension_semantics=("parallel",),
            vmem_limit_bytes=VMEM_LIMIT),
    )(*args)
    return out[:, 0, :params["num_output"]]


# ------------------------------ main -----------------------------------------

if __name__ == "__main__":
    N, C, H, W = 2, 4, 16, 16
    num_conv_layers = 2
    base_out_channels = 8
    ksz = 3
    dense_layers = [32]
    num_output = 10
    # after 2 x (conv + 2x2 pool): channels = 16, spatial = 4x4 -> 256
    temp_dense_dim = (base_out_channels * 2) * (H // 4) * (W // 4)

    key = jax.random.PRNGKey(0)
    kx, kparams = jax.random.split(key)
    params = init_params(kparams, C, num_conv_layers, base_out_channels, ksz,
                         H, temp_dense_dim, dense_layers, num_output)
    x = jax.random.normal(kx, (N, C, H, W), jnp.float32)

    fwd = jax.jit(lambda inp: conv2d_forward(inp, params))
    out = jax.block_until_ready(fwd(x))
    assert out.shape == (N, num_output), out.shape
    assert bool(jnp.all(jnp.isfinite(out)))
    print("KERNEL_OK")
</pallas_src>

<mosaic_0001>
module attributes {stable_mosaic.version = 11 : i64} {
  func.func @kernel(%arg0: i32, %arg1: memref<1x16x16x8xf32, #tpu.memory_space<vmem>>, %arg2: memref<9x8x128xbf16, #tpu.memory_space<vmem>>, %arg3: memref<1x128xf32, #tpu.memory_space<vmem>>, %arg4: memref<256x256xf32, #tpu.memory_space<vmem>>, %arg5: memref<9x128x128xbf16, #tpu.memory_space<vmem>>, %arg6: memref<1x128xf32, #tpu.memory_space<vmem>>, %arg7: memref<64x64xf32, #tpu.memory_space<vmem>>, %arg8: memref<16x128x128xbf16, #tpu.memory_space<vmem>>, %arg9: memref<1x128xf32, #tpu.memory_space<vmem>>, %arg10: memref<128x128xbf16, #tpu.memory_space<vmem>>, %arg11: memref<1x128xf32, #tpu.memory_space<vmem>>, %arg12: memref<1x8x128xf32, #tpu.memory_space<vmem>>, %arg13: memref<18x18x8xf32, #tpu.memory_space<vmem>>, %arg14: memref<10x10x128xf32, #tpu.memory_space<vmem>>, %arg15: memref<16x128xf32, #tpu.memory_space<vmem>>) attributes {dimension_semantics = [#tpu.dimension_semantics<parallel>], iteration_bounds = array<i64: 2>, scalar_prefetch = 0 : i64, scratch_operands = 3 : i64, tpu.core_type = #tpu.core_type<tc>, window_params = [{transform_indices = @transform_0, window_bounds = array<i64: 1, 16, 16, 8>}, {pipeline_mode = #tpu.pipeline_mode<synchronous>, transform_indices = @transform_1, window_bounds = array<i64: 9, 8, 128>}, {pipeline_mode = #tpu.pipeline_mode<synchronous>, transform_indices = @transform_2, window_bounds = array<i64: 1, 128>}, {pipeline_mode = #tpu.pipeline_mode<synchronous>, transform_indices = @transform_3, window_bounds = array<i64: 256, 256>}, {pipeline_mode = #tpu.pipeline_mode<synchronous>, transform_indices = @transform_4, window_bounds = array<i64: 9, 128, 128>}, {pipeline_mode = #tpu.pipeline_mode<synchronous>, transform_indices = @transform_5, window_bounds = array<i64: 1, 128>}, {pipeline_mode = #tpu.pipeline_mode<synchronous>, transform_indices = @transform_6, window_bounds = array<i64: 64, 64>}, {pipeline_mode = #tpu.pipeline_mode<synchronous>, transform_indices = @transform_7, window_bounds = array<i64: 16, 128, 128>}, {pipeline_mode = #tpu.pipeline_mode<synchronous>, transform_indices = @transform_8, window_bounds = array<i64: 1, 128>}, {pipeline_mode = #tpu.pipeline_mode<synchronous>, transform_indices = @transform_9, window_bounds = array<i64: 128, 128>}, {pipeline_mode = #tpu.pipeline_mode<synchronous>, transform_indices = @transform_10, window_bounds = array<i64: 1, 128>}, {transform_indices = @transform_11, window_bounds = array<i64: 1, 8, 128>}]} {
    %cst = arith.constant 0.000000e+00 : f32
    %0 = vector.broadcast %cst : f32 to vector<18x18x8xf32>
    %c0 = arith.constant 0 : index
    %c0_0 = arith.constant 0 : index
    %c0_1 = arith.constant 0 : index
    %1 = vector.load %arg13[%c0, %c0_0, %c0_1] : memref<18x18x8xf32, #tpu.memory_space<vmem>>, vector<18x18x8xf32>
    tpu.vector_store %arg13[%c0, %c0_0, %c0_1], %0 {strides = array<i32>} : memref<18x18x8xf32, #tpu.memory_space<vmem>>, vector<18x18x8xf32>,
    %c0_2 = arith.constant 0 : index
    %c0_3 = arith.constant 0 : index
    %c0_4 = arith.constant 0 : index
    %c0_5 = arith.constant 0 : index
    %2 = vector.load %arg1[%c0_2, %c0_3, %c0_4, %c0_5] : memref<1x16x16x8xf32, #tpu.memory_space<vmem>>, vector<1x16x16x8xf32>
    %3 = vector.shape_cast %2 : vector<1x16x16x8xf32> to vector<16x16x8xf32>
    %c1 = arith.constant 1 : index
    %c1_6 = arith.constant 1 : index
    %c0_7 = arith.constant 0 : index
    %4 = vector.load %arg13[%c1, %c1_6, %c0_7] : memref<18x18x8xf32, #tpu.memory_space<vmem>>, vector<16x16x8xf32>
    tpu.vector_store %arg13[%c1, %c1_6, %c0_7], %3 {strides = array<i32>} : memref<18x18x8xf32, #tpu.memory_space<vmem>>, vector<16x16x8xf32>,
    %cst_8 = arith.constant 0.000000e+00 : f32
    %5 = vector.broadcast %cst_8 : f32 to vector<256x128xf32>
    %c0_9 = arith.constant 0 : index
    %c0_10 = arith.constant 0 : index
    %c0_11 = arith.constant 0 : index
    %6 = vector.load %arg13[%c0_9, %c0_10, %c0_11] : memref<18x18x8xf32, #tpu.memory_space<vmem>>, vector<16x16x8xf32>
    %7 = vector.shape_cast %6 : vector<16x16x8xf32> to vector<256x8xf32>
    %8 = arith.truncf %7 : vector<256x8xf32> to vector<256x8xbf16>
    %c0_12 = arith.constant 0 : index
    %c0_13 = arith.constant 0 : index
    %c0_14 = arith.constant 0 : index
    %9 = vector.load %arg2[%c0_12, %c0_13, %c0_14] : memref<9x8x128xbf16, #tpu.memory_space<vmem>>, vector<1x8x128xbf16>
    %10 = vector.shape_cast %9 : vector<1x8x128xbf16> to vector<8x128xbf16>
    %cst_15 = arith.constant dense<0.000000e+00> : vector<256x128xf32>
    %11 = tpu.matmul %8, %10, %cst_15 {dimension_numbers = #tpu.dot_dimension_numbers<[1], [0], [0], [1], [0, 0, 1, 1], [], []>} : vector<256x8xbf16>, vector<8x128xbf16>, vector<256x128xf32> -> vector<256x128xf32>
    %12 = arith.addf %5, %11 : vector<256x128xf32>
    %c0_16 = arith.constant 0 : index
    %c1_17 = arith.constant 1 : index
    %c0_18 = arith.constant 0 : index
    %13 = vector.load %arg13[%c0_16, %c1_17, %c0_18] : memref<18x18x8xf32, #tpu.memory_space<vmem>>, vector<16x16x8xf32>
    %14 = vector.shape_cast %13 : vector<16x16x8xf32> to vector<256x8xf32>
    %15 = arith.truncf %14 : vector<256x8xf32> to vector<256x8xbf16>
    %c1_19 = arith.constant 1 : index
    %c0_20 = arith.constant 0 : index
    %c0_21 = arith.constant 0 : index
    %16 = vector.load %arg2[%c1_19, %c0_20, %c0_21] : memref<9x8x128xbf16, #tpu.memory_space<vmem>>, vector<1x8x128xbf16>
    %17 = vector.shape_cast %16 : vector<1x8x128xbf16> to vector<8x128xbf16>
    %cst_22 = arith.constant dense<0.000000e+00> : vector<256x128xf32>
    %18 = tpu.matmul %15, %17, %cst_22 {dimension_numbers = #tpu.dot_dimension_numbers<[1], [0], [0], [1], [0, 0, 1, 1], [], []>} : vector<256x8xbf16>, vector<8x128xbf16>, vector<256x128xf32> -> vector<256x128xf32>
    %19 = arith.addf %12, %18 : vector<256x128xf32>
    %c0_23 = arith.constant 0 : index
    %c2 = arith.constant 2 : index
    %c0_24 = arith.constant 0 : index
    %20 = vector.load %arg13[%c0_23, %c2, %c0_24] : memref<18x18x8xf32, #tpu.memory_space<vmem>>, vector<16x16x8xf32>
    %21 = vector.shape_cast %20 : vector<16x16x8xf32> to vector<256x8xf32>
    %22 = arith.truncf %21 : vector<256x8xf32> to vector<256x8xbf16>
    %c2_25 = arith.constant 2 : index
    %c0_26 = arith.constant 0 : index
    %c0_27 = arith.constant 0 : index
    %23 = vector.load %arg2[%c2_25, %c0_26, %c0_27] : memref<9x8x128xbf16, #tpu.memory_space<vmem>>, vector<1x8x128xbf16>
    %24 = vector.shape_cast %23 : vector<1x8x128xbf16> to vector<8x128xbf16>
    %cst_28 = arith.constant dense<0.000000e+00> : vector<256x128xf32>
    %25 = tpu.matmul %22, %24, %cst_28 {dimension_numbers = #tpu.dot_dimension_numbers<[1], [0], [0], [1], [0, 0, 1, 1], [], []>} : vector<256x8xbf16>, vector<8x128xbf16>, vector<256x128xf32> -> vector<256x128xf32>
    %26 = arith.addf %19, %25 : vector<256x128xf32>
    %c1_29 = arith.constant 1 : index
    %c0_30 = arith.constant 0 : index
    %c0_31 = arith.constant 0 : index
    %27 = vector.load %arg13[%c1_29, %c0_30, %c0_31] : memref<18x18x8xf32, #tpu.memory_space<vmem>>, vector<16x16x8xf32>
    %28 = vector.shape_cast %27 : vector<16x16x8xf32> to vector<256x8xf32>
    %29 = arith.truncf %28 : vector<256x8xf32> to vector<256x8xbf16>
    %c3 = arith.constant 3 : index
    %c0_32 = arith.constant 0 : index
    %c0_33 = arith.constant 0 : index
    %30 = vector.load %arg2[%c3, %c0_32, %c0_33] : memref<9x8x128xbf16, #tpu.memory_space<vmem>>, vector<1x8x128xbf16>
    %31 = vector.shape_cast %30 : vector<1x8x128xbf16> to vector<8x128xbf16>
    %cst_34 = arith.constant dense<0.000000e+00> : vector<256x128xf32>
    %32 = tpu.matmul %29, %31, %cst_34 {dimension_numbers = #tpu.dot_dimension_numbers<[1], [0], [0], [1], [0, 0, 1, 1], [], []>} : vector<256x8xbf16>, vector<8x128xbf16>, vector<256x128xf32> -> vector<256x128xf32>
    %33 = arith.addf %26, %32 : vector<256x128xf32>
    %c1_35 = arith.constant 1 : index
    %c1_36 = arith.constant 1 : index
    %c0_37 = arith.constant 0 : index
    %34 = vector.load %arg13[%c1_35, %c1_36, %c0_37] : memref<18x18x8xf32, #tpu.memory_space<vmem>>, vector<16x16x8xf32>
    %35 = vector.shape_cast %34 : vector<16x16x8xf32> to vector<256x8xf32>
    %36 = arith.truncf %35 : vector<256x8xf32> to vector<256x8xbf16>
    %c4 = arith.constant 4 : index
    %c0_38 = arith.constant 0 : index
    %c0_39 = arith.constant 0 : index
    %37 = vector.load %arg2[%c4, %c0_38, %c0_39] : memref<9x8x128xbf16, #tpu.memory_space<vmem>>, vector<1x8x128xbf16>
    %38 = vector.shape_cast %37 : vector<1x8x128xbf16> to vector<8x128xbf16>
    %cst_40 = arith.constant dense<0.000000e+00> : vector<256x128xf32>
    %39 = tpu.matmul %36, %38, %cst_40 {dimension_numbers = #tpu.dot_dimension_numbers<[1], [0], [0], [1], [0, 0, 1, 1], [], []>} : vector<256x8xbf16>, vector<8x128xbf16>, vector<256x128xf32> -> vector<256x128xf32>
    %40 = arith.addf %33, %39 : vector<256x128xf32>
    %c1_41 = arith.constant 1 : index
    %c2_42 = arith.constant 2 : index
    %c0_43 = arith.constant 0 : index
    %41 = vector.load %arg13[%c1_41, %c2_42, %c0_43] : memref<18x18x8xf32, #tpu.memory_space<vmem>>, vector<16x16x8xf32>
    %42 = vector.shape_cast %41 : vector<16x16x8xf32> to vector<256x8xf32>
    %43 = arith.truncf %42 : vector<256x8xf32> to vector<256x8xbf16>
    %c5 = arith.constant 5 : index
    %c0_44 = arith.constant 0 : index
    %c0_45 = arith.constant 0 : index
    %44 = vector.load %arg2[%c5, %c0_44, %c0_45] : memref<9x8x128xbf16, #tpu.memory_space<vmem>>, vector<1x8x128xbf16>
    %45 = vector.shape_cast %44 : vector<1x8x128xbf16> to vector<8x128xbf16>
    %cst_46 = arith.constant dense<0.000000e+00> : vector<256x128xf32>
    %46 = tpu.matmul %43, %45, %cst_46 {dimension_numbers = #tpu.dot_dimension_numbers<[1], [0], [0], [1], [0, 0, 1, 1], [], []>} : vector<256x8xbf16>, vector<8x128xbf16>, vector<256x128xf32> -> vector<256x128xf32>
    %47 = arith.addf %40, %46 : vector<256x128xf32>
    %c2_47 = arith.constant 2 : index
    %c0_48 = arith.constant 0 : index
    %c0_49 = arith.constant 0 : index
    %48 = vector.load %arg13[%c2_47, %c0_48, %c0_49] : memref<18x18x8xf32, #tpu.memory_space<vmem>>, vector<16x16x8xf32>
    %49 = vector.shape_cast %48 : vector<16x16x8xf32> to vector<256x8xf32>
    %50 = arith.truncf %49 : vector<256x8xf32> to vector<256x8xbf16>
    %c6 = arith.constant 6 : index
    %c0_50 = arith.constant 0 : index
    %c0_51 = arith.constant 0 : index
    %51 = vector.load %arg2[%c6, %c0_50, %c0_51] : memref<9x8x128xbf16, #tpu.memory_space<vmem>>, vector<1x8x128xbf16>
    %52 = vector.shape_cast %51 : vector<1x8x128xbf16> to vector<8x128xbf16>
    %cst_52 = arith.constant dense<0.000000e+00> : vector<256x128xf32>
    %53 = tpu.matmul %50, %52, %cst_52 {dimension_numbers = #tpu.dot_dimension_numbers<[1], [0], [0], [1], [0, 0, 1, 1], [], []>} : vector<256x8xbf16>, vector<8x128xbf16>, vector<256x128xf32> -> vector<256x128xf32>
    %54 = arith.addf %47, %53 : vector<256x128xf32>
    %c2_53 = arith.constant 2 : index
    %c1_54 = arith.constant 1 : index
    %c0_55 = arith.constant 0 : index
    %55 = vector.load %arg13[%c2_53, %c1_54, %c0_55] : memref<18x18x8xf32, #tpu.memory_space<vmem>>, vector<16x16x8xf32>
    %56 = vector.shape_cast %55 : vector<16x16x8xf32> to vector<256x8xf32>
    %57 = arith.truncf %56 : vector<256x8xf32> to vector<256x8xbf16>
    %c7 = arith.constant 7 : index
    %c0_56 = arith.constant 0 : index
    %c0_57 = arith.constant 0 : index
    %58 = vector.load %arg2[%c7, %c0_56, %c0_57] : memref<9x8x128xbf16, #tpu.memory_space<vmem>>, vector<1x8x128xbf16>
    %59 = vector.shape_cast %58 : vector<1x8x128xbf16> to vector<8x128xbf16>
    %cst_58 = arith.constant dense<0.000000e+00> : vector<256x128xf32>
    %60 = tpu.matmul %57, %59, %cst_58 {dimension_numbers = #tpu.dot_dimension_numbers<[1], [0], [0], [1], [0, 0, 1, 1], [], []>} : vector<256x8xbf16>, vector<8x128xbf16>, vector<256x128xf32> -> vector<256x128xf32>
    %61 = arith.addf %54, %60 : vector<256x128xf32>
    %c2_59 = arith.constant 2 : index
    %c2_60 = arith.constant 2 : index
    %c0_61 = arith.constant 0 : index
    %62 = vector.load %arg13[%c2_59, %c2_60, %c0_61] : memref<18x18x8xf32, #tpu.memory_space<vmem>>, vector<16x16x8xf32>
    %63 = vector.shape_cast %62 : vector<16x16x8xf32> to vector<256x8xf32>
    %64 = arith.truncf %63 : vector<256x8xf32> to vector<256x8xbf16>
    %c8 = arith.constant 8 : index
    %c0_62 = arith.constant 0 : index
    %c0_63 = arith.constant 0 : index
    %65 = vector.load %arg2[%c8, %c0_62, %c0_63] : memref<9x8x128xbf16, #tpu.memory_space<vmem>>, vector<1x8x128xbf16>
    %66 = vector.shape_cast %65 : vector<1x8x128xbf16> to vector<8x128xbf16>
    %cst_64 = arith.constant dense<0.000000e+00> : vector<256x128xf32>
    %67 = tpu.matmul %64, %66, %cst_64 {dimension_numbers = #tpu.dot_dimension_numbers<[1], [0], [0], [1], [0, 0, 1, 1], [], []>} : vector<256x8xbf16>, vector<8x128xbf16>, vector<256x128xf32> -> vector<256x128xf32>
    %68 = arith.addf %61, %67 : vector<256x128xf32>
    %c0_65 = arith.constant 0 : index
    %c0_66 = arith.constant 0 : index
    %69 = vector.load %arg3[%c0_65, %c0_66] : memref<1x128xf32, #tpu.memory_space<vmem>>, vector<1x128xf32>
    %70 = vector.broadcast %69 : vector<1x128xf32> to vector<256x128xf32>
    %71 = arith.addf %68, %70 : vector<256x128xf32>
    %cst_67 = arith.constant 0.000000e+00 : f32
    %72 = vector.broadcast %cst_67 : f32 to vector<256x128xf32>
    %73 = arith.maximumf %71, %72 : vector<256x128xf32>
    %c0_68 = arith.constant 0 : index
    %c0_69 = arith.constant 0 : index
    %74 = vector.load %arg4[%c0_68, %c0_69] : memref<256x256xf32, #tpu.memory_space<vmem>>, vector<256x256xf32>
    %cst_70 = arith.constant dense<0.000000e+00> : vector<256x128xf32>
    %75 = tpu.matmul %74, %73, %cst_70 {dimension_numbers = #tpu.dot_dimension_numbers<[1], [0], [0], [1], [0, 0, 1, 1], [], []>} : vector<256x256xf32>, vector<256x128xf32>, vector<256x128xf32> -> vector<256x128xf32>
    %76 = vector.extract_strided_slice %75 {offsets = [0, 0], sizes = [64, 128], strides = [1, 1]} : vector<256x128xf32> to vector<64x128xf32>
    %77 = vector.extract_strided_slice %75 {offsets = [64, 0], sizes = [64, 128], strides = [1, 1]} : vector<256x128xf32> to vector<64x128xf32>
    %78 = arith.maximumf %76, %77 : vector<64x128xf32>
    %79 = vector.extract_strided_slice %75 {offsets = [128, 0], sizes = [64, 128], strides = [1, 1]} : vector<256x128xf32> to vector<64x128xf32>
    %80 = vector.extract_strided_slice %75 {offsets = [192, 0], sizes = [64, 128], strides = [1, 1]} : vector<256x128xf32> to vector<64x128xf32>
    %81 = arith.maximumf %79, %80 : vector<64x128xf32>
    %82 = arith.maximumf %78, %81 : vector<64x128xf32>
    %cst_71 = arith.constant 0.000000e+00 : f32
    %83 = vector.broadcast %cst_71 : f32 to vector<10x10x128xf32>
    %c0_72 = arith.constant 0 : index
    %c0_73 = arith.constant 0 : index
    %c0_74 = arith.constant 0 : index
    %84 = vector.load %arg14[%c0_72, %c0_73, %c0_74] : memref<10x10x128xf32, #tpu.memory_space<vmem>>, vector<10x10x128xf32>
    tpu.vector_store %arg14[%c0_72, %c0_73, %c0_74], %83 {strides = array<i32>} : memref<10x10x128xf32, #tpu.memory_space<vmem>>, vector<10x10x128xf32>,
    %85 = vector.shape_cast %82 : vector<64x128xf32> to vector<8x8x128xf32>
    %c1_75 = arith.constant 1 : index
    %c1_76 = arith.constant 1 : index
    %c0_77 = arith.constant 0 : index
    %86 = vector.load %arg14[%c1_75, %c1_76, %c0_77] : memref<10x10x128xf32, #tpu.memory_space<vmem>>, vector<8x8x128xf32>
    tpu.vector_store %arg14[%c1_75, %c1_76, %c0_77], %85 {strides = array<i32>} : memref<10x10x128xf32, #tpu.memory_space<vmem>>, vector<8x8x128xf32>,
    %cst_78 = arith.constant 0.000000e+00 : f32
    %87 = vector.broadcast %cst_78 : f32 to vector<64x128xf32>
    %c0_79 = arith.constant 0 : index
    %c0_80 = arith.constant 0 : index
    %c0_81 = arith.constant 0 : index
    %88 = vector.load %arg14[%c0_79, %c0_80, %c0_81] : memref<10x10x128xf32, #tpu.memory_space<vmem>>, vector<8x8x128xf32>
    %89 = vector.shape_cast %88 : vector<8x8x128xf32> to vector<64x128xf32>
    %90 = arith.truncf %89 : vector<64x128xf32> to vector<64x128xbf16>
    %c0_82 = arith.constant 0 : index
    %c0_83 = arith.constant 0 : index
    %c0_84 = arith.constant 0 : index
    %91 = vector.load %arg5[%c0_82, %c0_83, %c0_84] : memref<9x128x128xbf16, #tpu.memory_space<vmem>>, vector<1x128x128xbf16>
    %92 = vector.shape_cast %91 : vector<1x128x128xbf16> to vector<128x128xbf16>
    %cst_85 = arith.constant dense<0.000000e+00> : vector<64x128xf32>
    %93 = tpu.matmul %90, %92, %cst_85 {dimension_numbers = #tpu.dot_dimension_numbers<[1], [0], [0], [1], [0, 0, 1, 1], [], []>} : vector<64x128xbf16>, vector<128x128xbf16>, vector<64x128xf32> -> vector<64x128xf32>
    %94 = arith.addf %87, %93 : vector<64x128xf32>
    %c0_86 = arith.constant 0 : index
    %c1_87 = arith.constant 1 : index
    %c0_88 = arith.constant 0 : index
    %95 = vector.load %arg14[%c0_86, %c1_87, %c0_88] : memref<10x10x128xf32, #tpu.memory_space<vmem>>, vector<8x8x128xf32>
    %96 = vector.shape_cast %95 : vector<8x8x128xf32> to vector<64x128xf32>
    %97 = arith.truncf %96 : vector<64x128xf32> to vector<64x128xbf16>
    %c1_89 = arith.constant 1 : index
    %c0_90 = arith.constant 0 : index
    %c0_91 = arith.constant 0 : index
    %98 = vector.load %arg5[%c1_89, %c0_90, %c0_91] : memref<9x128x128xbf16, #tpu.memory_space<vmem>>, vector<1x128x128xbf16>
    %99 = vector.shape_cast %98 : vector<1x128x128xbf16> to vector<128x128xbf16>
    %cst_92 = arith.constant dense<0.000000e+00> : vector<64x128xf32>
    %100 = tpu.matmul %97, %99, %cst_92 {dimension_numbers = #tpu.dot_dimension_numbers<[1], [0], [0], [1], [0, 0, 1, 1], [], []>} : vector<64x128xbf16>, vector<128x128xbf16>, vector<64x128xf32> -> vector<64x128xf32>
    %101 = arith.addf %94, %100 : vector<64x128xf32>
    %c0_93 = arith.constant 0 : index
    %c2_94 = arith.constant 2 : index
    %c0_95 = arith.constant 0 : index
    %102 = vector.load %arg14[%c0_93, %c2_94, %c0_95] : memref<10x10x128xf32, #tpu.memory_space<vmem>>, vector<8x8x128xf32>
    %103 = vector.shape_cast %102 : vector<8x8x128xf32> to vector<64x128xf32>
    %104 = arith.truncf %103 : vector<64x128xf32> to vector<64x128xbf16>
    %c2_96 = arith.constant 2 : index
    %c0_97 = arith.constant 0 : index
    %c0_98 = arith.constant 0 : index
    %105 = vector.load %arg5[%c2_96, %c0_97, %c0_98] : memref<9x128x128xbf16, #tpu.memory_space<vmem>>, vector<1x128x128xbf16>
    %106 = vector.shape_cast %105 : vector<1x128x128xbf16> to vector<128x128xbf16>
    %cst_99 = arith.constant dense<0.000000e+00> : vector<64x128xf32>
    %107 = tpu.matmul %104, %106, %cst_99 {dimension_numbers = #tpu.dot_dimension_numbers<[1], [0], [0], [1], [0, 0, 1, 1], [], []>} : vector<64x128xbf16>, vector<128x128xbf16>, vector<64x128xf32> -> vector<64x128xf32>
    %108 = arith.addf %101, %107 : vector<64x128xf32>
    %c1_100 = arith.constant 1 : index
    %c0_101 = arith.constant 0 : index
    %c0_102 = arith.constant 0 : index
    %109 = vector.load %arg14[%c1_100, %c0_101, %c0_102] : memref<10x10x128xf32, #tpu.memory_space<vmem>>, vector<8x8x128xf32>
    %110 = vector.shape_cast %109 : vector<8x8x128xf32> to vector<64x128xf32>
    %111 = arith.truncf %110 : vector<64x128xf32> to vector<64x128xbf16>
    %c3_103 = arith.constant 3 : index
    %c0_104 = arith.constant 0 : index
    %c0_105 = arith.constant 0 : index
    %112 = vector.load %arg5[%c3_103, %c0_104, %c0_105] : memref<9x128x128xbf16, #tpu.memory_space<vmem>>, vector<1x128x128xbf16>
    %113 = vector.shape_cast %112 : vector<1x128x128xbf16> to vector<128x128xbf16>
    %cst_106 = arith.constant dense<0.000000e+00> : vector<64x128xf32>
    %114 = tpu.matmul %111, %113, %cst_106 {dimension_numbers = #tpu.dot_dimension_numbers<[1], [0], [0], [1], [0, 0, 1, 1], [], []>} : vector<64x128xbf16>, vector<128x128xbf16>, vector<64x128xf32> -> vector<64x128xf32>
    %115 = arith.addf %108, %114 : vector<64x128xf32>
    %c1_107 = arith.constant 1 : index
    %c1_108 = arith.constant 1 : index
    %c0_109 = arith.constant 0 : index
    %116 = vector.load %arg14[%c1_107, %c1_108, %c0_109] : memref<10x10x128xf32, #tpu.memory_space<vmem>>, vector<8x8x128xf32>
    %117 = vector.shape_cast %116 : vector<8x8x128xf32> to vector<64x128xf32>
    %118 = arith.truncf %117 : vector<64x128xf32> to vector<64x128xbf16>
    %c4_110 = arith.constant 4 : index
    %c0_111 = arith.constant 0 : index
    %c0_112 = arith.constant 0 : index
    %119 = vector.load %arg5[%c4_110, %c0_111, %c0_112] : memref<9x128x128xbf16, #tpu.memory_space<vmem>>, vector<1x128x128xbf16>
    %120 = vector.shape_cast %119 : vector<1x128x128xbf16> to vector<128x128xbf16>
    %cst_113 = arith.constant dense<0.000000e+00> : vector<64x128xf32>
    %121 = tpu.matmul %118, %120, %cst_113 {dimension_numbers = #tpu.dot_dimension_numbers<[1], [0], [0], [1], [0, 0, 1, 1], [], []>} : vector<64x128xbf16>, vector<128x128xbf16>, vector<64x128xf32> -> vector<64x128xf32>
    %122 = arith.addf %115, %121 : vector<64x128xf32>
    %c1_114 = arith.constant 1 : index
    %c2_115 = arith.constant 2 : index
    %c0_116 = arith.constant 0 : index
    %123 = vector.load %arg14[%c1_114, %c2_115, %c0_116] : memref<10x10x128xf32, #tpu.memory_space<vmem>>, vector<8x8x128xf32>
    %124 = vector.shape_cast %123 : vector<8x8x128xf32> to vector<64x128xf32>
    %125 = arith.truncf %124 : vector<64x128xf32> to vector<64x128xbf16>
    %c5_117 = arith.constant 5 : index
    %c0_118 = arith.constant 0 : index
    %c0_119 = arith.constant 0 : index
    %126 = vector.load %arg5[%c5_117, %c0_118, %c0_119] : memref<9x128x128xbf16, #tpu.memory_space<vmem>>, vector<1x128x128xbf16>
    %127 = vector.shape_cast %126 : vector<1x128x128xbf16> to vector<128x128xbf16>
    %cst_120 = arith.constant dense<0.000000e+00> : vector<64x128xf32>
    %128 = tpu.matmul %125, %127, %cst_120 {dimension_numbers = #tpu.dot_dimension_numbers<[1], [0], [0], [1], [0, 0, 1, 1], [], []>} : vector<64x128xbf16>, vector<128x128xbf16>, vector<64x128xf32> -> vector<64x128xf32>
    %129 = arith.addf %122, %128 : vector<64x128xf32>
    %c2_121 = arith.constant 2 : index
    %c0_122 = arith.constant 0 : index
    %c0_123 = arith.constant 0 : index
    %130 = vector.load %arg14[%c2_121, %c0_122, %c0_123] : memref<10x10x128xf32, #tpu.memory_space<vmem>>, vector<8x8x128xf32>
    %131 = vector.shape_cast %130 : vector<8x8x128xf32> to vector<64x128xf32>
    %132 = arith.truncf %131 : vector<64x128xf32> to vector<64x128xbf16>
    %c6_124 = arith.constant 6 : index
    %c0_125 = arith.constant 0 : index
    %c0_126 = arith.constant 0 : index
    %133 = vector.load %arg5[%c6_124, %c0_125, %c0_126] : memref<9x128x128xbf16, #tpu.memory_space<vmem>>, vector<1x128x128xbf16>
    %134 = vector.shape_cast %133 : vector<1x128x128xbf16> to vector<128x128xbf16>
    %cst_127 = arith.constant dense<0.000000e+00> : vector<64x128xf32>
    %135 = tpu.matmul %132, %134, %cst_127 {dimension_numbers = #tpu.dot_dimension_numbers<[1], [0], [0], [1], [0, 0, 1, 1], [], []>} : vector<64x128xbf16>, vector<128x128xbf16>, vector<64x128xf32> -> vector<64x128xf32>
    %136 = arith.addf %129, %135 : vector<64x128xf32>
    %c2_128 = arith.constant 2 : index
    %c1_129 = arith.constant 1 : index
    %c0_130 = arith.constant 0 : index
    %137 = vector.load %arg14[%c2_128, %c1_129, %c0_130] : memref<10x10x128xf32, #tpu.memory_space<vmem>>, vector<8x8x128xf32>
    %138 = vector.shape_cast %137 : vector<8x8x128xf32> to vector<64x128xf32>
    %139 = arith.truncf %138 : vector<64x128xf32> to vector<64x128xbf16>
    %c7_131 = arith.constant 7 : index
    %c0_132 = arith.constant 0 : index
    %c0_133 = arith.constant 0 : index
    %140 = vector.load %arg5[%c7_131, %c0_132, %c0_133] : memref<9x128x128xbf16, #tpu.memory_space<vmem>>, vector<1x128x128xbf16>
    %141 = vector.shape_cast %140 : vector<1x128x128xbf16> to vector<128x128xbf16>
    %cst_134 = arith.constant dense<0.000000e+00> : vector<64x128xf32>
    %142 = tpu.matmul %139, %141, %cst_134 {dimension_numbers = #tpu.dot_dimension_numbers<[1], [0], [0], [1], [0, 0, 1, 1], [], []>} : vector<64x128xbf16>, vector<128x128xbf16>, vector<64x128xf32> -> vector<64x128xf32>
    %143 = arith.addf %136, %142 : vector<64x128xf32>
    %c2_135 = arith.constant 2 : index
    %c2_136 = arith.constant 2 : index
    %c0_137 = arith.constant 0 : index
    %144 = vector.load %arg14[%c2_135, %c2_136, %c0_137] : memref<10x10x128xf32, #tpu.memory_space<vmem>>, vector<8x8x128xf32>
    %145 = vector.shape_cast %144 : vector<8x8x128xf32> to vector<64x128xf32>
    %146 = arith.truncf %145 : vector<64x128xf32> to vector<64x128xbf16>
    %c8_138 = arith.constant 8 : index
    %c0_139 = arith.constant 0 : index
    %c0_140 = arith.constant 0 : index
    %147 = vector.load %arg5[%c8_138, %c0_139, %c0_140] : memref<9x128x128xbf16, #tpu.memory_space<vmem>>, vector<1x128x128xbf16>
    %148 = vector.shape_cast %147 : vector<1x128x128xbf16> to vector<128x128xbf16>
    %cst_141 = arith.constant dense<0.000000e+00> : vector<64x128xf32>
    %149 = tpu.matmul %146, %148, %cst_141 {dimension_numbers = #tpu.dot_dimension_numbers<[1], [0], [0], [1], [0, 0, 1, 1], [], []>} : vector<64x128xbf16>, vector<128x128xbf16>, vector<64x128xf32> -> vector<64x128xf32>
    %150 = arith.addf %143, %149 : vector<64x128xf32>
    %c0_142 = arith.constant 0 : index
    %c0_143 = arith.constant 0 : index
    %151 = vector.load %arg6[%c0_142, %c0_143] : memref<1x128xf32, #tpu.memory_space<vmem>>, vector<1x128xf32>
    %152 = vector.broadcast %151 : vector<1x128xf32> to vector<64x128xf32>
    %153 = arith.addf %150, %152 : vector<64x128xf32>
    %cst_144 = arith.constant 0.000000e+00 : f32
    %154 = vector.broadcast %cst_144 : f32 to vector<64x128xf32>
    %155 = arith.maximumf %153, %154 : vector<64x128xf32>
    %c0_145 = arith.constant 0 : index
    %c0_146 = arith.constant 0 : index
    %156 = vector.load %arg7[%c0_145, %c0_146] : memref<64x64xf32, #tpu.memory_space<vmem>>, vector<64x64xf32>
    %cst_147 = arith.constant dense<0.000000e+00> : vector<64x128xf32>
    %157 = tpu.matmul %156, %155, %cst_147 {dimension_numbers = #tpu.dot_dimension_numbers<[1], [0], [0], [1], [0, 0, 1, 1], [], []>} : vector<64x64xf32>, vector<64x128xf32>, vector<64x128xf32> -> vector<64x128xf32>
    %158 = vector.extract_strided_slice %157 {offsets = [0, 0], sizes = [16, 128], strides = [1, 1]} : vector<64x128xf32> to vector<16x128xf32>
    %159 = vector.extract_strided_slice %157 {offsets = [16, 0], sizes = [16, 128], strides = [1, 1]} : vector<64x128xf32> to vector<16x128xf32>
    %160 = arith.maximumf %158, %159 : vector<16x128xf32>
    %161 = vector.extract_strided_slice %157 {offsets = [32, 0], sizes = [16, 128], strides = [1, 1]} : vector<64x128xf32> to vector<16x128xf32>
    %162 = vector.extract_strided_slice %157 {offsets = [48, 0], sizes = [16, 128], strides = [1, 1]} : vector<64x128xf32> to vector<16x128xf32>
    %163 = arith.maximumf %161, %162 : vector<16x128xf32>
    %164 = arith.maximumf %160, %163 : vector<16x128xf32>
    %c0_148 = arith.constant 0 : index
    %c0_149 = arith.constant 0 : index
    %165 = vector.load %arg15[%c0_148, %c0_149] : memref<16x128xf32, #tpu.memory_space<vmem>>, vector<16x128xf32>
    tpu.vector_store %arg15[%c0_148, %c0_149], %164 {strides = array<i32>} : memref<16x128xf32, #tpu.memory_space<vmem>>, vector<16x128xf32>,
    %c0_150 = arith.constant 0 : index
    %c0_151 = arith.constant 0 : index
    %166 = vector.load %arg9[%c0_150, %c0_151] : memref<1x128xf32, #tpu.memory_space<vmem>>, vector<1x128xf32>
    %c0_152 = arith.constant 0 : index
    %c0_153 = arith.constant 0 : index
    %167 = vector.load %arg15[%c0_152, %c0_153] : memref<16x128xf32, #tpu.memory_space<vmem>>, vector<1x128xf32>
    %168 = arith.truncf %167 : vector<1x128xf32> to vector<1x128xbf16>
    %c0_154 = arith.constant 0 : index
    %c0_155 = arith.constant 0 : index
    %c0_156 = arith.constant 0 : index
    %169 = vector.load %arg8[%c0_154, %c0_155, %c0_156] : memref<16x128x128xbf16, #tpu.memory_space<vmem>>, vector<1x128x128xbf16>
    %170 = vector.shape_cast %169 : vector<1x128x128xbf16> to vector<128x128xbf16>
    %cst_157 = arith.constant dense<0.000000e+00> : vector<1x128xf32>
    %171 = tpu.matmul %168, %170, %cst_157 {dimension_numbers = #tpu.dot_dimension_numbers<[1], [0], [0], [1], [0, 0, 1, 1], [], []>} : vector<1x128xbf16>, vector<128x128xbf16>, vector<1x128xf32> -> vector<1x128xf32>
    %172 = arith.addf %166, %171 : vector<1x128xf32>
    %c1_158 = arith.constant 1 : index
    %c0_159 = arith.constant 0 : index
    %173 = vector.load %arg15[%c1_158, %c0_159] : memref<16x128xf32, #tpu.memory_space<vmem>>, vector<1x128xf32>
    %174 = arith.truncf %173 : vector<1x128xf32> to vector<1x128xbf16>
    %c1_160 = arith.constant 1 : index
    %c0_161 = arith.constant 0 : index
    %c0_162 = arith.constant 0 : index
    %175 = vector.load %arg8[%c1_160, %c0_161, %c0_162] : memref<16x128x128xbf16, #tpu.memory_space<vmem>>, vector<1x128x128xbf16>
    %176 = vector.shape_cast %175 : vector<1x128x128xbf16> to vector<128x128xbf16>
    %cst_163 = arith.constant dense<0.000000e+00> : vector<1x128xf32>
    %177 = tpu.matmul %174, %176, %cst_163 {dimension_numbers = #tpu.dot_dimension_numbers<[1], [0], [0], [1], [0, 0, 1, 1], [], []>} : vector<1x128xbf16>, vector<128x128xbf16>, vector<1x128xf32> -> vector<1x128xf32>
    %178 = arith.addf %172, %177 : vector<1x128xf32>
    %c2_164 = arith.constant 2 : index
    %c0_165 = arith.constant 0 : index
    %179 = vector.load %arg15[%c2_164, %c0_165] : memref<16x128xf32, #tpu.memory_space<vmem>>, vector<1x128xf32>
    %180 = arith.truncf %179 : vector<1x128xf32> to vector<1x128xbf16>
    %c2_166 = arith.constant 2 : index
    %c0_167 = arith.constant 0 : index
    %c0_168 = arith.constant 0 : index
    %181 = vector.load %arg8[%c2_166, %c0_167, %c0_168] : memref<16x128x128xbf16, #tpu.memory_space<vmem>>, vector<1x128x128xbf16>
    %182 = vector.shape_cast %181 : vector<1x128x128xbf16> to vector<128x128xbf16>
    %cst_169 = arith.constant dense<0.000000e+00> : vector<1x128xf32>
    %183 = tpu.matmul %180, %182, %cst_169 {dimension_numbers = #tpu.dot_dimension_numbers<[1], [0], [0], [1], [0, 0, 1, 1], [], []>} : vector<1x128xbf16>, vector<128x128xbf16>, vector<1x128xf32> -> vector<1x128xf32>
    %184 = arith.addf %178, %183 : vector<1x128xf32>
    %c3_170 = arith.constant 3 : index
    %c0_171 = arith.constant 0 : index
    %185 = vector.load %arg15[%c3_170, %c0_171] : memref<16x128xf32, #tpu.memory_space<vmem>>, vector<1x128xf32>
    %186 = arith.truncf %185 : vector<1x128xf32> to vector<1x128xbf16>
    %c3_172 = arith.constant 3 : index
    %c0_173 = arith.constant 0 : index
    %c0_174 = arith.constant 0 : index
    %187 = vector.load %arg8[%c3_172, %c0_173, %c0_174] : memref<16x128x128xbf16, #tpu.memory_space<vmem>>, vector<1x128x128xbf16>
    %188 = vector.shape_cast %187 : vector<1x128x128xbf16> to vector<128x128xbf16>
    %cst_175 = arith.constant dense<0.000000e+00> : vector<1x128xf32>
    %189 = tpu.matmul %186, %188, %cst_175 {dimension_numbers = #tpu.dot_dimension_numbers<[1], [0], [0], [1], [0, 0, 1, 1], [], []>} : vector<1x128xbf16>, vector<128x128xbf16>, vector<1x128xf32> -> vector<1x128xf32>
    %190 = arith.addf %184, %189 : vector<1x128xf32>
    %c4_176 = arith.constant 4 : index
    %c0_177 = arith.constant 0 : index
    %191 = vector.load %arg15[%c4_176, %c0_177] : memref<16x128xf32, #tpu.memory_space<vmem>>, vector<1x128xf32>
    %192 = arith.truncf %191 : vector<1x128xf32> to vector<1x128xbf16>
    %c4_178 = arith.constant 4 : index
    %c0_179 = arith.constant 0 : index
    %c0_180 = arith.constant 0 : index
    %193 = vector.load %arg8[%c4_178, %c0_179, %c0_180] : memref<16x128x128xbf16, #tpu.memory_space<vmem>>, vector<1x128x128xbf16>
    %194 = vector.shape_cast %193 : vector<1x128x128xbf16> to vector<128x128xbf16>
    %cst_181 = arith.constant dense<0.000000e+00> : vector<1x128xf32>
    %195 = tpu.matmul %192, %194, %cst_181 {dimension_numbers = #tpu.dot_dimension_numbers<[1], [0], [0], [1], [0, 0, 1, 1], [], []>} : vector<1x128xbf16>, vector<128x128xbf16>, vector<1x128xf32> -> vector<1x128xf32>
    %196 = arith.addf %190, %195 : vector<1x128xf32>
    %c5_182 = arith.constant 5 : index
    %c0_183 = arith.constant 0 : index
    %197 = vector.load %arg15[%c5_182, %c0_183] : memref<16x128xf32, #tpu.memory_space<vmem>>, vector<1x128xf32>
    %198 = arith.truncf %197 : vector<1x128xf32> to vector<1x128xbf16>
    %c5_184 = arith.constant 5 : index
    %c0_185 = arith.constant 0 : index
    %c0_186 = arith.constant 0 : index
    %199 = vector.load %arg8[%c5_184, %c0_185, %c0_186] : memref<16x128x128xbf16, #tpu.memory_space<vmem>>, vector<1x128x128xbf16>
    %200 = vector.shape_cast %199 : vector<1x128x128xbf16> to vector<128x128xbf16>
    %cst_187 = arith.constant dense<0.000000e+00> : vector<1x128xf32>
    %201 = tpu.matmul %198, %200, %cst_187 {dimension_numbers = #tpu.dot_dimension_numbers<[1], [0], [0], [1], [0, 0, 1, 1], [], []>} : vector<1x128xbf16>, vector<128x128xbf16>, vector<1x128xf32> -> vector<1x128xf32>
    %202 = arith.addf %196, %201 : vector<1x128xf32>
    %c6_188 = arith.constant 6 : index
    %c0_189 = arith.constant 0 : index
    %203 = vector.load %arg15[%c6_188, %c0_189] : memref<16x128xf32, #tpu.memory_space<vmem>>, vector<1x128xf32>
    %204 = arith.truncf %203 : vector<1x128xf32> to vector<1x128xbf16>
    %c6_190 = arith.constant 6 : index
    %c0_191 = arith.constant 0 : index
    %c0_192 = arith.constant 0 : index
    %205 = vector.load %arg8[%c6_190, %c0_191, %c0_192] : memref<16x128x128xbf16, #tpu.memory_space<vmem>>, vector<1x128x128xbf16>
    %206 = vector.shape_cast %205 : vector<1x128x128xbf16> to vector<128x128xbf16>
    %cst_193 = arith.constant dense<0.000000e+00> : vector<1x128xf32>
    %207 = tpu.matmul %204, %206, %cst_193 {dimension_numbers = #tpu.dot_dimension_numbers<[1], [0], [0], [1], [0, 0, 1, 1], [], []>} : vector<1x128xbf16>, vector<128x128xbf16>, vector<1x128xf32> -> vector<1x128xf32>
    %208 = arith.addf %202, %207 : vector<1x128xf32>
    %c7_194 = arith.constant 7 : index
    %c0_195 = arith.constant 0 : index
    %209 = vector.load %arg15[%c7_194, %c0_195] : memref<16x128xf32, #tpu.memory_space<vmem>>, vector<1x128xf32>
    %210 = arith.truncf %209 : vector<1x128xf32> to vector<1x128xbf16>
    %c7_196 = arith.constant 7 : index
    %c0_197 = arith.constant 0 : index
    %c0_198 = arith.constant 0 : index
    %211 = vector.load %arg8[%c7_196, %c0_197, %c0_198] : memref<16x128x128xbf16, #tpu.memory_space<vmem>>, vector<1x128x128xbf16>
    %212 = vector.shape_cast %211 : vector<1x128x128xbf16> to vector<128x128xbf16>
    %cst_199 = arith.constant dense<0.000000e+00> : vector<1x128xf32>
    %213 = tpu.matmul %210, %212, %cst_199 {dimension_numbers = #tpu.dot_dimension_numbers<[1], [0], [0], [1], [0, 0, 1, 1], [], []>} : vector<1x128xbf16>, vector<128x128xbf16>, vector<1x128xf32> -> vector<1x128xf32>
    %214 = arith.addf %208, %213 : vector<1x128xf32>
    %c8_200 = arith.constant 8 : index
    %c0_201 = arith.constant 0 : index
    %215 = vector.load %arg15[%c8_200, %c0_201] : memref<16x128xf32, #tpu.memory_space<vmem>>, vector<1x128xf32>
    %216 = arith.truncf %215 : vector<1x128xf32> to vector<1x128xbf16>
    %c8_202 = arith.constant 8 : index
    %c0_203 = arith.constant 0 : index
    %c0_204 = arith.constant 0 : index
    %217 = vector.load %arg8[%c8_202, %c0_203, %c0_204] : memref<16x128x128xbf16, #tpu.memory_space<vmem>>, vector<1x128x128xbf16>
    %218 = vector.shape_cast %217 : vector<1x128x128xbf16> to vector<128x128xbf16>
    %cst_205 = arith.constant dense<0.000000e+00> : vector<1x128xf32>
    %219 = tpu.matmul %216, %218, %cst_205 {dimension_numbers = #tpu.dot_dimension_numbers<[1], [0], [0], [1], [0, 0, 1, 1], [], []>} : vector<1x128xbf16>, vector<128x128xbf16>, vector<1x128xf32> -> vector<1x128xf32>
    %220 = arith.addf %214, %219 : vector<1x128xf32>
    %c9 = arith.constant 9 : index
    %c0_206 = arith.constant 0 : index
    %221 = vector.load %arg15[%c9, %c0_206] : memref<16x128xf32, #tpu.memory_space<vmem>>, vector<1x128xf32>
    %222 = arith.truncf %221 : vector<1x128xf32> to vector<1x128xbf16>
    %c9_207 = arith.constant 9 : index
    %c0_208 = arith.constant 0 : index
    %c0_209 = arith.constant 0 : index
    %223 = vector.load %arg8[%c9_207, %c0_208, %c0_209] : memref<16x128x128xbf16, #tpu.memory_space<vmem>>, vector<1x128x128xbf16>
    %224 = vector.shape_cast %223 : vector<1x128x128xbf16> to vector<128x128xbf16>
    %cst_210 = arith.constant dense<0.000000e+00> : vector<1x128xf32>
    %225 = tpu.matmul %222, %224, %cst_210 {dimension_numbers = #tpu.dot_dimension_numbers<[1], [0], [0], [1], [0, 0, 1, 1], [], []>} : vector<1x128xbf16>, vector<128x128xbf16>, vector<1x128xf32> -> vector<1x128xf32>
    %226 = arith.addf %220, %225 : vector<1x128xf32>
    %c10 = arith.constant 10 : index
    %c0_211 = arith.constant 0 : index
    %227 = vector.load %arg15[%c10, %c0_211] : memref<16x128xf32, #tpu.memory_space<vmem>>, vector<1x128xf32>
    %228 = arith.truncf %227 : vector<1x128xf32> to vector<1x128xbf16>
    %c10_212 = arith.constant 10 : index
    %c0_213 = arith.constant 0 : index
    %c0_214 = arith.constant 0 : index
    %229 = vector.load %arg8[%c10_212, %c0_213, %c0_214] : memref<16x128x128xbf16, #tpu.memory_space<vmem>>, vector<1x128x128xbf16>
    %230 = vector.shape_cast %229 : vector<1x128x128xbf16> to vector<128x128xbf16>
    %cst_215 = arith.constant dense<0.000000e+00> : vector<1x128xf32>
    %231 = tpu.matmul %228, %230, %cst_215 {dimension_numbers = #tpu.dot_dimension_numbers<[1], [0], [0], [1], [0, 0, 1, 1], [], []>} : vector<1x128xbf16>, vector<128x128xbf16>, vector<1x128xf32> -> vector<1x128xf32>
    %232 = arith.addf %226, %231 : vector<1x128xf32>
    %c11 = arith.constant 11 : index
    %c0_216 = arith.constant 0 : index
    %233 = vector.load %arg15[%c11, %c0_216] : memref<16x128xf32, #tpu.memory_space<vmem>>, vector<1x128xf32>
    %234 = arith.truncf %233 : vector<1x128xf32> to vector<1x128xbf16>
    %c11_217 = arith.constant 11 : index
    %c0_218 = arith.constant 0 : index
    %c0_219 = arith.constant 0 : index
    %235 = vector.load %arg8[%c11_217, %c0_218, %c0_219] : memref<16x128x128xbf16, #tpu.memory_space<vmem>>, vector<1x128x128xbf16>
    %236 = vector.shape_cast %235 : vector<1x128x128xbf16> to vector<128x128xbf16>
    %cst_220 = arith.constant dense<0.000000e+00> : vector<1x128xf32>
    %237 = tpu.matmul %234, %236, %cst_220 {dimension_numbers = #tpu.dot_dimension_numbers<[1], [0], [0], [1], [0, 0, 1, 1], [], []>} : vector<1x128xbf16>, vector<128x128xbf16>, vector<1x128xf32> -> vector<1x128xf32>
    %238 = arith.addf %232, %237 : vector<1x128xf32>
    %c12 = arith.constant 12 : index
    %c0_221 = arith.constant 0 : index
    %239 = vector.load %arg15[%c12, %c0_221] : memref<16x128xf32, #tpu.memory_space<vmem>>, vector<1x128xf32>
    %240 = arith.truncf %239 : vector<1x128xf32> to vector<1x128xbf16>
    %c12_222 = arith.constant 12 : index
    %c0_223 = arith.constant 0 : index
    %c0_224 = arith.constant 0 : index
    %241 = vector.load %arg8[%c12_222, %c0_223, %c0_224] : memref<16x128x128xbf16, #tpu.memory_space<vmem>>, vector<1x128x128xbf16>
    %242 = vector.shape_cast %241 : vector<1x128x128xbf16> to vector<128x128xbf16>
    %cst_225 = arith.constant dense<0.000000e+00> : vector<1x128xf32>
    %243 = tpu.matmul %240, %242, %cst_225 {dimension_numbers = #tpu.dot_dimension_numbers<[1], [0], [0], [1], [0, 0, 1, 1], [], []>} : vector<1x128xbf16>, vector<128x128xbf16>, vector<1x128xf32> -> vector<1x128xf32>
    %244 = arith.addf %238, %243 : vector<1x128xf32>
    %c13 = arith.constant 13 : index
    %c0_226 = arith.constant 0 : index
    %245 = vector.load %arg15[%c13, %c0_226] : memref<16x128xf32, #tpu.memory_space<vmem>>, vector<1x128xf32>
    %246 = arith.truncf %245 : vector<1x128xf32> to vector<1x128xbf16>
    %c13_227 = arith.constant 13 : index
    %c0_228 = arith.constant 0 : index
    %c0_229 = arith.constant 0 : index
    %247 = vector.load %arg8[%c13_227, %c0_228, %c0_229] : memref<16x128x128xbf16, #tpu.memory_space<vmem>>, vector<1x128x128xbf16>
    %248 = vector.shape_cast %247 : vector<1x128x128xbf16> to vector<128x128xbf16>
    %cst_230 = arith.constant dense<0.000000e+00> : vector<1x128xf32>
    %249 = tpu.matmul %246, %248, %cst_230 {dimension_numbers = #tpu.dot_dimension_numbers<[1], [0], [0], [1], [0, 0, 1, 1], [], []>} : vector<1x128xbf16>, vector<128x128xbf16>, vector<1x128xf32> -> vector<1x128xf32>
    %250 = arith.addf %244, %249 : vector<1x128xf32>
    %c14 = arith.constant 14 : index
    %c0_231 = arith.constant 0 : index
    %251 = vector.load %arg15[%c14, %c0_231] : memref<16x128xf32, #tpu.memory_space<vmem>>, vector<1x128xf32>
    %252 = arith.truncf %251 : vector<1x128xf32> to vector<1x128xbf16>
    %c14_232 = arith.constant 14 : index
    %c0_233 = arith.constant 0 : index
    %c0_234 = arith.constant 0 : index
    %253 = vector.load %arg8[%c14_232, %c0_233, %c0_234] : memref<16x128x128xbf16, #tpu.memory_space<vmem>>, vector<1x128x128xbf16>
    %254 = vector.shape_cast %253 : vector<1x128x128xbf16> to vector<128x128xbf16>
    %cst_235 = arith.constant dense<0.000000e+00> : vector<1x128xf32>
    %255 = tpu.matmul %252, %254, %cst_235 {dimension_numbers = #tpu.dot_dimension_numbers<[1], [0], [0], [1], [0, 0, 1, 1], [], []>} : vector<1x128xbf16>, vector<128x128xbf16>, vector<1x128xf32> -> vector<1x128xf32>
    %256 = arith.addf %250, %255 : vector<1x128xf32>
    %c15 = arith.constant 15 : index
    %c0_236 = arith.constant 0 : index
    %257 = vector.load %arg15[%c15, %c0_236] : memref<16x128xf32, #tpu.memory_space<vmem>>, vector<1x128xf32>
    %258 = arith.truncf %257 : vector<1x128xf32> to vector<1x128xbf16>
    %c15_237 = arith.constant 15 : index
    %c0_238 = arith.constant 0 : index
    %c0_239 = arith.constant 0 : index
    %259 = vector.load %arg8[%c15_237, %c0_238, %c0_239] : memref<16x128x128xbf16, #tpu.memory_space<vmem>>, vector<1x128x128xbf16>
    %260 = vector.shape_cast %259 : vector<1x128x128xbf16> to vector<128x128xbf16>
    %cst_240 = arith.constant dense<0.000000e+00> : vector<1x128xf32>
    %261 = tpu.matmul %258, %260, %cst_240 {dimension_numbers = #tpu.dot_dimension_numbers<[1], [0], [0], [1], [0, 0, 1, 1], [], []>} : vector<1x128xbf16>, vector<128x128xbf16>, vector<1x128xf32> -> vector<1x128xf32>
    %262 = arith.addf %256, %261 : vector<1x128xf32>
    %cst_241 = arith.constant 0.000000e+00 : f32
    %263 = vector.broadcast %cst_241 : f32 to vector<1x128xf32>
    %264 = arith.maximumf %262, %263 : vector<1x128xf32>
    %265 = arith.truncf %264 : vector<1x128xf32> to vector<1x128xbf16>
    %c0_242 = arith.constant 0 : index
    %c0_243 = arith.constant 0 : index
    %266 = vector.load %arg10[%c0_242, %c0_243] : memref<128x128xbf16, #tpu.memory_space<vmem>>, vector<128x128xbf16>
    %cst_244 = arith.constant dense<0.000000e+00> : vector<1x128xf32>
    %267 = tpu.matmul %265, %266, %cst_244 {dimension_numbers = #tpu.dot_dimension_numbers<[1], [0], [0], [1], [0, 0, 1, 1], [], []>} : vector<1x128xbf16>, vector<128x128xbf16>, vector<1x128xf32> -> vector<1x128xf32>
    %c0_245 = arith.constant 0 : index
    %c0_246 = arith.constant 0 : index
    %268 = vector.load %arg11[%c0_245, %c0_246] : memref<1x128xf32, #tpu.memory_space<vmem>>, vector<1x128xf32>
    %269 = arith.addf %267, %268 : vector<1x128xf32>
    %cst_247 = arith.constant 0.000000e+00 : f32
    %270 = vector.broadcast %cst_247 : f32 to vector<1x128xf32>
    %271 = arith.maximumf %269, %270 : vector<1x128xf32>
    %272 = vector.shape_cast %271 : vector<1x128xf32> to vector<1x128xf32>
    %273 = vector.broadcast %272 : vector<1x128xf32> to vector<8x128xf32>
    %c0_248 = arith.constant 0 : index
    %c0_249 = arith.constant 0 : index
    %c0_250 = arith.constant 0 : index
    %274 = vector.load %arg12[%c0_248, %c0_249, %c0_250] : memref<1x8x128xf32, #tpu.memory_space<vmem>>, vector<1x8x128xf32>
    %275 = vector.shape_cast %274 : vector<1x8x128xf32> to vector<8x128xf32>
    %276 = vector.shape_cast %273 : vector<8x128xf32> to vector<1x8x128xf32>
    tpu.vector_store %arg12[%c0_248, %c0_249, %c0_250], %276 {strides = array<i32>} : memref<1x8x128xf32, #tpu.memory_space<vmem>>, vector<1x8x128xf32>,
    return
  }
  func.func @transform_0(%arg0: i32) -> (i32, i32, i32, i32) {
    %c0_i32 = arith.constant 0 : i32
    %c0_i32_0 = arith.constant 0 : i32
    %c0_i32_1 = arith.constant 0 : i32
    %c0_i32_2 = arith.constant 0 : i32
    return %arg0, %c0_i32, %c0_i32_0, %c0_i32_1 : i32, i32, i32, i32
  }
  func.func @transform_1(%arg0: i32) -> (i32, i32, i32) {
    %c0_i32 = arith.constant 0 : i32
    %c0_i32_0 = arith.constant 0 : i32
    %c0_i32_1 = arith.constant 0 : i32
    %c0_i32_2 = arith.constant 0 : i32
    return %c0_i32, %c0_i32_0, %c0_i32_1 : i32, i32, i32
  }
  func.func @transform_2(%arg0: i32) -> (i32, i32) {
    %c0_i32 = arith.constant 0 : i32
    %c0_i32_0 = arith.constant 0 : i32
    %c0_i32_1 = arith.constant 0 : i32
    return %c0_i32, %c0_i32_0 : i32, i32
  }
  func.func @transform_3(%arg0: i32) -> (i32, i32) {
    %c0_i32 = arith.constant 0 : i32
    %c0_i32_0 = arith.constant 0 : i32
    %c0_i32_1 = arith.constant 0 : i32
    return %c0_i32, %c0_i32_0 : i32, i32
  }
  func.func @transform_4(%arg0: i32) -> (i32, i32, i32) {
    %c0_i32 = arith.constant 0 : i32
    %c0_i32_0 = arith.constant 0 : i32
    %c0_i32_1 = arith.constant 0 : i32
    %c0_i32_2 = arith.constant 0 : i32
    return %c0_i32, %c0_i32_0, %c0_i32_1 : i32, i32, i32
  }
  func.func @transform_5(%arg0: i32) -> (i32, i32) {
    %c0_i32 = arith.constant 0 : i32
    %c0_i32_0 = arith.constant 0 : i32
    %c0_i32_1 = arith.constant 0 : i32
    return %c0_i32, %c0_i32_0 : i32, i32
  }
  func.func @transform_6(%arg0: i32) -> (i32, i32) {
    %c0_i32 = arith.constant 0 : i32
    %c0_i32_0 = arith.constant 0 : i32
    %c0_i32_1 = arith.constant 0 : i32
    return %c0_i32, %c0_i32_0 : i32, i32
  }
  func.func @transform_7(%arg0: i32) -> (i32, i32, i32) {
    %c0_i32 = arith.constant 0 : i32
    %c0_i32_0 = arith.constant 0 : i32
    %c0_i32_1 = arith.constant 0 : i32
    %c0_i32_2 = arith.constant 0 : i32
    return %c0_i32, %c0_i32_0, %c0_i32_1 : i32, i32, i32
  }
  func.func @transform_8(%arg0: i32) -> (i32, i32) {
    %c0_i32 = arith.constant 0 : i32
    %c0_i32_0 = arith.constant 0 : i32
    %c0_i32_1 = arith.constant 0 : i32
    return %c0_i32, %c0_i32_0 : i32, i32
  }
  func.func @transform_9(%arg0: i32) -> (i32, i32) {
    %c0_i32 = arith.constant 0 : i32
    %c0_i32_0 = arith.constant 0 : i32
    %c0_i32_1 = arith.constant 0 : i32
    return %c0_i32, %c0_i32_0 : i32, i32
  }
  func.func @transform_10(%arg0: i32) -> (i32, i32) {
    %c0_i32 = arith.constant 0 : i32
    %c0_i32_0 = arith.constant 0 : i32
    %c0_i32_1 = arith.constant 0 : i32
    return %c0_i32, %c0_i32_0 : i32, i32
  }
  func.func @transform_11(%arg0: i32) -> (i32, i32, i32) {
    %c0_i32 = arith.constant 0 : i32
    %c0_i32_0 = arith.constant 0 : i32
    %c0_i32_1 = arith.constant 0 : i32
    return %arg0, %c0_i32, %c0_i32_0 : i32, i32, i32
  }
}

</mosaic_0001>

<llo_original>
// kernel: _lambda_.1
$region0: #{_lambda_.1}
  #allocation0 [shape = 'u32[]', space=smem, size = 0x4, offset = 0x4, fixed_abs, tag = 'smem constant byte address 0x4 - core index']
  #allocation1 [shape = 'u32[72,128]{1,0:T(1,128)}', space=vmem, size = 0x9000, scoped, tag = 'internal scratch']
  #allocation2 [shape = 'f32[18,18,8]{2,1,0:T(8,128)}', space=vmem, size = 0x36000, scoped, tag = 'scratch operand']
  #allocation3 [shape = 'f32[10,10,128]{2,1,0:T(8,128)}', space=vmem, size = 0x14000, scoped, tag = 'scratch operand']
  #allocation4 [shape = 'f32[16,128]{1,0:T(8,128)}', space=vmem, size = 0x2000, scoped, tag = 'scratch operand']
  %s0 = inlined_call_operand.vmem [shape: f32[2,16,16,8], index: 0, kind: input, shape index: {}]
  %s1 = inlined_call_operand.hbm [shape: bf16[9,8,128], index: 1, kind: input, shape index: {}]
  %s2 = inlined_call_operand.vmem [shape: f32[1,128], index: 2, kind: input, shape index: {}]
  %s3 = inlined_call_operand.hbm [shape: f32[256,256], index: 3, kind: input, shape index: {}]
  %s4 = inlined_call_operand.vmem [shape: bf16[9,128,128], index: 4, kind: input, shape index: {}]
  %s5 = inlined_call_operand.vmem [shape: f32[1,128], index: 5, kind: input, shape index: {}]
  %s6 = inlined_call_operand.hbm [shape: f32[64,64], index: 6, kind: input, shape index: {}]
  %s7 = inlined_call_operand.vmem [shape: bf16[16,128,128], index: 7, kind: input, shape index: {}]
  %s8 = inlined_call_operand.vmem [shape: f32[1,128], index: 8, kind: input, shape index: {}]
  %s9 = inlined_call_operand.vmem [shape: bf16[128,128], index: 9, kind: input, shape index: {}]
  %s10 = inlined_call_operand.vmem [shape: f32[1,128], index: 10, kind: input, shape index: {}]
  %s11 = inlined_call_operand.vmem [shape: f32[2,8,128], index: 11, kind: output, shape index: {}]
  %s12 = sld [smem:[#allocation0]]
  $region89: #{_lambda_.1} parent=0
    _
  %s14 = ssub.s32 1, %s12
  %s15 = scalar_select 0, %s14, %s12
  $region1: #{_lambda_.1} parent=0
    #allocation5 [shape = 'u8[18432]{0}', space=vmem, size = 0x4800, scoped, tag = 'input window, operand 1, single buffered']
    #allocation6 [shape = 's32[2]{0}', space=sflag, size = 0x8, scoped, tag = 'scoped memory for _lambda_.1']
    #allocation7 [shape = 'u8[262144]{0}', space=vmem, size = 0x40000, scoped, tag = 'input window, operand 3, single buffered']
    #allocation8 [shape = 's32[1]{0}', space=sflag, size = 0x4, scoped, tag = 'scoped memory for _lambda_.1']
    #allocation9 [shape = 'u8[32768]{0}', space=vmem, size = 0x8000, scoped, tag = 'input window, operand 6, single buffered']
    %16 = vsyncpa [#allocation6], 0
    %17 = vsyncpa [#allocation8], 0
    loop: start=0, step=1, limit=4
    $region2: #{_lambda_.1} parent=1 // loop_pre_header
      _
    $region3: #{_lambda_.1} parent=1 // loop_header
      %s19 = sphi 0, %s23
      %p20 = scmp.ge.s32.totalorder %s19, 4
      %s29 = sphi 0, %s31
      %s32 = sphi 0, %s29
      %s33 = sphi 0, %s32
      %s49 = sphi 0, %s33
      %s53 = sphi 0, %s53
      %s55 = sphi 0, %s53
      %s56 = sphi 0, %s55
      %s70 = sphi 0, %s56
      %s74 = sphi 0, %s74
      %s76 = sphi 0, %s74
      %s77 = sphi 0, %s76
      %s91 = sphi 0, %s77
      %s95 = sphi 0, %s95
      %s97 = sphi 0, %s95
      %s98 = sphi 0, %s97
      %s112 = sphi 0, %s98
      %s116 = sphi 0, %s116
      %s118 = sphi 0, %s116
      %s119 = sphi 0, %s118
      %s133 = sphi 0, %s119
      %s137 = sphi 0, %s137
      %s139 = sphi 0, %s137
      %s140 = sphi 0, %s139
      %s154 = sphi 0, %s140
      %s158 = sphi 0, %s158
      %s160 = sphi 0, %s158
      %s161 = sphi 0, %s160
      %s175 = sphi 0, %s161
      %s179 = sphi 0, %s179
      %s181 = sphi 0, %s179
      %s182 = sphi 0, %s181
      %s196 = sphi 0, %s182
      %s200 = sphi 0, %s200
      %s202 = sphi 0, %s200
      %s203 = sphi 0, %s202
      %s217 = sphi 0, %s203
      %s221 = sphi 0, %s221
      %s223 = sphi 0, %s221
      %s224 = sphi 0, %s223
      %s238 = sphi 0, %s224
      %s242 = sphi 0, %s242
      %s244 = sphi 0, %s242
      %s245 = sphi 0, %s244
      %s259 = sphi 0, %s245
      %s265 = sphi 0, %s267
      %s268 = sphi 0, %s265
      %s269 = sphi 0, %s268
      %s285 = sphi 0, %s269
    $region4: #{_lambda_.1} parent=1 // loop_header_branch
      %22 = sbr.rel (%p20) target = $region8
    $region5: #{_lambda_.1} parent=1 // loop_body
      %s24 = ssub.s32 %s19, 1
      %s25 = ssub.s32 %s19, 2
      %s26 = sadd.s32 %s19, 1
      %s27 = ssub.s32 %s19, %s26
      %p28 = scmp.eq.s32.totalorder %s27, 0
      %s30 = sadd.s32 %s29, 1
      %s31 = scalar_select %p28, %s29, %s30
      %p34 = pneg %p28
      %p35 = scmp.eq.s32.totalorder %s19, 1
      %p36 = por %p34, %p35
      %p37 = scmp.ne.s32.totalorder %s29, %s32
      %p38 = scmp.eq.s32.totalorder %s19, 0
      %p39 = por %p37, %p38
      %p40 = scmp.ne.s32.totalorder %s29, %s32
      %p41 = scmp.eq.s32.totalorder %s24, 1
      %p42 = por %p40, %p41
      %p43 = scmp.ne.s32.totalorder %s32, %s33
      %p44 = scmp.eq.s32.totalorder %s24, 0
      %p45 = por %p43, %p44
      %p46 = scmp.ne.s32.totalorder %s32, %s33
      %p47 = scmp.eq.s32.totalorder %s25, 1
      %p48 = por %p46, %p47
      %p50 = scmp.ne.s32.totalorder %s33, %s49
      %p51 = scmp.eq.s32.totalorder %s25, 0
      %p52 = por %p50, %p51
      %s54 = sadd.s32 %s53, 1
      %p57 = scmp.eq.s32.totalorder %s19, 1
      %p58 = scmp.ne.s32.totalorder %s53, %s55
      %p59 = scmp.eq.s32.totalorder %s19, 0
      %p60 = por %p58, %p59
      %p61 = scmp.ne.s32.totalorder %s53, %s55
      %p62 = scmp.eq.s32.totalorder %s24, 1
      %p63 = por %p61, %p62
      %p64 = scmp.ne.s32.totalorder %s55, %s56
      %p65 = scmp.eq.s32.totalorder %s24, 0
      %p66 = por %p64, %p65
      %p67 = scmp.ne.s32.totalorder %s55, %s56
      %p68 = scmp.eq.s32.totalorder %s25, 1
      %p69 = por %p67, %p68
      %p71 = scmp.ne.s32.totalorder %s56, %s70
      %p72 = scmp.eq.s32.totalorder %s25, 0
      %p73 = por %p71, %p72
      %s75 = sadd.s32 %s74, 1
      %p78 = scmp.eq.s32.totalorder %s19, 1
      %p79 = scmp.ne.s32.totalorder %s74, %s76
      %p80 = scmp.eq.s32.totalorder %s19, 0
      %p81 = por %p79, %p80
      %p82 = scmp.ne.s32.totalorder %s74, %s76
      %p83 = scmp.eq.s32.totalorder %s24, 1
      %p84 = por %p82, %p83
      %p85 = scmp.ne.s32.totalorder %s76, %s77
      %p86 = scmp.eq.s32.totalorder %s24, 0
      %p87 = por %p85, %p86
      %p88 = scmp.ne.s32.totalorder %s76, %s77
      %p89 = scmp.eq.s32.totalorder %s25, 1
      %p90 = por %p88, %p89
      %p92 = scmp.ne.s32.totalorder %s77, %s91
      %p93 = scmp.eq.s32.totalorder %s25, 0
      %p94 = por %p92, %p93
      %s96 = sadd.s32 %s95, 1
      %p99 = scmp.eq.s32.totalorder %s19, 1
      %p100 = scmp.ne.s32.totalorder %s95, %s97
      %p101 = scmp.eq.s32.totalorder %s19, 0
      %p102 = por %p100, %p101
      %p103 = scmp.ne.s32.totalorder %s95, %s97
      %p104 = scmp.eq.s32.totalorder %s24, 1
      %p105 = por %p103, %p104
      %p106 = scmp.ne.s32.totalorder %s97, %s98
      %p107 = scmp.eq.s32.totalorder %s24, 0
      %p108 = por %p106, %p107
      %p109 = scmp.ne.s32.totalorder %s97, %s98
      %p110 = scmp.eq.s32.totalorder %s25, 1
      %p111 = por %p109, %p110
      %p113 = scmp.ne.s32.totalorder %s98, %s112
      %p114 = scmp.eq.s32.totalorder %s25, 0
      %p115 = por %p113, %p114
      %s117 = sadd.s32 %s116, 1
      %p120 = scmp.eq.s32.totalorder %s19, 1
      %p121 = scmp.ne.s32.totalorder %s116, %s118
      %p122 = scmp.eq.s32.totalorder %s19, 0
      %p123 = por %p121, %p122
      %p124 = scmp.ne.s32.totalorder %s116, %s118
      %p125 = scmp.eq.s32.totalorder %s24, 1
      %p126 = por %p124, %p125
      %p127 = scmp.ne.s32.totalorder %s118, %s119
      %p128 = scmp.eq.s32.totalorder %s24, 0
      %p129 = por %p127, %p128
      %p130 = scmp.ne.s32.totalorder %s118, %s119
      %p131 = scmp.eq.s32.totalorder %s25, 1
      %p132 = por %p130, %p131
      %p134 = scmp.ne.s32.totalorder %s119, %s133
      %p135 = scmp.eq.s32.totalorder %s25, 0
      %p136 = por %p134, %p135
      %s138 = sadd.s32 %s137, 1
      %p141 = scmp.eq.s32.totalorder %s19, 1
      %p142 = scmp.ne.s32.totalorder %s137, %s139
      %p143 = scmp.eq.s32.totalorder %s19, 0
      %p144 = por %p142, %p143
      %p145 = scmp.ne.s32.totalorder %s137, %s139
      %p146 = scmp.eq.s32.totalorder %s24, 1
      %p147 = por %p145, %p146
      %p148 = scmp.ne.s32.totalorder %s139, %s140
      %p149 = scmp.eq.s32.totalorder %s24, 0
      %p150 = por %p148, %p149
      %p151 = scmp.ne.s32.totalorder %s139, %s140
      %p152 = scmp.eq.s32.totalorder %s25, 1
      %p153 = por %p151, %p152
      %p155 = scmp.ne.s32.totalorder %s140, %s154
      %p156 = scmp.eq.s32.totalorder %s25, 0
      %p157 = por %p155, %p156
      %s159 = sadd.s32 %s158, 1
      %p162 = scmp.eq.s32.totalorder %s19, 1
      %p163 = scmp.ne.s32.totalorder %s158, %s160
      %p164 = scmp.eq.s32.totalorder %s19, 0
      %p165 = por %p163, %p164
      %p166 = scmp.ne.s32.totalorder %s158, %s160
      %p167 = scmp.eq.s32.totalorder %s24, 1
      %p168 = por %p166, %p167
      %p169 = scmp.ne.s32.totalorder %s160, %s161
      %p170 = scmp.eq.s32.totalorder %s24, 0
      %p171 = por %p169, %p170
      %p172 = scmp.ne.s32.totalorder %s160, %s161
      %p173 = scmp.eq.s32.totalorder %s25, 1
      %p174 = por %p172, %p173
      %p176 = scmp.ne.s32.totalorder %s161, %s175
      %p177 = scmp.eq.s32.totalorder %s25, 0
      %p178 = por %p176, %p177
      %s180 = sadd.s32 %s179, 1
      %p183 = scmp.eq.s32.totalorder %s19, 1
      %p184 = scmp.ne.s32.totalorder %s179, %s181
      %p185 = scmp.eq.s32.totalorder %s19, 0
      %p186 = por %p184, %p185
      %p187 = scmp.ne.s32.totalorder %s179, %s181
      %p188 = scmp.eq.s32.totalorder %s24, 1
      %p189 = por %p187, %p188
      %p190 = scmp.ne.s32.totalorder %s181, %s182
      %p191 = scmp.eq.s32.totalorder %s24, 0
      %p192 = por %p190, %p191
      %p193 = scmp.ne.s32.totalorder %s181, %s182
      %p194 = scmp.eq.s32.totalorder %s25, 1
      %p195 = por %p193, %p194
      %p197 = scmp.ne.s32.totalorder %s182, %s196
      %p198 = scmp.eq.s32.totalorder %s25, 0
      %p199 = por %p197, %p198
      %s201 = sadd.s32 %s200, 1
      %p204 = scmp.eq.s32.totalorder %s19, 1
      %p205 = scmp.ne.s32.totalorder %s200, %s202
      %p206 = scmp.eq.s32.totalorder %s19, 0
      %p207 = por %p205, %p206
      %p208 = scmp.ne.s32.totalorder %s200, %s202
      %p209 = scmp.eq.s32.totalorder %s24, 1
      %p210 = por %p208, %p209
      %p211 = scmp.ne.s32.totalorder %s202, %s203
      %p212 = scmp.eq.s32.totalorder %s24, 0
      %p213 = por %p211, %p212
      %p214 = scmp.ne.s32.totalorder %s202, %s203
      %p215 = scmp.eq.s32.totalorder %s25, 1
      %p216 = por %p214, %p215
      %p218 = scmp.ne.s32.totalorder %s203, %s217
      %p219 = scmp.eq.s32.totalorder %s25, 0
      %p220 = por %p218, %p219
      %s222 = sadd.s32 %s221, 1
      %p225 = scmp.eq.s32.totalorder %s19, 1
      %p226 = scmp.ne.s32.totalorder %s221, %s223
      %p227 = scmp.eq.s32.totalorder %s19, 0
      %p228 = por %p226, %p227
      %p229 = scmp.ne.s32.totalorder %s221, %s223
      %p230 = scmp.eq.s32.totalorder %s24, 1
      %p231 = por %p229, %p230
      %p232 = scmp.ne.s32.totalorder %s223, %s224
      %p233 = scmp.eq.s32.totalorder %s24, 0
      %p234 = por %p232, %p233
      %p235 = scmp.ne.s32.totalorder %s223, %s224
      %p236 = scmp.eq.s32.totalorder %s25, 1
      %p237 = por %p235, %p236
      %p239 = scmp.ne.s32.totalorder %s224, %s238
      %p240 = scmp.eq.s32.totalorder %s25, 0
      %p241 = por %p239, %p240
      %s243 = sadd.s32 %s242, 1
      %p246 = scmp.eq.s32.totalorder %s19, 1
      %p247 = scmp.ne.s32.totalorder %s242, %s244
      %p248 = scmp.eq.s32.totalorder %s19, 0
      %p249 = por %p247, %p248
      %p250 = scmp.ne.s32.totalorder %s242, %s244
      %p251 = scmp.eq.s32.totalorder %s24, 1
      %p252 = por %p250, %p251
      %p253 = scmp.ne.s32.totalorder %s244, %s245
      %p254 = scmp.eq.s32.totalorder %s24, 0
      %p255 = por %p253, %p254
      %p256 = scmp.ne.s32.totalorder %s244, %s245
      %p257 = scmp.eq.s32.totalorder %s25, 1
      %p258 = por %p256, %p257
      %p260 = scmp.ne.s32.totalorder %s245, %s259
      %p261 = scmp.eq.s32.totalorder %s25, 0
      %p262 = por %p260, %p261
      %s263 = ssub.s32 %s19, %s26
      %p264 = scmp.eq.s32.totalorder %s263, 0
      %s266 = sadd.s32 %s265, 1
      %s267 = scalar_select %p264, %s265, %s266
      %p270 = pneg %p264
      %p271 = scmp.eq.s32.totalorder %s19, 1
      %p272 = por %p270, %p271
      %p273 = scmp.ne.s32.totalorder %s265, %s268
      %p274 = scmp.eq.s32.totalorder %s19, 0
      %p275 = por %p273, %p274
      %p276 = scmp.ne.s32.totalorder %s265, %s268
      %p277 = scmp.eq.s32.totalorder %s24, 1
      %p278 = por %p276, %p277
      %p279 = scmp.ne.s32.totalorder %s268, %s269
      %p280 = scmp.eq.s32.totalorder %s24, 0
      %p281 = por %p279, %p280
      %p282 = scmp.ne.s32.totalorder %s268, %s269
      %p283 = scmp.eq.s32.totalorder %s25, 1
      %p284 = por %p282, %p283
      %p286 = scmp.ne.s32.totalorder %s269, %s285
      %p287 = scmp.eq.s32.totalorder %s25, 0
      %p288 = por %p286, %p287
      %p289 = scmp.le.s32.totalorder 1, %s19
      %p290 = scmp.lt.s32.totalorder %s19, 3
      %p291 = pnand %p289, %p290
      %p292 = pneg %p291
      // Predicated region
      $region9: #{_lambda_.1} parent=5 // pred_check
        _
      $region10: #{_lambda_.1} parent=5 // pred_check_branch
        %294 = sbr.rel (%p291) target = $region12
      $region11: #{_lambda_.1} parent=5 // pred_region
        %s295 = ssub.s32 %s19, 1
        // Predicated region
        $region13: #{_lambda_.1} parent=11 // pred_check
          %p296 = pneg %p66
        $region14: #{_lambda_.1} parent=11 // pred_check_branch
          %298 = sbr.rel (%p296) target = $region16
        $region15: #{_lambda_.1} parent=11 // pred_region
          %300 = vsyncadd [#allocation6], 0
          %s301 = sshll.u32 %s1, 4
          %s302 = int_to_ptr.hbm [resolvable:$true] %s301
          %s303 = sshll.u32 [#allocation5], 4
          %s304 = int_to_ptr.vmem [resolvable:$true] %s303
          %309 = dma.hbm_to_vmem [thread:$0]  %s302, 576, %s304, [#allocation6], 64, 64, 4
        $region16: #{_lambda_.1} parent=11 // pred_fallthru
          _
        // Predicated region
        $region17: #{_lambda_.1} parent=11 // pred_check
          %p310 = pneg %p87
        $region18: #{_lambda_.1} parent=11 // pred_check_branch
          %312 = sbr.rel (%p310) target = $region20
        $region19: #{_lambda_.1} parent=11 // pred_region
          _
        $region20: #{_lambda_.1} parent=11 // pred_fallthru
          _
        // Predicated region
        $region21: #{_lambda_.1} parent=11 // pred_check
          %p313 = pneg %p108
        $region22: #{_lambda_.1} parent=11 // pred_check_branch
          %315 = sbr.rel (%p313) target = $region24
        $region23: #{_lambda_.1} parent=11 // pred_region
          %317 = vsyncadd [#allocation8], 0
          %s318 = sshll.u32 %s3, 4
          %s319 = int_to_ptr.hbm [resolvable:$true] %s318
          %s320 = sshll.u32 [#allocation7], 4
          %s321 = int_to_ptr.vmem [resolvable:$true] %s320
          %326 = dma.hbm_to_vmem [thread:$0]  %s319, 8192, %s321, [#allocation8], 256, 256, 16
        $region24: #{_lambda_.1} parent=11 // pred_fallthru
          _
        // Predicated region
        $region25: #{_lambda_.1} parent=11 // pred_check
          %p327 = pneg %p129
        $region26: #{_lambda_.1} parent=11 // pred_check_branch
          %329 = sbr.rel (%p327) target = $region28
        $region27: #{_lambda_.1} parent=11 // pred_region
          _
        $region28: #{_lambda_.1} parent=11 // pred_fallthru
          _
        // Predicated region
        $region29: #{_lambda_.1} parent=11 // pred_check
          %p330 = pneg %p150
        $region30: #{_lambda_.1} parent=11 // pred_check_branch
          %332 = sbr.rel (%p330) target = $region32
        $region31: #{_lambda_.1} parent=11 // pred_region
          _
        $region32: #{_lambda_.1} parent=11 // pred_fallthru
          _
        // Predicated region
        $region33: #{_lambda_.1} parent=11 // pred_check
          %p333 = pneg %p171
        $region34: #{_lambda_.1} parent=11 // pred_check_branch
          %335 = sbr.rel (%p333) target = $region36
        $region35: #{_lambda_.1} parent=11 // pred_region
          %337 = vsyncadd [#allocation8], 0
          %s338 = sshll.u32 %s6, 4
          %s339 = int_to_ptr.hbm [resolvable:$true] %s338
          %s340 = sshll.u32 [#allocation9], 4
          %s341 = int_to_ptr.vmem [resolvable:$true] %s340
          %346 = dma.hbm_to_vmem [thread:$0]  %s339, 1024, %s341, [#allocation8], 128, 128, 8
        $region36: #{_lambda_.1} parent=11 // pred_fallthru
          _
        // Predicated region
        $region37: #{_lambda_.1} parent=11 // pred_check
          %p347 = pneg %p192
        $region38: #{_lambda_.1} parent=11 // pred_check_branch
          %349 = sbr.rel (%p347) target = $region40
        $region39: #{_lambda_.1} parent=11 // pred_region
          _
        $region40: #{_lambda_.1} parent=11 // pred_fallthru
          _
        // Predicated region
        $region41: #{_lambda_.1} parent=11 // pred_check
          %p350 = pneg %p213
        $region42: #{_lambda_.1} parent=11 // pred_check_branch
          %352 = sbr.rel (%p350) target = $region44
        $region43: #{_lambda_.1} parent=11 // pred_region
          _
        $region44: #{_lambda_.1} parent=11 // pred_fallthru
          _
        // Predicated region
        $region45: #{_lambda_.1} parent=11 // pred_check
          %p353 = pneg %p234
        $region46: #{_lambda_.1} parent=11 // pred_check_branch
          %355 = sbr.rel (%p353) target = $region48
        $region47: #{_lambda_.1} parent=11 // pred_region
          _
        $region48: #{_lambda_.1} parent=11 // pred_fallthru
          _
        // Predicated region
        $region49: #{_lambda_.1} parent=11 // pred_check
          %p356 = pneg %p255
        $region50: #{_lambda_.1} parent=11 // pred_check_branch
          %358 = sbr.rel (%p356) target = $region52
        $region51: #{_lambda_.1} parent=11 // pred_region
          _
        $region52: #{_lambda_.1} parent=11 // pred_fallthru
          _
      $region12: #{_lambda_.1} parent=5 // pred_fallthru
        _
      %p359 = scmp.lt.s32.totalorder %s19, 2
      // Predicated region
      $region53: #{_lambda_.1} parent=5 // pred_check
        %p360 = pneg %p359
      $region54: #{_lambda_.1} parent=5 // pred_check_branch
        %362 = sbr.rel (%p360) target = $region56
      $region55: #{_lambda_.1} parent=5 // pred_region
        // Predicated region
        $region57: #{_lambda_.1} parent=55 // pred_check
          %p363 = pneg %p39
        $region58: #{_lambda_.1} parent=55 // pred_check_branch
          %365 = sbr.rel (%p363) target = $region60
        $region59: #{_lambda_.1} parent=55 // pred_region
          %p366 = scmp.lt.s32.totalorder %s19, 1
          %s367 = scalar_select %p366, %s19, 1
          %s368 = smul.addr %s367, 32
          %s369 = smul.addr %s368, 8
          %s370 = scalar_lea.vmem %s0, %s369
        $region60: #{_lambda_.1} parent=55 // pred_fallthru
          _
      $region56: #{_lambda_.1} parent=5 // pred_fallthru
        _
      %p371 = scmp.le.s32.totalorder 1, %s19
      %p372 = scmp.lt.s32.totalorder %s19, 3
      %p373 = pnand %p371, %p372
      %p374 = pneg %p373
      // Predicated region
      $region61: #{_lambda_.1} parent=5 // pred_check
        _
      $region62: #{_lambda_.1} parent=5 // pred_check_branch
        %376 = sbr.rel (%p373) target = $region64
      $region63: #{_lambda_.1} parent=5 // pred_region
        %s377 = ssub.s32 %s19, 1
        // Predicated region
        $region65: #{_lambda_.1} parent=63 // pred_check
          %p378 = pneg %p66
        $region66: #{_lambda_.1} parent=63 // pred_check_branch
          %380 = sbr.rel (%p378) target = $region68
        $region67: #{_lambda_.1} parent=63 // pred_region
          %382 = dma.done [#allocation6], 576
        $region68: #{_lambda_.1} parent=63 // pred_fallthru
          _
        // Predicated region
        $region69: #{_lambda_.1} parent=63 // pred_check
          %p383 = pneg %p108
        $region70: #{_lambda_.1} parent=63 // pred_check_branch
          %385 = sbr.rel (%p383) target = $region72
        $region71: #{_lambda_.1} parent=63 // pred_region
          %387 = dma.done [#allocation8], 8192
        $region72: #{_lambda_.1} parent=63 // pred_fallthru
          _
        // Predicated region
        $region73: #{_lambda_.1} parent=63 // pred_check
          %p388 = pneg %p171
        $region74: #{_lambda_.1} parent=63 // pred_check_branch
          %390 = sbr.rel (%p388) target = $region76
        $region75: #{_lambda_.1} parent=63 // pred_region
          %392 = dma.done [#allocation8], 1024
        $region76: #{_lambda_.1} parent=63 // pred_fallthru
          _
        %p393 = scmp.lt.s32.totalorder %s24, 1
        %s394 = scalar_select %p393, %s24, 1
        %s395 = smul.addr %s394, 32
        %s396 = smul.addr %s395, 8
        %s397 = scalar_lea.vmem %s0, %s396
        %p398 = pneg %p45
        %p399 = pneg %p42
        %p400 = pneg %p66
        %p401 = pneg %p63
        %p402 = pneg %p87
        %p403 = pneg %p84
        %p404 = pneg %p108
        %p405 = pneg %p105
        %p406 = pneg %p129
        %p407 = pneg %p126
        %p408 = pneg %p150
        %p409 = pneg %p147
        %p410 = pneg %p171
        %p411 = pneg %p168
        %p412 = pneg %p192
        %p413 = pneg %p189
        %p414 = pneg %p213
        %p415 = pneg %p210
        %p416 = pneg %p234
        %p417 = pneg %p231
        %p418 = pneg %p255
        %p419 = pneg %p252
        %p420 = pneg %p281
        %p421 = pneg %p278
        %p422 = scmp.lt.s32.totalorder %s24, 1
        %s423 = scalar_select %p422, %s24, 1
        %s424 = smul.addr %s423, 8
        %s425 = scalar_lea.vmem %s11, %s424
        %p426 = scmp.lt.s32.totalorder %s24, 1
        %s427 = scalar_select %p426, %s24, 1
        %s428 = smul.addr %s427, 32
        %s429 = smul.addr %s428, 8
        %s430 = scalar_lea.vmem %s0, %s429
        %p431 = scmp.lt.s32.totalorder %s24, 1
        %s432 = scalar_select %p431, %s24, 1
        %s433 = smul.addr %s432, 8
        %s434 = scalar_lea.vmem %s11, %s433
        %vm436 = vcmask 64512
        %437 = vst.msk [vmem:[#allocation2] sm:$0xff] %vm436, 0.0
        %438 = vst.msk [vmem:[#allocation2 + $0x8] sm:$0xff] %vm436, 0.0
        %vm439 = vcmask 58368
        %440 = vst.msk [vmem:[#allocation2 + $0x10] sm:$0x3] %vm439, 0.0
        %441 = vst.msk [vmem:[#allocation2 + $0x18] sm:$0xff] %vm436, 0.0
        %442 = vst.msk [vmem:[#allocation2 + $0x20] sm:$0xff] %vm436, 0.0
        %443 = vst.msk [vmem:[#allocation2 + $0x28] sm:$0x3] %vm439, 0.0
        %444 = vst.msk [vmem:[#allocation2 + $0x30] sm:$0xff] %vm436, 0.0
        %445 = vst.msk [vmem:[#allocation2 + $0x38] sm:$0xff] %vm436, 0.0
        %446 = vst.msk [vmem:[#allocation2 + $0x40] sm:$0x3] %vm439, 0.0
        %447 = vst.msk [vmem:[#allocation2 + $0x48] sm:$0xff] %vm436, 0.0
        %448 = vst.msk [vmem:[#allocation2 + $0x50] sm:$0xff] %vm436, 0.0
        %449 = vst.msk [vmem:[#allocation2 + $0x58] sm:$0x3] %vm439, 0.0
        %450 = vst.msk [vmem:[#allocation2 + $0x60] sm:$0xff] %vm436, 0.0
        %451 = vst.msk [vmem:[#allocation2 + $0x68] sm:$0xff] %vm436, 0.0
        %452 = vst.msk [vmem:[#allocation2 + $0x70] sm:$0x3] %vm439, 0.0
        %453 = vst.msk [vmem:[#allocation2 + $0x78] sm:$0xff] %vm436, 0.0
        %454 = vst.msk [vmem:[#allocation2 + $0x80] sm:$0xff] %vm436, 0.0
        %455 = vst.msk [vmem:[#allocation2 + $0x88] sm:$0x3] %vm439, 0.0
        %456 = vst.msk [vmem:[#allocation2 + $0x90] sm:$0xff] %vm436, 0.0
        %457 = vst.msk [vmem:[#allocation2 + $0x98] sm:$0xff] %vm436, 0.0
        %458 = vst.msk [vmem:[#allocation2 + $0xa0] sm:$0x3] %vm439, 0.0
        %459 = vst.msk [vmem:[#allocation2 + $0xa8] sm:$0xff] %vm436, 0.0
        %460 = vst.msk [vmem:[#allocation2 + $0xb0] sm:$0xff] %vm436, 0.0
        %461 = vst.msk [vmem:[#allocation2 + $0xb8] sm:$0x3] %vm439, 0.0
        %462 = vst.msk [vmem:[#allocation2 + $0xc0] sm:$0xff] %vm436, 0.0
        %463 = vst.msk [vmem:[#allocation2 + $0xc8] sm:$0xff] %vm436, 0.0
        %464 = vst.msk [vmem:[#allocation2 + $0xd0] sm:$0x3] %vm439, 0.0
        %465 = vst.msk [vmem:[#allocation2 + $0xd8] sm:$0xff] %vm436, 0.0
        %466 = vst.msk [vmem:[#allocation2 + $0xe0] sm:$0xff] %vm436, 0.0
        %467 = vst.msk [vmem:[#allocation2 + $0xe8] sm:$0x3] %vm439, 0.0
        %468 = vst.msk [vmem:[#allocation2 + $0xf0] sm:$0xff] %vm436, 0.0
        %469 = vst.msk [vmem:[#allocation2 + $0xf8] sm:$0xff] %vm436, 0.0
        %470 = vst.msk [vmem:[#allocation2 + $0x100] sm:$0x3] %vm439, 0.0
        %471 = vst.msk [vmem:[#allocation2 + $0x108] sm:$0xff] %vm436, 0.0
        %472 = vst.msk [vmem:[#allocation2 + $0x110] sm:$0xff] %vm436, 0.0
        %473 = vst.msk [vmem:[#allocation2 + $0x118] sm:$0x3] %vm439, 0.0
        %474 = vst.msk [vmem:[#allocation2 + $0x120] sm:$0xff] %vm436, 0.0
        %475 = vst.msk [vmem:[#allocation2 + $0x128] sm:$0xff] %vm436, 0.0
        %476 = vst.msk [vmem:[#allocation2 + $0x130] sm:$0x3] %vm439, 0.0
        %477 = vst.msk [vmem:[#allocation2 + $0x138] sm:$0xff] %vm436, 0.0
        %478 = vst.msk [vmem:[#allocation2 + $0x140] sm:$0xff] %vm436, 0.0
        %479 = vst.msk [vmem:[#allocation2 + $0x148] sm:$0x3] %vm439, 0.0
        %480 = vst.msk [vmem:[#allocation2 + $0x150] sm:$0xff] %vm436, 0.0
        %481 = vst.msk [vmem:[#allocation2 + $0x158] sm:$0xff] %vm436, 0.0
        %482 = vst.msk [vmem:[#allocation2 + $0x160] sm:$0x3] %vm439, 0.0
        %483 = vst.msk [vmem:[#allocation2 + $0x168] sm:$0xff] %vm436, 0.0
        %484 = vst.msk [vmem:[#allocation2 + $0x170] sm:$0xff] %vm436, 0.0
        %485 = vst.msk [vmem:[#allocation2 + $0x178] sm:$0x3] %vm439, 0.0
        %486 = vst.msk [vmem:[#allocation2 + $0x180] sm:$0xff] %vm436, 0.0
        %487 = vst.msk [vmem:[#allocation2 + $0x188] sm:$0xff] %vm436, 0.0
        %488 = vst.msk [vmem:[#allocation2 + $0x190] sm:$0x3] %vm439, 0.0
        %489 = vst.msk [vmem:[#allocation2 + $0x198] sm:$0xff] %vm436, 0.0
        %490 = vst.msk [vmem:[#allocation2 + $0x1a0] sm:$0xff] %vm436, 0.0
        %491 = vst.msk [vmem:[#allocation2 + $0x1a8] sm:$0x3] %vm439, 0.0
        %v492 = vld [vmem:[%s430] sm:$0xff]
        %v493 = vld [vmem:[%s430 + $0x8] sm:$0xff]
        %v494 = vld [vmem:[%s430 + $0x10] sm:$0xff]
        %v495 = vld [vmem:[%s430 + $0x18] sm:$0xff]
        %v496 = vld [vmem:[%s430 + $0x20] sm:$0xff]
        %v497 = vld [vmem:[%s430 + $0x28] sm:$0xff]
        %v498 = vld [vmem:[%s430 + $0x30] sm:$0xff]
        %v499 = vld [vmem:[%s430 + $0x38] sm:$0xff]
        %v500 = vld [vmem:[%s430 + $0x40] sm:$0xff]
        %v501 = vld [vmem:[%s430 + $0x48] sm:$0xff]
        %v502 = vld [vmem:[%s430 + $0x50] sm:$0xff]
        %v503 = vld [vmem:[%s430 + $0x58] sm:$0xff]
        %v504 = vld [vmem:[%s430 + $0x60] sm:$0xff]
        %v505 = vld [vmem:[%s430 + $0x68] sm:$0xff]
        %v506 = vld [vmem:[%s430 + $0x70] sm:$0xff]
        %v507 = vld [vmem:[%s430 + $0x78] sm:$0xff]
        %v508 = vld [vmem:[%s430 + $0x80] sm:$0xff]
        %v509 = vld [vmem:[%s430 + $0x88] sm:$0xff]
        %v510 = vld [vmem:[%s430 + $0x90] sm:$0xff]
        %v511 = vld [vmem:[%s430 + $0x98] sm:$0xff]
        %v512 = vld [vmem:[%s430 + $0xa0] sm:$0xff]
        %v513 = vld [vmem:[%s430 + $0xa8] sm:$0xff]
        %v514 = vld [vmem:[%s430 + $0xb0] sm:$0xff]
        %v515 = vld [vmem:[%s430 + $0xb8] sm:$0xff]
        %v516 = vld [vmem:[%s430 + $0xc0] sm:$0xff]
        %v517 = vld [vmem:[%s430 + $0xc8] sm:$0xff]
        %v518 = vld [vmem:[%s430 + $0xd0] sm:$0xff]
        %v519 = vld [vmem:[%s430 + $0xd8] sm:$0xff]
        %v520 = vld [vmem:[%s430 + $0xe0] sm:$0xff]
        %v521 = vld [vmem:[%s430 + $0xe8] sm:$0xff]
        %v522 = vld [vmem:[%s430 + $0xf0] sm:$0xff]
        %v523 = vld [vmem:[%s430 + $0xf8] sm:$0xff]
        %s524 = scalar_lea.vmem [#allocation2], 24
        %525 = vst.msk [vmem:[%s524 + $0x1] sm:$0xff] %vm436, %v492
        %526 = vst.msk [vmem:[%s524 + $0x9] sm:$0xff] %vm436, %v493
        %527 = vst.msk [vmem:[%s524 + $0x19] sm:$0xff] %vm436, %v494
        %528 = vst.msk [vmem:[%s524 + $0x21] sm:$0xff] %vm436, %v495
        %529 = vst.msk [vmem:[%s524 + $0x31] sm:$0xff] %vm436, %v496
        %530 = vst.msk [vmem:[%s524 + $0x39] sm:$0xff] %vm436, %v497
        %531 = vst.msk [vmem:[%s524 + $0x49] sm:$0xff] %vm436, %v498
        %532 = vst.msk [vmem:[%s524 + $0x51] sm:$0xff] %vm436, %v499
        %533 = vst.msk [vmem:[%s524 + $0x61] sm:$0xff] %vm436, %v500
        %534 = vst.msk [vmem:[%s524 + $0x69] sm:$0xff] %vm436, %v501
        %535 = vst.msk [vmem:[%s524 + $0x79] sm:$0xff] %vm436, %v502
        %536 = vst.msk [vmem:[%s524 + $0x81] sm:$0xff] %vm436, %v503
        %537 = vst.msk [vmem:[%s524 + $0x91] sm:$0xff] %vm436, %v504
        %538 = vst.msk [vmem:[%s524 + $0x99] sm:$0xff] %vm436, %v505
        %539 = vst.msk [vmem:[%s524 + $0xa9] sm:$0xff] %vm436, %v506
        %540 = vst.msk [vmem:[%s524 + $0xb1] sm:$0xff] %vm436, %v507
        %541 = vst.msk [vmem:[%s524 + $0xc1] sm:$0xff] %vm436, %v508
        %542 = vst.msk [vmem:[%s524 + $0xc9] sm:$0xff] %vm436, %v509
        %543 = vst.msk [vmem:[%s524 + $0xd9] sm:$0xff] %vm436, %v510
        %544 = vst.msk [vmem:[%s524 + $0xe1] sm:$0xff] %vm436, %v511
        %545 = vst.msk [vmem:[%s524 + $0xf1] sm:$0xff] %vm436, %v512
        %546 = vst.msk [vmem:[%s524 + $0xf9] sm:$0xff] %vm436, %v513
        %547 = vst.msk [vmem:[%s524 + $0x109] sm:$0xff] %vm436, %v514
        %548 = vst.msk [vmem:[%s524 + $0x111] sm:$0xff] %vm436, %v515
        %549 = vst.msk [vmem:[%s524 + $0x121] sm:$0xff] %vm436, %v516
        %550 = vst.msk [vmem:[%s524 + $0x129] sm:$0xff] %vm436, %v517
        %551 = vst.msk [vmem:[%s524 + $0x139] sm:$0xff] %vm436, %v518
        %552 = vst.msk [vmem:[%s524 + $0x141] sm:$0xff] %vm436, %v519
        %553 = vst.msk [vmem:[%s524 + $0x151] sm:$0xff] %vm436, %v520
        %554 = vst.msk [vmem:[%s524 + $0x159] sm:$0xff] %vm436, %v521
        %555 = vst.msk [vmem:[%s524 + $0x169] sm:$0xff] %vm436, %v522
        %556 = vst.msk [vmem:[%s524 + $0x171] sm:$0xff] %vm436, %v523
        %v557 = vld [vmem:[#allocation2] sm:$0xff]
        %v558 = vld [vmem:[#allocation2 + $0x8] sm:$0xff]
        %v559 = vld [vmem:[#allocation2 + $0x18] sm:$0xff]
        %v560 = vld [vmem:[#allocation2 + $0x20] sm:$0xff]
        %v561 = vld [vmem:[#allocation2 + $0x30] sm:$0xff]
        %v562 = vld [vmem:[#allocation2 + $0x38] sm:$0xff]
        %v563 = vld [vmem:[#allocation2 + $0x48] sm:$0xff]
        %v564 = vld [vmem:[#allocation2 + $0x50] sm:$0xff]
        %v565 = vld [vmem:[#allocation2 + $0x60] sm:$0xff]
        %v566 = vld [vmem:[#allocation2 + $0x68] sm:$0xff]
        %v567 = vld [vmem:[#allocation2 + $0x78] sm:$0xff]
        %v568 = vld [vmem:[#allocation2 + $0x80] sm:$0xff]
        %v569 = vld [vmem:[#allocation2 + $0x90] sm:$0xff]
        %v570 = vld [vmem:[#allocation2 + $0x98] sm:$0xff]
        %v571 = vld [vmem:[#allocation2 + $0xa8] sm:$0xff]
        %v572 = vld [vmem:[#allocation2 + $0xb0] sm:$0xff]
        %v573 = vld [vmem:[#allocation2 + $0xc0] sm:$0xff]
        %v574 = vld [vmem:[#allocation2 + $0xc8] sm:$0xff]
        %v575 = vld [vmem:[#allocation2 + $0xd8] sm:$0xff]
        %v576 = vld [vmem:[#allocation2 + $0xe0] sm:$0xff]
        %v577 = vld [vmem:[#allocation2 + $0xf0] sm:$0xff]
        %v578 = vld [vmem:[#allocation2 + $0xf8] sm:$0xff]
        %v579 = vld [vmem:[#allocation2 + $0x108] sm:$0xff]
        %v580 = vld [vmem:[#allocation2 + $0x110] sm:$0xff]
        %v581 = vld [vmem:[#allocation2 + $0x120] sm:$0xff]
        %v582 = vld [vmem:[#allocation2 + $0x128] sm:$0xff]
        %v583 = vld [vmem:[#allocation2 + $0x138] sm:$0xff]
        %v584 = vld [vmem:[#allocation2 + $0x140] sm:$0xff]
        %v585 = vld [vmem:[#allocation2 + $0x150] sm:$0xff]
        %v586 = vld [vmem:[#allocation2 + $0x158] sm:$0xff]
        %v587 = vld [vmem:[#allocation2 + $0x168] sm:$0xff]
        %v588 = vld [vmem:[#allocation2 + $0x170] sm:$0xff]
        %v589 = vpack.c.bf16 %v558, %v557
        %v590 = vpack.c.bf16 %v560, %v559
        %v591 = vpack.c.bf16 %v562, %v561
        %v592 = vpack.c.bf16 %v564, %v563
        %v593 = vpack.c.bf16 %v566, %v565
        %v594 = vpack.c.bf16 %v568, %v567
        %v595 = vpack.c.bf16 %v570, %v569
        %v596 = vpack.c.bf16 %v572, %v571
        %v597 = vpack.c.bf16 %v574, %v573
        %v598 = vpack.c.bf16 %v576, %v575
        %v599 = vpack.c.bf16 %v578, %v577
        %v600 = vpack.c.bf16 %v580, %v579
        %v601 = vpack.c.bf16 %v582, %v581
        %v602 = vpack.c.bf16 %v584, %v583
        %v603 = vpack.c.bf16 %v586, %v585
        %v604 = vpack.c.bf16 %v588, %v587
        %v605 = vld [vmem:[#allocation5] sm:$0xf]
        %v606 = vld [vmem:[#allocation2 + $0x1] sm:$0xff]
        %v607 = vld [vmem:[#allocation2 + $0x9] sm:$0xff]
        %v608 = vld [vmem:[#allocation2 + $0x19] sm:$0xff]
        %v609 = vld [vmem:[#allocation2 + $0x21] sm:$0xff]
        %v610 = vld [vmem:[#allocation2 + $0x31] sm:$0xff]
        %v611 = vld [vmem:[#allocation2 + $0x39] sm:$0xff]
        %v612 = vld [vmem:[#allocation2 + $0x49] sm:$0xff]
        %v613 = vld [vmem:[#allocation2 + $0x51] sm:$0xff]
        %v614 = vld [vmem:[#allocation2 + $0x61] sm:$0xff]
        %v615 = vld [vmem:[#allocation2 + $0x69] sm:$0xff]
        %v616 = vld [vmem:[#allocation2 + $0x79] sm:$0xff]
        %v617 = vld [vmem:[#allocation2 + $0x81] sm:$0xff]
        %v618 = vld [vmem:[#allocation2 + $0x91] sm:$0xff]
        %v619 = vld [vmem:[#allocation2 + $0x99] sm:$0xff]
        %v620 = vld [vmem:[#allocation2 + $0xa9] sm:$0xff]
        %v621 = vld [vmem:[#allocation2 + $0xb1] sm:$0xff]
        %v622 = vld [vmem:[#allocation2 + $0xc1] sm:$0xff]
        %v623 = vld [vmem:[#allocation2 + $0xc9] sm:$0xff]
        %v624 = vld [vmem:[#allocation2 + $0xd9] sm:$0xff]
        %v625 = vld [vmem:[#allocation2 + $0xe1] sm:$0xff]
        %v626 = vld [vmem:[#allocation2 + $0xf1] sm:$0xff]
        %v627 = vld [vmem:[#allocation2 + $0xf9] sm:$0xff]
        %v628 = vld [vmem:[#allocation2 + $0x109] sm:$0xff]
        %v629 = vld [vmem:[#allocation2 + $0x111] sm:$0xff]
        %v630 = vld [vmem:[#allocation2 + $0x121] sm:$0xff]
        %v631 = vld [vmem:[#allocation2 + $0x129] sm:$0xff]
        %v632 = vld [vmem:[#allocation2 + $0x139] sm:$0xff]
        %v633 = vld [vmem:[#allocation2 + $0x141] sm:$0xff]
        %v634 = vld [vmem:[#allocation2 + $0x151] sm:$0xff]
        %v635 = vld [vmem:[#allocation2 + $0x159] sm:$0xff]
        %v636 = vld [vmem:[#allocation2 + $0x169] sm:$0xff]
        %v637 = vld [vmem:[#allocation2 + $0x171] sm:$0xff]
        %v638 = vpack.c.bf16 %v607, %v606
        %v639 = vpack.c.bf16 %v609, %v608
        %v640 = vpack.c.bf16 %v611, %v610
        %v641 = vpack.c.bf16 %v613, %v612
        %v642 = vpack.c.bf16 %v615, %v614
        %v643 = vpack.c.bf16 %v617, %v616
        %v644 = vpack.c.bf16 %v619, %v618
        %v645 = vpack.c.bf16 %v621, %v620
        %v646 = vpack.c.bf16 %v623, %v622
        %v647 = vpack.c.bf16 %v625, %v624
        %v648 = vpack.c.bf16 %v627, %v626
        %v649 = vpack.c.bf16 %v629, %v628
        %v650 = vpack.c.bf16 %v631, %v630
        %v651 = vpack.c.bf16 %v633, %v632
        %v652 = vpack.c.bf16 %v635, %v634
        %v653 = vpack.c.bf16 %v637, %v636
        %s654 = scalar_lea.vmem [#allocation5], 4
        %v655 = vld [vmem:[%s654] sm:$0xf]
        %v657 = vsel %vm436, %v638, 0
        %v660 = vsel %vm436, %v639, 0
        %v663 = vsel %vm436, %v640, 0
        %v666 = vsel %vm436, %v641, 0
        %v669 = vsel %vm436, %v642, 0
        %v672 = vsel %vm436, %v643, 0
        %v675 = vsel %vm436, %v644, 0
        %v678 = vsel %vm436, %v645, 0
        %v681 = vsel %vm436, %v646, 0
        %v684 = vsel %vm436, %v647, 0
        %v687 = vsel %vm436, %v648, 0
        %v690 = vsel %vm436, %v649, 0
        %v693 = vsel %vm436, %v650, 0
        %v696 = vsel %vm436, %v651, 0
        %v699 = vsel %vm436, %v652, 0
        %v702 = vsel %vm436, %v653, 0
        %vm704 = vcmask 1043456
        %v706 = vsel %vm704, %v655, 0
        %708 = vmatpush.bf16.msra.mxu0 0
        %709 = vmatpush.bf16.msra.mxu0 0
        %710 = vmatpush.bf16.msra.mxu0 0
        %711 = vmatpush.bf16.msra.mxu0 0
        %712 = vmatpush.bf16.msra.mxu0 0
        %713 = vmatpush.bf16.msra.mxu0 0
        %714 = vmatpush.bf16.msra.mxu0 0
        %715 = vmatpush.bf16.msra.mxu0 %v706
        %716 = vmatmul.bf16.gmra.mxu0 %v657
        %v717 = vpop.f32.mrf.mxu0
        %v718 = vadd.f32 0.0, %v717
        %v719 = vpop.f32.mrf.mxu0
        %v720 = vadd.f32 0.0, %v719
        %721 = vmatmul.bf16.gmra.mxu0 %v660
        %v722 = vpop.f32.mrf.mxu0
        %v723 = vadd.f32 0.0, %v722
        %v724 = vpop.f32.mrf.mxu0
        %v725 = vadd.f32 0.0, %v724
        %726 = vmatmul.bf16.gmra.mxu0 %v663
        %v727 = vpop.f32.mrf.mxu0
        %v728 = vadd.f32 0.0, %v727
        %v729 = vpop.f32.mrf.mxu0
        %v730 = vadd.f32 0.0, %v729
        %731 = vmatmul.bf16.gmra.mxu0 %v666
        %v732 = vpop.f32.mrf.mxu0
        %v733 = vadd.f32 0.0, %v732
        %v734 = vpop.f32.mrf.mxu0
        %v735 = vadd.f32 0.0, %v734
        %736 = vmatmul.bf16.gmra.mxu0 %v669
        %v737 = vpop.f32.mrf.mxu0
        %v738 = vadd.f32 0.0, %v737
        %v739 = vpop.f32.mrf.mxu0
        %v740 = vadd.f32 0.0, %v739
        %741 = vmatmul.bf16.gmra.mxu0 %v672
        %v742 = vpop.f32.mrf.mxu0
        %v743 = vadd.f32 0.0, %v742
        %v744 = vpop.f32.mrf.mxu0
        %v745 = vadd.f32 0.0, %v744
        %746 = vmatmul.bf16.gmra.mxu0 %v675
        %v747 = vpop.f32.mrf.mxu0
        %v748 = vadd.f32 0.0, %v747
        %v749 = vpop.f32.mrf.mxu0
        %v750 = vadd.f32 0.0, %v749
        %751 = vmatmul.bf16.gmra.mxu0 %v678
        %v752 = vpop.f32.mrf.mxu0
        %v753 = vadd.f32 0.0, %v752
        %v754 = vpop.f32.mrf.mxu0
        %v755 = vadd.f32 0.0, %v754
        %756 = vmatmul.bf16.gmra.mxu0 %v681
        %v757 = vpop.f32.mrf.mxu0
        %v758 = vadd.f32 0.0, %v757
        %v759 = vpop.f32.mrf.mxu0
        %v760 = vadd.f32 0.0, %v759
        %761 = vmatmul.bf16.gmra.mxu0 %v684
        %v762 = vpop.f32.mrf.mxu0
        %v763 = vadd.f32 0.0, %v762
        %v764 = vpop.f32.mrf.mxu0
        %v765 = vadd.f32 0.0, %v764
        %766 = vmatmul.bf16.gmra.mxu0 %v687
        %v767 = vpop.f32.mrf.mxu0
        %v768 = vadd.f32 0.0, %v767
        %v769 = vpop.f32.mrf.mxu0
        %v770 = vadd.f32 0.0, %v769
        %771 = vmatmul.bf16.gmra.mxu0 %v690
        %v772 = vpop.f32.mrf.mxu0
        %v773 = vadd.f32 0.0, %v772
        %v774 = vpop.f32.mrf.mxu0
        %v775 = vadd.f32 0.0, %v774
        %776 = vmatmul.bf16.gmra.mxu0 %v693
        %v777 = vpop.f32.mrf.mxu0
        %v778 = vadd.f32 0.0, %v777
        %v779 = vpop.f32.mrf.mxu0
        %v780 = vadd.f32 0.0, %v779
        %781 = vmatmul.bf16.gmra.mxu0 %v696
        %v782 = vpop.f32.mrf.mxu0
        %v783 = vadd.f32 0.0, %v782
        %v784 = vpop.f32.mrf.mxu0
        %v785 = vadd.f32 0.0, %v784
        %786 = vmatmul.bf16.gmra.mxu0 %v699
        %v787 = vpop.f32.mrf.mxu0
        %v788 = vadd.f32 0.0, %v787
        %v789 = vpop.f32.mrf.mxu0
        %v790 = vadd.f32 0.0, %v789
        %791 = vmatmul.bf16.gmra.mxu0 %v702
        %v792 = vpop.f32.mrf.mxu0
        %v793 = vadd.f32 0.0, %v792
        %v794 = vpop.f32.mrf.mxu0
        %v795 = vadd.f32 0.0, %v794
        %796 = vdwg.mxu0
        %v798 = vsel %vm436, %v589, 0
        %v801 = vsel %vm436, %v590, 0
        %v804 = vsel %vm436, %v591, 0
        %v807 = vsel %vm436, %v592, 0
        %v810 = vsel %vm436, %v593, 0
        %v813 = vsel %vm436, %v594, 0
        %v816 = vsel %vm436, %v595, 0
        %v819 = vsel %vm436, %v596, 0
        %v822 = vsel %vm436, %v597, 0
        %v825 = vsel %vm436, %v598, 0
        %v828 = vsel %vm436, %v599, 0
        %v831 = vsel %vm436, %v600, 0
        %v834 = vsel %vm436, %v601, 0
        %v837 = vsel %vm436, %v602, 0
        %v840 = vsel %vm436, %v603, 0
        %v843 = vsel %vm436, %v604, 0
        %v846 = vsel %vm704, %v605, 0
        %848 = vmatpush.bf16.msra.mxu0 0
        %849 = vmatpush.bf16.msra.mxu0 0
        %850 = vmatpush.bf16.msra.mxu0 0
        %851 = vmatpush.bf16.msra.mxu0 0
        %852 = vmatpush.bf16.msra.mxu0 0
        %853 = vmatpush.bf16.msra.mxu0 0
        %854 = vmatpush.bf16.msra.mxu0 0
        %855 = vmatpush.bf16.msra.mxu0 %v846
        %856 = vmatmul.bf16.gmra.mxu0 %v798
        %v857 = vpop.f32.mrf.mxu0
        %v858 = vadd.f32 %v718, %v857
        %v859 = vpop.f32.mrf.mxu0
        %v860 = vadd.f32 %v720, %v859
        %861 = vmatmul.bf16.gmra.mxu0 %v801
        %v862 = vpop.f32.mrf.mxu0
        %v863 = vadd.f32 %v723, %v862
        %v864 = vpop.f32.mrf.mxu0
        %v865 = vadd.f32 %v725, %v864
        %866 = vmatmul.bf16.gmra.mxu0 %v804
        %v867 = vpop.f32.mrf.mxu0
        %v868 = vadd.f32 %v728, %v867
        %v869 = vpop.f32.mrf.mxu0
        %v870 = vadd.f32 %v730, %v869
        %871 = vmatmul.bf16.gmra.mxu0 %v807
        %v872 = vpop.f32.mrf.mxu0
        %v873 = vadd.f32 %v733, %v872
        %v874 = vpop.f32.mrf.mxu0
        %v875 = vadd.f32 %v735, %v874
        %876 = vmatmul.bf16.gmra.mxu0 %v810
        %v877 = vpop.f32.mrf.mxu0
        %v878 = vadd.f32 %v738, %v877
        %v879 = vpop.f32.mrf.mxu0
        %v880 = vadd.f32 %v740, %v879
        %881 = vmatmul.bf16.gmra.mxu0 %v813
        %v882 = vpop.f32.mrf.mxu0
        %v883 = vadd.f32 %v743, %v882
        %v884 = vpop.f32.mrf.mxu0
        %v885 = vadd.f32 %v745, %v884
        %886 = vmatmul.bf16.gmra.mxu0 %v816
        %v887 = vpop.f32.mrf.mxu0
        %v888 = vadd.f32 %v748, %v887
        %v889 = vpop.f32.mrf.mxu0
        %v890 = vadd.f32 %v750, %v889
        %891 = vmatmul.bf16.gmra.mxu0 %v819
        %v892 = vpop.f32.mrf.mxu0
        %v893 = vadd.f32 %v753, %v892
        %v894 = vpop.f32.mrf.mxu0
        %v895 = vadd.f32 %v755, %v894
        %896 = vmatmul.bf16.gmra.mxu0 %v822
        %v897 = vpop.f32.mrf.mxu0
        %v898 = vadd.f32 %v758, %v897
        %v899 = vpop.f32.mrf.mxu0
        %v900 = vadd.f32 %v760, %v899
        %901 = vmatmul.bf16.gmra.mxu0 %v825
        %v902 = vpop.f32.mrf.mxu0
        %v903 = vadd.f32 %v763, %v902
        %v904 = vpop.f32.mrf.mxu0
        %v905 = vadd.f32 %v765, %v904
        %906 = vmatmul.bf16.gmra.mxu0 %v828
        %v907 = vpop.f32.mrf.mxu0
        %v908 = vadd.f32 %v768, %v907
        %v909 = vpop.f32.mrf.mxu0
        %v910 = vadd.f32 %v770, %v909
        %911 = vmatmul.bf16.gmra.mxu0 %v831
        %v912 = vpop.f32.mrf.mxu0
        %v913 = vadd.f32 %v773, %v912
        %v914 = vpop.f32.mrf.mxu0
        %v915 = vadd.f32 %v775, %v914
        %916 = vmatmul.bf16.gmra.mxu0 %v834
        %v917 = vpop.f32.mrf.mxu0
        %v918 = vadd.f32 %v778, %v917
        %v919 = vpop.f32.mrf.mxu0
        %v920 = vadd.f32 %v780, %v919
        %921 = vmatmul.bf16.gmra.mxu0 %v837
        %v922 = vpop.f32.mrf.mxu0
        %v923 = vadd.f32 %v783, %v922
        %v924 = vpop.f32.mrf.mxu0
        %v925 = vadd.f32 %v785, %v924
        %926 = vmatmul.bf16.gmra.mxu0 %v840
        %v927 = vpop.f32.mrf.mxu0
        %v928 = vadd.f32 %v788, %v927
        %v929 = vpop.f32.mrf.mxu0
        %v930 = vadd.f32 %v790, %v929
        %931 = vmatmul.bf16.gmra.mxu0 %v843
        %v932 = vpop.f32.mrf.mxu0
        %v933 = vadd.f32 %v793, %v932
        %v934 = vpop.f32.mrf.mxu0
        %v935 = vadd.f32 %v795, %v934
        %936 = vdwg.mxu0
        %v937 = vld [vmem:[#allocation2 + $0x2] sm:$0xff]
        %v938 = vld [vmem:[#allocation2 + $0xa] sm:$0xff]
        %v939 = vld [vmem:[#allocation2 + $0x1a] sm:$0xff]
        %v940 = vld [vmem:[#allocation2 + $0x22] sm:$0xff]
        %v941 = vld [vmem:[#allocation2 + $0x32] sm:$0xff]
        %v942 = vld [vmem:[#allocation2 + $0x3a] sm:$0xff]
        %v943 = vld [vmem:[#allocation2 + $0x4a] sm:$0xff]
        %v944 = vld [vmem:[#allocation2 + $0x52] sm:$0xff]
        %v945 = vld [vmem:[#allocation2 + $0x62] sm:$0xff]
        %v946 = vld [vmem:[#allocation2 + $0x6a] sm:$0xff]
        %v947 = vld [vmem:[#allocation2 + $0x7a] sm:$0xff]
        %v948 = vld [vmem:[#allocation2 + $0x82] sm:$0xff]
        %v949 = vld [vmem:[#allocation2 + $0x92] sm:$0xff]
        %v950 = vld [vmem:[#allocation2 + $0x9a] sm:$0xff]
        %v951 = vld [vmem:[#allocation2 + $0xaa] sm:$0xff]
        %v952 = vld [vmem:[#allocation2 + $0xb2] sm:$0xff]
        %v953 = vld [vmem:[#allocation2 + $0xc2] sm:$0xff]
        %v954 = vld [vmem:[#allocation2 + $0xca] sm:$0xff]
        %v955 = vld [vmem:[#allocation2 + $0xda] sm:$0xff]
        %v956 = vld [vmem:[#allocation2 + $0xe2] sm:$0xff]
        %v957 = vld [vmem:[#allocation2 + $0xf2] sm:$0xff]
        %v958 = vld [vmem:[#allocation2 + $0xfa] sm:$0xff]
        %v959 = vld [vmem:[#allocation2 + $0x10a] sm:$0xff]
        %v960 = vld [vmem:[#allocation2 + $0x112] sm:$0xff]
        %v961 = vld [vmem:[#allocation2 + $0x122] sm:$0xff]
        %v962 = vld [vmem:[#allocation2 + $0x12a] sm:$0xff]
        %v963 = vld [vmem:[#allocation2 + $0x13a] sm:$0xff]
        %v964 = vld [vmem:[#allocation2 + $0x142] sm:$0xff]
        %v965 = vld [vmem:[#allocation2 + $0x152] sm:$0xff]
        %v966 = vld [vmem:[#allocation2 + $0x15a] sm:$0xff]
        %v967 = vld [vmem:[#allocation2 + $0x16a] sm:$0xff]
        %v968 = vld [vmem:[#allocation2 + $0x172] sm:$0xff]
        %v969 = vpack.c.bf16 %v938, %v937
        %v970 = vpack.c.bf16 %v940, %v939
        %v971 = vpack.c.bf16 %v942, %v941
        %v972 = vpack.c.bf16 %v944, %v943
        %v973 = vpack.c.bf16 %v946, %v945
        %v974 = vpack.c.bf16 %v948, %v947
        %v975 = vpack.c.bf16 %v950, %v949
        %v976 = vpack.c.bf16 %v952, %v951
        %v977 = vpack.c.bf16 %v954, %v953
        %v978 = vpack.c.bf16 %v956, %v955
        %v979 = vpack.c.bf16 %v958, %v957
        %v980 = vpack.c.bf16 %v960, %v959
        %v981 = vpack.c.bf16 %v962, %v961
        %v982 = vpack.c.bf16 %v964, %v963
        %v983 = vpack.c.bf16 %v966, %v965
        %v984 = vpack.c.bf16 %v968, %v967
        %s985 = scalar_lea.vmem [#allocation5], 8
        %v986 = vld [vmem:[%s985] sm:$0xf]
        %v988 = vsel %vm436, %v969, 0
        %v991 = vsel %vm436, %v970, 0
        %v994 = vsel %vm436, %v971, 0
        %v997 = vsel %vm436, %v972, 0
        %v1000 = vsel %vm436, %v973, 0
        %v1003 = vsel %vm436, %v974, 0
        %v1006 = vsel %vm436, %v975, 0
        %v1009 = vsel %vm436, %v976, 0
        %v1012 = vsel %vm436, %v977, 0
        %v1015 = vsel %vm436, %v978, 0
        %v1018 = vsel %vm436, %v979, 0
        %v1021 = vsel %vm436, %v980, 0
        %v1024 = vsel %vm436, %v981, 0
        %v1027 = vsel %vm436, %v982, 0
        %v1030 = vsel %vm436, %v983, 0
        %v1033 = vsel %vm436, %v984, 0
        %v1036 = vsel %vm704, %v986, 0
        %1038 = vmatpush.bf16.msra.mxu0 0
        %1039 = vmatpush.bf16.msra.mxu0 0
        %1040 = vmatpush.bf16.msra.mxu0 0
        %1041 = vmatpush.bf16.msra.mxu0 0
        %1042 = vmatpush.bf16.msra.mxu0 0
        %1043 = vmatpush.bf16.msra.mxu0 0
        %1044 = vmatpush.bf16.msra.mxu0 0
        %1045 = vmatpush.bf16.msra.mxu0 %v1036
        %1046 = vmatmul.bf16.gmra.mxu0 %v988
        %v1047 = vpop.f32.mrf.mxu0
        %v1048 = vadd.f32 0.0, %v1047
        %v1049 = vpop.f32.mrf.mxu0
        %v1050 = vadd.f32 0.0, %v1049
        %1051 = vmatmul.bf16.gmra.mxu0 %v991
        %v1052 = vpop.f32.mrf.mxu0
        %v1053 = vadd.f32 0.0, %v1052
        %v1054 = vpop.f32.mrf.mxu0
        %v1055 = vadd.f32 0.0, %v1054
        %1056 = vmatmul.bf16.gmra.mxu0 %v994
        %v1057 = vpop.f32.mrf.mxu0
        %v1058 = vadd.f32 0.0, %v1057
        %v1059 = vpop.f32.mrf.mxu0
        %v1060 = vadd.f32 0.0, %v1059
        %1061 = vmatmul.bf16.gmra.mxu0 %v997
        %v1062 = vpop.f32.mrf.mxu0
        %v1063 = vadd.f32 0.0, %v1062
        %v1064 = vpop.f32.mrf.mxu0
        %v1065 = vadd.f32 0.0, %v1064
        %1066 = vmatmul.bf16.gmra.mxu0 %v1000
        %v1067 = vpop.f32.mrf.mxu0
        %v1068 = vadd.f32 0.0, %v1067
        %v1069 = vpop.f32.mrf.mxu0
        %v1070 = vadd.f32 0.0, %v1069
        %1071 = vmatmul.bf16.gmra.mxu0 %v1003
        %v1072 = vpop.f32.mrf.mxu0
        %v1073 = vadd.f32 0.0, %v1072
        %v1074 = vpop.f32.mrf.mxu0
        %v1075 = vadd.f32 0.0, %v1074
        %1076 = vmatmul.bf16.gmra.mxu0 %v1006
        %v1077 = vpop.f32.mrf.mxu0
        %v1078 = vadd.f32 0.0, %v1077
        %v1079 = vpop.f32.mrf.mxu0
        %v1080 = vadd.f32 0.0, %v1079
        %1081 = vmatmul.bf16.gmra.mxu0 %v1009
        %v1082 = vpop.f32.mrf.mxu0
        %v1083 = vadd.f32 0.0, %v1082
        %v1084 = vpop.f32.mrf.mxu0
        %v1085 = vadd.f32 0.0, %v1084
        %1086 = vmatmul.bf16.gmra.mxu0 %v1012
        %v1087 = vpop.f32.mrf.mxu0
        %v1088 = vadd.f32 0.0, %v1087
        %v1089 = vpop.f32.mrf.mxu0
        %v1090 = vadd.f32 0.0, %v1089
        %1091 = vmatmul.bf16.gmra.mxu0 %v1015
        %v1092 = vpop.f32.mrf.mxu0
        %v1093 = vadd.f32 0.0, %v1092
        %v1094 = vpop.f32.mrf.mxu0
        %v1095 = vadd.f32 0.0, %v1094
        %1096 = vmatmul.bf16.gmra.mxu0 %v1018
        %v1097 = vpop.f32.mrf.mxu0
        %v1098 = vadd.f32 0.0, %v1097
        %v1099 = vpop.f32.mrf.mxu0
        %v1100 = vadd.f32 0.0, %v1099
        %1101 = vmatmul.bf16.gmra.mxu0 %v1021
        %v1102 = vpop.f32.mrf.mxu0
        %v1103 = vadd.f32 0.0, %v1102
        %v1104 = vpop.f32.mrf.mxu0
        %v1105 = vadd.f32 0.0, %v1104
        %1106 = vmatmul.bf16.gmra.mxu0 %v1024
        %v1107 = vpop.f32.mrf.mxu0
        %v1108 = vadd.f32 0.0, %v1107
        %v1109 = vpop.f32.mrf.mxu0
        %v1110 = vadd.f32 0.0, %v1109
        %1111 = vmatmul.bf16.gmra.mxu0 %v1027
        %v1112 = vpop.f32.mrf.mxu0
        %v1113 = vadd.f32 0.0, %v1112
        %v1114 = vpop.f32.mrf.mxu0
        %v1115 = vadd.f32 0.0, %v1114
        %1116 = vmatmul.bf16.gmra.mxu0 %v1030
        %v1117 = vpop.f32.mrf.mxu0
        %v1118 = vadd.f32 0.0, %v1117
        %v1119 = vpop.f32.mrf.mxu0
        %v1120 = vadd.f32 0.0, %v1119
        %1121 = vmatmul.bf16.gmra.mxu0 %v1033
        %v1122 = vpop.f32.mrf.mxu0
        %v1123 = vadd.f32 0.0, %v1122
        %v1124 = vpop.f32.mrf.mxu0
        %v1125 = vadd.f32 0.0, %v1124
        %1126 = vdwg.mxu0
        %v1127 = vadd.f32 %v858, %v1048
        %v1128 = vadd.f32 %v860, %v1050
        %v1129 = vadd.f32 %v863, %v1053
        %v1130 = vadd.f32 %v865, %v1055
        %v1131 = vadd.f32 %v868, %v1058
        %v1132 = vadd.f32 %v870, %v1060
        %v1133 = vadd.f32 %v873, %v1063
        %v1134 = vadd.f32 %v875, %v1065
        %v1135 = vadd.f32 %v878, %v1068
        %v1136 = vadd.f32 %v880, %v1070
        %v1137 = vadd.f32 %v883, %v1073
        %v1138 = vadd.f32 %v885, %v1075
        %v1139 = vadd.f32 %v888, %v1078
        %v1140 = vadd.f32 %v890, %v1080
        %v1141 = vadd.f32 %v893, %v1083
        %v1142 = vadd.f32 %v895, %v1085
        %v1143 = vadd.f32 %v898, %v1088
        %v1144 = vadd.f32 %v900, %v1090
        %v1145 = vadd.f32 %v903, %v1093
        %v1146 = vadd.f32 %v905, %v1095
        %v1147 = vadd.f32 %v908, %v1098
        %v1148 = vadd.f32 %v910, %v1100
        %v1149 = vadd.f32 %v913, %v1103
        %v1150 = vadd.f32 %v915, %v1105
        %v1151 = vadd.f32 %v918, %v1108
        %v1152 = vadd.f32 %v920, %v1110
        %v1153 = vadd.f32 %v923, %v1113
        %v1154 = vadd.f32 %v925, %v1115
        %v1155 = vadd.f32 %v928, %v1118
        %v1156 = vadd.f32 %v930, %v1120
        %v1157 = vadd.f32 %v933, %v1123
        %v1158 = vadd.f32 %v935, %v1125
        %v1159 = vld [vmem:[%s524] sm:$0xff]
        %v1160 = vld [vmem:[%s524 + $0x8] sm:$0xff]
        %v1161 = vld [vmem:[%s524 + $0x18] sm:$0xff]
        %v1162 = vld [vmem:[%s524 + $0x20] sm:$0xff]
        %v1163 = vld [vmem:[%s524 + $0x30] sm:$0xff]
        %v1164 = vld [vmem:[%s524 + $0x38] sm:$0xff]
        %v1165 = vld [vmem:[%s524 + $0x48] sm:$0xff]
        %v1166 = vld [vmem:[%s524 + $0x50] sm:$0xff]
        %v1167 = vld [vmem:[%s524 + $0x60] sm:$0xff]
        %v1168 = vld [vmem:[%s524 + $0x68] sm:$0xff]
        %v1169 = vld [vmem:[%s524 + $0x78] sm:$0xff]
        %v1170 = vld [vmem:[%s524 + $0x80] sm:$0xff]
        %v1171 = vld [vmem:[%s524 + $0x90] sm:$0xff]
        %v1172 = vld [vmem:[%s524 + $0x98] sm:$0xff]
        %v1173 = vld [vmem:[%s524 + $0xa8] sm:$0xff]
        %v1174 = vld [vmem:[%s524 + $0xb0] sm:$0xff]
        %v1175 = vld [vmem:[%s524 + $0xc0] sm:$0xff]
        %v1176 = vld [vmem:[%s524 + $0xc8] sm:$0xff]
        %v1177 = vld [vmem:[%s524 + $0xd8] sm:$0xff]
        %v1178 = vld [vmem:[%s524 + $0xe0] sm:$0xff]
        %v1179 = vld [vmem:[%s524 + $0xf0] sm:$0xff]
        %v1180 = vld [vmem:[%s524 + $0xf8] sm:$0xff]
        %v1181 = vld [vmem:[%s524 + $0x108] sm:$0xff]
        %v1182 = vld [vmem:[%s524 + $0x110] sm:$0xff]
        %v1183 = vld [vmem:[%s524 + $0x120] sm:$0xff]
        %v1184 = vld [vmem:[%s524 + $0x128] sm:$0xff]
        %v1185 = vld [vmem:[%s524 + $0x138] sm:$0xff]
        %v1186 = vld [vmem:[%s524 + $0x140] sm:$0xff]
        %v1187 = vld [vmem:[%s524 + $0x150] sm:$0xff]
        %v1188 = vld [vmem:[%s524 + $0x158] sm:$0xff]
        %v1189 = vld [vmem:[%s524 + $0x168] sm:$0xff]
        %v1190 = vld [vmem:[%s524 + $0x170] sm:$0xff]
        %v1191 = vpack.c.bf16 %v1160, %v1159
        %v1192 = vpack.c.bf16 %v1162, %v1161
        %v1193 = vpack.c.bf16 %v1164, %v1163
        %v1194 = vpack.c.bf16 %v1166, %v1165
        %v1195 = vpack.c.bf16 %v1168, %v1167
        %v1196 = vpack.c.bf16 %v1170, %v1169
        %v1197 = vpack.c.bf16 %v1172, %v1171
        %v1198 = vpack.c.bf16 %v1174, %v1173
        %v1199 = vpack.c.bf16 %v1176, %v1175
        %v1200 = vpack.c.bf16 %v1178, %v1177
        %v1201 = vpack.c.bf16 %v1180, %v1179
        %v1202 = vpack.c.bf16 %v1182, %v1181
        %v1203 = vpack.c.bf16 %v1184, %v1183
        %v1204 = vpack.c.bf16 %v1186, %v1185
        %v1205 = vpack.c.bf16 %v1188, %v1187
        %v1206 = vpack.c.bf16 %v1190, %v1189
        %s1207 = scalar_lea.vmem [#allocation5], 12
        %v1208 = vld [vmem:[%s1207] sm:$0xf]
        %v1210 = vsel %vm436, %v1191, 0
        %v1213 = vsel %vm436, %v1192, 0
        %v1216 = vsel %vm436, %v1193, 0
        %v1219 = vsel %vm436, %v1194, 0
        %v1222 = vsel %vm436, %v1195, 0
        %v1225 = vsel %vm436, %v1196, 0
        %v1228 = vsel %vm436, %v1197, 0
        %v1231 = vsel %vm436, %v1198, 0
        %v1234 = vsel %vm436, %v1199, 0
        %v1237 = vsel %vm436, %v1200, 0
        %v1240 = vsel %vm436, %v1201, 0
        %v1243 = vsel %vm436, %v1202, 0
        %v1246 = vsel %vm436, %v1203, 0
        %v1249 = vsel %vm436, %v1204, 0
        %v1252 = vsel %vm436, %v1205, 0
        %v1255 = vsel %vm436, %v1206, 0
        %v1258 = vsel %vm704, %v1208, 0
        %1260 = vmatpush.bf16.msra.mxu0 0
        %1261 = vmatpush.bf16.msra.mxu0 0
        %1262 = vmatpush.bf16.msra.mxu0 0
        %1263 = vmatpush.bf16.msra.mxu0 0
        %1264 = vmatpush.bf16.msra.mxu0 0
        %1265 = vmatpush.bf16.msra.mxu0 0
        %1266 = vmatpush.bf16.msra.mxu0 0
        %1267 = vmatpush.bf16.msra.mxu0 %v1258
        %1268 = vmatmul.bf16.gmra.mxu0 %v1210
        %v1269 = vpop.f32.mrf.mxu0
        %v1270 = vadd.f32 0.0, %v1269
        %v1271 = vpop.f32.mrf.mxu0
        %v1272 = vadd.f32 0.0, %v1271
        %1273 = vmatmul.bf16.gmra.mxu0 %v1213
        %v1274 = vpop.f32.mrf.mxu0
        %v1275 = vadd.f32 0.0, %v1274
        %v1276 = vpop.f32.mrf.mxu0
        %v1277 = vadd.f32 0.0, %v1276
        %1278 = vmatmul.bf16.gmra.mxu0 %v1216
        %v1279 = vpop.f32.mrf.mxu0
        %v1280 = vadd.f32 0.0, %v1279
        %v1281 = vpop.f32.mrf.mxu0
        %v1282 = vadd.f32 0.0, %v1281
        %1283 = vmatmul.bf16.gmra.mxu0 %v1219
        %v1284 = vpop.f32.mrf.mxu0
        %v1285 = vadd.f32 0.0, %v1284
        %v1286 = vpop.f32.mrf.mxu0
        %v1287 = vadd.f32 0.0, %v1286
        %1288 = vmatmul.bf16.gmra.mxu0 %v1222
        %v1289 = vpop.f32.mrf.mxu0
        %v1290 = vadd.f32 0.0, %v1289
        %v1291 = vpop.f32.mrf.mxu0
        %v1292 = vadd.f32 0.0, %v1291
        %1293 = vmatmul.bf16.gmra.mxu0 %v1225
        %v1294 = vpop.f32.mrf.mxu0
        %v1295 = vadd.f32 0.0, %v1294
        %v1296 = vpop.f32.mrf.mxu0
        %v1297 = vadd.f32 0.0, %v1296
        %1298 = vmatmul.bf16.gmra.mxu0 %v1228
        %v1299 = vpop.f32.mrf.mxu0
        %v1300 = vadd.f32 0.0, %v1299
        %v1301 = vpop.f32.mrf.mxu0
        %v1302 = vadd.f32 0.0, %v1301
        %1303 = vmatmul.bf16.gmra.mxu0 %v1231
        %v1304 = vpop.f32.mrf.mxu0
        %v1305 = vadd.f32 0.0, %v1304
        %v1306 = vpop.f32.mrf.mxu0
        %v1307 = vadd.f32 0.0, %v1306
        %1308 = vmatmul.bf16.gmra.mxu0 %v1234
        %v1309 = vpop.f32.mrf.mxu0
        %v1310 = vadd.f32 0.0, %v1309
        %v1311 = vpop.f32.mrf.mxu0
        %v1312 = vadd.f32 0.0, %v1311
        %1313 = vmatmul.bf16.gmra.mxu0 %v1237
        %v1314 = vpop.f32.mrf.mxu0
        %v1315 = vadd.f32 0.0, %v1314
        %v1316 = vpop.f32.mrf.mxu0
        %v1317 = vadd.f32 0.0, %v1316
        %1318 = vmatmul.bf16.gmra.mxu0 %v1240
        %v1319 = vpop.f32.mrf.mxu0
        %v1320 = vadd.f32 0.0, %v1319
        %v1321 = vpop.f32.mrf.mxu0
        %v1322 = vadd.f32 0.0, %v1321
        %1323 = vmatmul.bf16.gmra.mxu0 %v1243
        %v1324 = vpop.f32.mrf.mxu0
        %v1325 = vadd.f32 0.0, %v1324
        %v1326 = vpop.f32.mrf.mxu0
        %v1327 = vadd.f32 0.0, %v1326
        %1328 = vmatmul.bf16.gmra.mxu0 %v1246
        %v1329 = vpop.f32.mrf.mxu0
        %v1330 = vadd.f32 0.0, %v1329
        %v1331 = vpop.f32.mrf.mxu0
        %v1332 = vadd.f32 0.0, %v1331
        %1333 = vmatmul.bf16.gmra.mxu0 %v1249
        %v1334 = vpop.f32.mrf.mxu0
        %v1335 = vadd.f32 0.0, %v1334
        %v1336 = vpop.f32.mrf.mxu0
        %v1337 = vadd.f32 0.0, %v1336
        %1338 = vmatmul.bf16.gmra.mxu0 %v1252
        %v1339 = vpop.f32.mrf.mxu0
        %v1340 = vadd.f32 0.0, %v1339
        %v1341 = vpop.f32.mrf.mxu0
        %v1342 = vadd.f32 0.0, %v1341
        %1343 = vmatmul.bf16.gmra.mxu0 %v1255
        %v1344 = vpop.f32.mrf.mxu0
        %v1345 = vadd.f32 0.0, %v1344
        %v1346 = vpop.f32.mrf.mxu0
        %v1347 = vadd.f32 0.0, %v1346
        %1348 = vdwg.mxu0
        %v1349 = vadd.f32 %v1127, %v1270
        %v1350 = vadd.f32 %v1128, %v1272
        %v1351 = vadd.f32 %v1129, %v1275
        %v1352 = vadd.f32 %v1130, %v1277
        %v1353 = vadd.f32 %v1131, %v1280
        %v1354 = vadd.f32 %v1132, %v1282
        %v1355 = vadd.f32 %v1133, %v1285
        %v1356 = vadd.f32 %v1134, %v1287
        %v1357 = vadd.f32 %v1135, %v1290
        %v1358 = vadd.f32 %v1136, %v1292
        %v1359 = vadd.f32 %v1137, %v1295
        %v1360 = vadd.f32 %v1138, %v1297
        %v1361 = vadd.f32 %v1139, %v1300
        %v1362 = vadd.f32 %v1140, %v1302
        %v1363 = vadd.f32 %v1141, %v1305
        %v1364 = vadd.f32 %v1142, %v1307
        %v1365 = vadd.f32 %v1143, %v1310
        %v1366 = vadd.f32 %v1144, %v1312
        %v1367 = vadd.f32 %v1145, %v1315
        %v1368 = vadd.f32 %v1146, %v1317
        %v1369 = vadd.f32 %v1147, %v1320
        %v1370 = vadd.f32 %v1148, %v1322
        %v1371 = vadd.f32 %v1149, %v1325
        %v1372 = vadd.f32 %v1150, %v1327
        %v1373 = vadd.f32 %v1151, %v1330
        %v1374 = vadd.f32 %v1152, %v1332
        %v1375 = vadd.f32 %v1153, %v1335
        %v1376 = vadd.f32 %v1154, %v1337
        %v1377 = vadd.f32 %v1155, %v1340
        %v1378 = vadd.f32 %v1156, %v1342
        %v1379 = vadd.f32 %v1157, %v1345
        %v1380 = vadd.f32 %v1158, %v1347
        %v1381 = vld [vmem:[%s524 + $0x1] sm:$0xff]
        %v1382 = vld [vmem:[%s524 + $0x9] sm:$0xff]
        %v1383 = vld [vmem:[%s524 + $0x19] sm:$0xff]
        %v1384 = vld [vmem:[%s524 + $0x21] sm:$0xff]
        %v1385 = vld [vmem:[%s524 + $0x31] sm:$0xff]
        %v1386 = vld [vmem:[%s524 + $0x39] sm:$0xff]
        %v1387 = vld [vmem:[%s524 + $0x49] sm:$0xff]
        %v1388 = vld [vmem:[%s524 + $0x51] sm:$0xff]
        %v1389 = vld [vmem:[%s524 + $0x61] sm:$0xff]
        %v1390 = vld [vmem:[%s524 + $0x69] sm:$0xff]
        %v1391 = vld [vmem:[%s524 + $0x79] sm:$0xff]
        %v1392 = vld [vmem:[%s524 + $0x81] sm:$0xff]
        %v1393 = vld [vmem:[%s524 + $0x91] sm:$0xff]
        %v1394 = vld [vmem:[%s524 + $0x99] sm:$0xff]
        %v1395 = vld [vmem:[%s524 + $0xa9] sm:$0xff]
        %v1396 = vld [vmem:[%s524 + $0xb1] sm:$0xff]
        %v1397 = vld [vmem:[%s524 + $0xc1] sm:$0xff]
        %v1398 = vld [vmem:[%s524 + $0xc9] sm:$0xff]
        %v1399 = vld [vmem:[%s524 + $0xd9] sm:$0xff]
        %v1400 = vld [vmem:[%s524 + $0xe1] sm:$0xff]
        %v1401 = vld [vmem:[%s524 + $0xf1] sm:$0xff]
        %v1402 = vld [vmem:[%s524 + $0xf9] sm:$0xff]
        %v1403 = vld [vmem:[%s524 + $0x109] sm:$0xff]
        %v1404 = vld [vmem:[%s524 + $0x111] sm:$0xff]
        %v1405 = vld [vmem:[%s524 + $0x121] sm:$0xff]
        %v1406 = vld [vmem:[%s524 + $0x129] sm:$0xff]
        %v1407 = vld [vmem:[%s524 + $0x139] sm:$0xff]
        %v1408 = vld [vmem:[%s524 + $0x141] sm:$0xff]
        %v1409 = vld [vmem:[%s524 + $0x151] sm:$0xff]
        %v1410 = vld [vmem:[%s524 + $0x159] sm:$0xff]
        %v1411 = vld [vmem:[%s524 + $0x169] sm:$0xff]
        %v1412 = vld [vmem:[%s524 + $0x171] sm:$0xff]
        %v1413 = vpack.c.bf16 %v1382, %v1381
        %v1414 = vpack.c.bf16 %v1384, %v1383
        %v1415 = vpack.c.bf16 %v1386, %v1385
        %v1416 = vpack.c.bf16 %v1388, %v1387
        %v1417 = vpack.c.bf16 %v1390, %v1389
        %v1418 = vpack.c.bf16 %v1392, %v1391
        %v1419 = vpack.c.bf16 %v1394, %v1393
        %v1420 = vpack.c.bf16 %v1396, %v1395
        %v1421 = vpack.c.bf16 %v1398, %v1397
        %v1422 = vpack.c.bf16 %v1400, %v1399
        %v1423 = vpack.c.bf16 %v1402, %v1401
        %v1424 = vpack.c.bf16 %v1404, %v1403
        %v1425 = vpack.c.bf16 %v1406, %v1405
        %v1426 = vpack.c.bf16 %v1408, %v1407
        %v1427 = vpack.c.bf16 %v1410, %v1409
        %v1428 = vpack.c.bf16 %v1412, %v1411
        %s1429 = scalar_lea.vmem [#allocation5], 16
        %v1430 = vld [vmem:[%s1429] sm:$0xf]
        %v1432 = vsel %vm436, %v1413, 0
        %v1435 = vsel %vm436, %v1414, 0
        %v1438 = vsel %vm436, %v1415, 0
        %v1441 = vsel %vm436, %v1416, 0
        %v1444 = vsel %vm436, %v1417, 0
        %v1447 = vsel %vm436, %v1418, 0
        %v1450 = vsel %vm436, %v1419, 0
        %v1453 = vsel %vm436, %v1420, 0
        %v1456 = vsel %vm436, %v1421, 0
        %v1459 = vsel %vm436, %v1422, 0
        %v1462 = vsel %vm436, %v1423, 0
        %v1465 = vsel %vm436, %v1424, 0
        %v1468 = vsel %vm436, %v1425, 0
        %v1471 = vsel %vm436, %v1426, 0
        %v1474 = vsel %vm436, %v1427, 0
        %v1477 = vsel %vm436, %v1428, 0
        %v1480 = vsel %vm704, %v1430, 0
        %1482 = vmatpush.bf16.msra.mxu0 0
        %1483 = vmatpush.bf16.msra.mxu0 0
        %1484 = vmatpush.bf16.msra.mxu0 0
        %1485 = vmatpush.bf16.msra.mxu0 0
        %1486 = vmatpush.bf16.msra.mxu0 0
        %1487 = vmatpush.bf16.msra.mxu0 0
        %1488 = vmatpush.bf16.msra.mxu0 0
        %1489 = vmatpush.bf16.msra.mxu0 %v1480
        %1490 = vmatmul.bf16.gmra.mxu0 %v1432
        %v1491 = vpop.f32.mrf.mxu0
        %v1492 = vadd.f32 0.0, %v1491
        %v1493 = vpop.f32.mrf.mxu0
        %v1494 = vadd.f32 0.0, %v1493
        %1495 = vmatmul.bf16.gmra.mxu0 %v1435
        %v1496 = vpop.f32.mrf.mxu0
        %v1497 = vadd.f32 0.0, %v1496
        %v1498 = vpop.f32.mrf.mxu0
        %v1499 = vadd.f32 0.0, %v1498
        %1500 = vmatmul.bf16.gmra.mxu0 %v1438
        %v1501 = vpop.f32.mrf.mxu0
        %v1502 = vadd.f32 0.0, %v1501
        %v1503 = vpop.f32.mrf.mxu0
        %v1504 = vadd.f32 0.0, %v1503
        %1505 = vmatmul.bf16.gmra.mxu0 %v1441
        %v1506 = vpop.f32.mrf.mxu0
        %v1507 = vadd.f32 0.0, %v1506
        %v1508 = vpop.f32.mrf.mxu0
        %v1509 = vadd.f32 0.0, %v1508
        %1510 = vmatmul.bf16.gmra.mxu0 %v1444
        %v1511 = vpop.f32.mrf.mxu0
        %v1512 = vadd.f32 0.0, %v1511
        %v1513 = vpop.f32.mrf.mxu0
        %v1514 = vadd.f32 0.0, %v1513
        %1515 = vmatmul.bf16.gmra.mxu0 %v1447
        %v1516 = vpop.f32.mrf.mxu0
        %v1517 = vadd.f32 0.0, %v1516
        %v1518 = vpop.f32.mrf.mxu0
        %v1519 = vadd.f32 0.0, %v1518
        %1520 = vmatmul.bf16.gmra.mxu0 %v1450
        %v1521 = vpop.f32.mrf.mxu0
        %v1522 = vadd.f32 0.0, %v1521
        %v1523 = vpop.f32.mrf.mxu0
        %v1524 = vadd.f32 0.0, %v1523
        %1525 = vmatmul.bf16.gmra.mxu0 %v1453
        %v1526 = vpop.f32.mrf.mxu0
        %v1527 = vadd.f32 0.0, %v1526
        %v1528 = vpop.f32.mrf.mxu0
        %v1529 = vadd.f32 0.0, %v1528
        %1530 = vmatmul.bf16.gmra.mxu0 %v1456
        %v1531 = vpop.f32.mrf.mxu0
        %v1532 = vadd.f32 0.0, %v1531
        %v1533 = vpop.f32.mrf.mxu0
        %v1534 = vadd.f32 0.0, %v1533
        %1535 = vmatmul.bf16.gmra.mxu0 %v1459
        %v1536 = vpop.f32.mrf.mxu0
        %v1537 = vadd.f32 0.0, %v1536
        %v1538 = vpop.f32.mrf.mxu0
        %v1539 = vadd.f32 0.0, %v1538
        %1540 = vmatmul.bf16.gmra.mxu0 %v1462
        %v1541 = vpop.f32.mrf.mxu0
        %v1542 = vadd.f32 0.0, %v1541
        %v1543 = vpop.f32.mrf.mxu0
        %v1544 = vadd.f32 0.0, %v1543
        %1545 = vmatmul.bf16.gmra.mxu0 %v1465
        %v1546 = vpop.f32.mrf.mxu0
        %v1547 = vadd.f32 0.0, %v1546
        %v1548 = vpop.f32.mrf.mxu0
        %v1549 = vadd.f32 0.0, %v1548
        %1550 = vmatmul.bf16.gmra.mxu0 %v1468
        %v1551 = vpop.f32.mrf.mxu0
        %v1552 = vadd.f32 0.0, %v1551
        %v1553 = vpop.f32.mrf.mxu0
        %v1554 = vadd.f32 0.0, %v1553
        %1555 = vmatmul.bf16.gmra.mxu0 %v1471
        %v1556 = vpop.f32.mrf.mxu0
        %v1557 = vadd.f32 0.0, %v1556
        %v1558 = vpop.f32.mrf.mxu0
        %v1559 = vadd.f32 0.0, %v1558
        %1560 = vmatmul.bf16.gmra.mxu0 %v1474
        %v1561 = vpop.f32.mrf.mxu0
        %v1562 = vadd.f32 0.0, %v1561
        %v1563 = vpop.f32.mrf.mxu0
        %v1564 = vadd.f32 0.0, %v1563
        %1565 = vmatmul.bf16.gmra.mxu0 %v1477
        %v1566 = vpop.f32.mrf.mxu0
        %v1567 = vadd.f32 0.0, %v1566
        %v1568 = vpop.f32.mrf.mxu0
        %v1569 = vadd.f32 0.0, %v1568
        %1570 = vdwg.mxu0
        %v1571 = vadd.f32 %v1349, %v1492
        %v1572 = vadd.f32 %v1350, %v1494
        %v1573 = vadd.f32 %v1351, %v1497
        %v1574 = vadd.f32 %v1352, %v1499
        %v1575 = vadd.f32 %v1353, %v1502
        %v1576 = vadd.f32 %v1354, %v1504
        %v1577 = vadd.f32 %v1355, %v1507
        %v1578 = vadd.f32 %v1356, %v1509
        %v1579 = vadd.f32 %v1357, %v1512
        %v1580 = vadd.f32 %v1358, %v1514
        %v1581 = vadd.f32 %v1359, %v1517
        %v1582 = vadd.f32 %v1360, %v1519
        %v1583 = vadd.f32 %v1361, %v1522
        %v1584 = vadd.f32 %v1362, %v1524
        %v1585 = vadd.f32 %v1363, %v1527
        %v1586 = vadd.f32 %v1364, %v1529
        %v1587 = vadd.f32 %v1365, %v1532
        %v1588 = vadd.f32 %v1366, %v1534
        %v1589 = vadd.f32 %v1367, %v1537
        %v1590 = vadd.f32 %v1368, %v1539
        %v1591 = vadd.f32 %v1369, %v1542
        %v1592 = vadd.f32 %v1370, %v1544
        %v1593 = vadd.f32 %v1371, %v1547
        %v1594 = vadd.f32 %v1372, %v1549
        %v1595 = vadd.f32 %v1373, %v1552
        %v1596 = vadd.f32 %v1374, %v1554
        %v1597 = vadd.f32 %v1375, %v1557
        %v1598 = vadd.f32 %v1376, %v1559
        %v1599 = vadd.f32 %v1377, %v1562
        %v1600 = vadd.f32 %v1378, %v1564
        %v1601 = vadd.f32 %v1379, %v1567
        %v1602 = vadd.f32 %v1380, %v1569
        %v1603 = vld [vmem:[%s524 + $0x2] sm:$0xff]
        %v1604 = vld [vmem:[%s524 + $0xa] sm:$0xff]
        %v1605 = vld [vmem:[%s524 + $0x1a] sm:$0xff]
        %v1606 = vld [vmem:[%s524 + $0x22] sm:$0xff]
        %v1607 = vld [vmem:[%s524 + $0x32] sm:$0xff]
        %v1608 = vld [vmem:[%s524 + $0x3a] sm:$0xff]
        %v1609 = vld [vmem:[%s524 + $0x4a] sm:$0xff]
        %v1610 = vld [vmem:[%s524 + $0x52] sm:$0xff]
        %v1611 = vld [vmem:[%s524 + $0x62] sm:$0xff]
        %v1612 = vld [vmem:[%s524 + $0x6a] sm:$0xff]
        %v1613 = vld [vmem:[%s524 + $0x7a] sm:$0xff]
        %v1614 = vld [vmem:[%s524 + $0x82] sm:$0xff]
        %v1615 = vld [vmem:[%s524 + $0x92] sm:$0xff]
        %v1616 = vld [vmem:[%s524 + $0x9a] sm:$0xff]
        %v1617 = vld [vmem:[%s524 + $0xaa] sm:$0xff]
        %v1618 = vld [vmem:[%s524 + $0xb2] sm:$0xff]
        %v1619 = vld [vmem:[%s524 + $0xc2] sm:$0xff]
        %v1620 = vld [vmem:[%s524 + $0xca] sm:$0xff]
        %v1621 = vld [vmem:[%s524 + $0xda] sm:$0xff]
        %v1622 = vld [vmem:[%s524 + $0xe2] sm:$0xff]
        %v1623 = vld [vmem:[%s524 + $0xf2] sm:$0xff]
        %v1624 = vld [vmem:[%s524 + $0xfa] sm:$0xff]
        %v1625 = vld [vmem:[%s524 + $0x10a] sm:$0xff]
        %v1626 = vld [vmem:[%s524 + $0x112] sm:$0xff]
        %v1627 = vld [vmem:[%s524 + $0x122] sm:$0xff]
        %v1628 = vld [vmem:[%s524 + $0x12a] sm:$0xff]
        %v1629 = vld [vmem:[%s524 + $0x13a] sm:$0xff]
        %v1630 = vld [vmem:[%s524 + $0x142] sm:$0xff]
        %v1631 = vld [vmem:[%s524 + $0x152] sm:$0xff]
        %v1632 = vld [vmem:[%s524 + $0x15a] sm:$0xff]
        %v1633 = vld [vmem:[%s524 + $0x16a] sm:$0xff]
        %v1634 = vld [vmem:[%s524 + $0x172] sm:$0xff]
        %v1635 = vpack.c.bf16 %v1604, %v1603
        %v1636 = vpack.c.bf16 %v1606, %v1605
        %v1637 = vpack.c.bf16 %v1608, %v1607
        %v1638 = vpack.c.bf16 %v1610, %v1609
        %v1639 = vpack.c.bf16 %v1612, %v1611
        %v1640 = vpack.c.bf16 %v1614, %v1613
        %v1641 = vpack.c.bf16 %v1616, %v1615
        %v1642 = vpack.c.bf16 %v1618, %v1617
        %v1643 = vpack.c.bf16 %v1620, %v1619
        %v1644 = vpack.c.bf16 %v1622, %v1621
        %v1645 = vpack.c.bf16 %v1624, %v1623
        %v1646 = vpack.c.bf16 %v1626, %v1625
        %v1647 = vpack.c.bf16 %v1628, %v1627
        %v1648 = vpack.c.bf16 %v1630, %v1629
        %v1649 = vpack.c.bf16 %v1632, %v1631
        %v1650 = vpack.c.bf16 %v1634, %v1633
        %s1651 = scalar_lea.vmem [#allocation5], 20
        %v1652 = vld [vmem:[%s1651] sm:$0xf]
        %v1654 = vsel %vm436, %v1635, 0
        %v1657 = vsel %vm436, %v1636, 0
        %v1660 = vsel %vm436, %v1637, 0
        %v1663 = vsel %vm436, %v1638, 0
        %v1666 = vsel %vm436, %v1639, 0
        %v1669 = vsel %vm436, %v1640, 0
        %v1672 = vsel %vm436, %v1641, 0
        %v1675 = vsel %vm436, %v1642, 0
        %v1678 = vsel %vm436, %v1643, 0
        %v1681 = vsel %vm436, %v1644, 0
        %v1684 = vsel %vm436, %v1645, 0
        %v1687 = vsel %vm436, %v1646, 0
        %v1690 = vsel %vm436, %v1647, 0
        %v1693 = vsel %vm436, %v1648, 0
        %v1696 = vsel %vm436, %v1649, 0
        %v1699 = vsel %vm436, %v1650, 0
        %v1702 = vsel %vm704, %v1652, 0
        %1704 = vmatpush.bf16.msra.mxu0 0
        %1705 = vmatpush.bf16.msra.mxu0 0
        %1706 = vmatpush.bf16.msra.mxu0 0
        %1707 = vmatpush.bf16.msra.mxu0 0
        %1708 = vmatpush.bf16.msra.mxu0 0
        %1709 = vmatpush.bf16.msra.mxu0 0
        %1710 = vmatpush.bf16.msra.mxu0 0
        %1711 = vmatpush.bf16.msra.mxu0 %v1702
        %1712 = vmatmul.bf16.gmra.mxu0 %v1654
        %v1713 = vpop.f32.mrf.mxu0
        %v1714 = vadd.f32 0.0, %v1713
        %v1715 = vpop.f32.mrf.mxu0
        %v1716 = vadd.f32 0.0, %v1715
        %1717 = vmatmul.bf16.gmra.mxu0 %v1657
        %v1718 = vpop.f32.mrf.mxu0
        %v1719 = vadd.f32 0.0, %v1718
        %v1720 = vpop.f32.mrf.mxu0
        %v1721 = vadd.f32 0.0, %v1720
        %1722 = vmatmul.bf16.gmra.mxu0 %v1660
        %v1723 = vpop.f32.mrf.mxu0
        %v1724 = vadd.f32 0.0, %v1723
        %v1725 = vpop.f32.mrf.mxu0
        %v1726 = vadd.f32 0.0, %v1725
        %1727 = vmatmul.bf16.gmra.mxu0 %v1663
        %v1728 = vpop.f32.mrf.mxu0
        %v1729 = vadd.f32 0.0, %v1728
        %v1730 = vpop.f32.mrf.mxu0
        %v1731 = vadd.f32 0.0, %v1730
        %1732 = vmatmul.bf16.gmra.mxu0 %v1666
        %v1733 = vpop.f32.mrf.mxu0
        %v1734 = vadd.f32 0.0, %v1733
        %v1735 = vpop.f32.mrf.mxu0
        %v1736 = vadd.f32 0.0, %v1735
        %1737 = vmatmul.bf16.gmra.mxu0 %v1669
        %v1738 = vpop.f32.mrf.mxu0
        %v1739 = vadd.f32 0.0, %v1738
        %v1740 = vpop.f32.mrf.mxu0
        %v1741 = vadd.f32 0.0, %v1740
        %1742 = vmatmul.bf16.gmra.mxu0 %v1672
        %v1743 = vpop.f32.mrf.mxu0
        %v1744 = vadd.f32 0.0, %v1743
        %v1745 = vpop.f32.mrf.mxu0
        %v1746 = vadd.f32 0.0, %v1745
        %1747 = vmatmul.bf16.gmra.mxu0 %v1675
        %v1748 = vpop.f32.mrf.mxu0
        %v1749 = vadd.f32 0.0, %v1748
        %v1750 = vpop.f32.mrf.mxu0
        %v1751 = vadd.f32 0.0, %v1750
        %1752 = vmatmul.bf16.gmra.mxu0 %v1678
        %v1753 = vpop.f32.mrf.mxu0
        %v1754 = vadd.f32 0.0, %v1753
        %v1755 = vpop.f32.mrf.mxu0
        %v1756 = vadd.f32 0.0, %v1755
        %1757 = vmatmul.bf16.gmra.mxu0 %v1681
        %v1758 = vpop.f32.mrf.mxu0
        %v1759 = vadd.f32 0.0, %v1758
        %v1760 = vpop.f32.mrf.mxu0
        %v1761 = vadd.f32 0.0, %v1760
        %1762 = vmatmul.bf16.gmra.mxu0 %v1684
        %v1763 = vpop.f32.mrf.mxu0
        %v1764 = vadd.f32 0.0, %v1763
        %v1765 = vpop.f32.mrf.mxu0
        %v1766 = vadd.f32 0.0, %v1765
        %1767 = vmatmul.bf16.gmra.mxu0 %v1687
        %v1768 = vpop.f32.mrf.mxu0
        %v1769 = vadd.f32 0.0, %v1768
        %v1770 = vpop.f32.mrf.mxu0
        %v1771 = vadd.f32 0.0, %v1770
        %1772 = vmatmul.bf16.gmra.mxu0 %v1690
        %v1773 = vpop.f32.mrf.mxu0
        %v1774 = vadd.f32 0.0, %v1773
        %v1775 = vpop.f32.mrf.mxu0
        %v1776 = vadd.f32 0.0, %v1775
        %1777 = vmatmul.bf16.gmra.mxu0 %v1693
        %v1778 = vpop.f32.mrf.mxu0
        %v1779 = vadd.f32 0.0, %v1778
        %v1780 = vpop.f32.mrf.mxu0
        %v1781 = vadd.f32 0.0, %v1780
        %1782 = vmatmul.bf16.gmra.mxu0 %v1696
        %v1783 = vpop.f32.mrf.mxu0
        %v1784 = vadd.f32 0.0, %v1783
        %v1785 = vpop.f32.mrf.mxu0
        %v1786 = vadd.f32 0.0, %v1785
        %1787 = vmatmul.bf16.gmra.mxu0 %v1699
        %v1788 = vpop.f32.mrf.mxu0
        %v1789 = vadd.f32 0.0, %v1788
        %v1790 = vpop.f32.mrf.mxu0
        %v1791 = vadd.f32 0.0, %v1790
        %1792 = vdwg.mxu0
        %v1793 = vadd.f32 %v1571, %v1714
        %v1794 = vadd.f32 %v1572, %v1716
        %v1795 = vadd.f32 %v1573, %v1719
        %v1796 = vadd.f32 %v1574, %v1721
        %v1797 = vadd.f32 %v1575, %v1724
        %v1798 = vadd.f32 %v1576, %v1726
        %v1799 = vadd.f32 %v1577, %v1729
        %v1800 = vadd.f32 %v1578, %v1731
        %v1801 = vadd.f32 %v1579, %v1734
        %v1802 = vadd.f32 %v1580, %v1736
        %v1803 = vadd.f32 %v1581, %v1739
        %v1804 = vadd.f32 %v1582, %v1741
        %v1805 = vadd.f32 %v1583, %v1744
        %v1806 = vadd.f32 %v1584, %v1746
        %v1807 = vadd.f32 %v1585, %v1749
        %v1808 = vadd.f32 %v1586, %v1751
        %v1809 = vadd.f32 %v1587, %v1754
        %v1810 = vadd.f32 %v1588, %v1756
        %v1811 = vadd.f32 %v1589, %v1759
        %v1812 = vadd.f32 %v1590, %v1761
        %v1813 = vadd.f32 %v1591, %v1764
        %v1814 = vadd.f32 %v1592, %v1766
        %v1815 = vadd.f32 %v1593, %v1769
        %v1816 = vadd.f32 %v1594, %v1771
        %v1817 = vadd.f32 %v1595, %v1774
        %v1818 = vadd.f32 %v1596, %v1776
        %v1819 = vadd.f32 %v1597, %v1779
        %v1820 = vadd.f32 %v1598, %v1781
        %v1821 = vadd.f32 %v1599, %v1784
        %v1822 = vadd.f32 %v1600, %v1786
        %v1823 = vadd.f32 %v1601, %v1789
        %v1824 = vadd.f32 %v1602, %v1791
        %s1825 = scalar_lea.vmem [#allocation2], 48
        %v1826 = vld [vmem:[%s1825] sm:$0xff]
        %v1827 = vld [vmem:[%s1825 + $0x8] sm:$0xff]
        %v1828 = vld [vmem:[%s1825 + $0x18] sm:$0xff]
        %v1829 = vld [vmem:[%s1825 + $0x20] sm:$0xff]
        %v1830 = vld [vmem:[%s1825 + $0x30] sm:$0xff]
        %v1831 = vld [vmem:[%s1825 + $0x38] sm:$0xff]
        %v1832 = vld [vmem:[%s1825 + $0x48] sm:$0xff]
        %v1833 = vld [vmem:[%s1825 + $0x50] sm:$0xff]
        %v1834 = vld [vmem:[%s1825 + $0x60] sm:$0xff]
        %v1835 = vld [vmem:[%s1825 + $0x68] sm:$0xff]
        %v1836 = vld [vmem:[%s1825 + $0x78] sm:$0xff]
        %v1837 = vld [vmem:[%s1825 + $0x80] sm:$0xff]
        %v1838 = vld [vmem:[%s1825 + $0x90] sm:$0xff]
        %v1839 = vld [vmem:[%s1825 + $0x98] sm:$0xff]
        %v1840 = vld [vmem:[%s1825 + $0xa8] sm:$0xff]
        %v1841 = vld [vmem:[%s1825 + $0xb0] sm:$0xff]
        %v1842 = vld [vmem:[%s1825 + $0xc0] sm:$0xff]
        %v1843 = vld [vmem:[%s1825 + $0xc8] sm:$0xff]
        %v1844 = vld [vmem:[%s1825 + $0xd8] sm:$0xff]
        %v1845 = vld [vmem:[%s1825 + $0xe0] sm:$0xff]
        %v1846 = vld [vmem:[%s1825 + $0xf0] sm:$0xff]
        %v1847 = vld [vmem:[%s1825 + $0xf8] sm:$0xff]
        %v1848 = vld [vmem:[%s1825 + $0x108] sm:$0xff]
        %v1849 = vld [vmem:[%s1825 + $0x110] sm:$0xff]
        %v1850 = vld [vmem:[%s1825 + $0x120] sm:$0xff]
        %v1851 = vld [vmem:[%s1825 + $0x128] sm:$0xff]
        %v1852 = vld [vmem:[%s1825 + $0x138] sm:$0xff]
        %v1853 = vld [vmem:[%s1825 + $0x140] sm:$0xff]
        %v1854 = vld [vmem:[%s1825 + $0x150] sm:$0xff]
        %v1855 = vld [vmem:[%s1825 + $0x158] sm:$0xff]
        %v1856 = vld [vmem:[%s1825 + $0x168] sm:$0xff]
        %v1857 = vld [vmem:[%s1825 + $0x170] sm:$0xff]
        %v1858 = vpack.c.bf16 %v1827, %v1826
        %v1859 = vpack.c.bf16 %v1829, %v1828
        %v1860 = vpack.c.bf16 %v1831, %v1830
        %v1861 = vpack.c.bf16 %v1833, %v1832
        %v1862 = vpack.c.bf16 %v1835, %v1834
        %v1863 = vpack.c.bf16 %v1837, %v1836
        %v1864 = vpack.c.bf16 %v1839, %v1838
        %v1865 = vpack.c.bf16 %v1841, %v1840
        %v1866 = vpack.c.bf16 %v1843, %v1842
        %v1867 = vpack.c.bf16 %v1845, %v1844
        %v1868 = vpack.c.bf16 %v1847, %v1846
        %v1869 = vpack.c.bf16 %v1849, %v1848
        %v1870 = vpack.c.bf16 %v1851, %v1850
        %v1871 = vpack.c.bf16 %v1853, %v1852
        %v1872 = vpack.c.bf16 %v1855, %v1854
        %v1873 = vpack.c.bf16 %v1857, %v1856
        %s1874 = scalar_lea.vmem [#allocation5], 24
        %v1875 = vld [vmem:[%s1874] sm:$0xf]
        %v1877 = vsel %vm436, %v1858, 0
        %v1880 = vsel %vm436, %v1859, 0
        %v1883 = vsel %vm436, %v1860, 0
        %v1886 = vsel %vm436, %v1861, 0
        %v1889 = vsel %vm436, %v1862, 0
        %v1892 = vsel %vm436, %v1863, 0
        %v1895 = vsel %vm436, %v1864, 0
        %v1898 = vsel %vm436, %v1865, 0
        %v1901 = vsel %vm436, %v1866, 0
        %v1904 = vsel %vm436, %v1867, 0
        %v1907 = vsel %vm436, %v1868, 0
        %v1910 = vsel %vm436, %v1869, 0
        %v1913 = vsel %vm436, %v1870, 0
        %v1916 = vsel %vm436, %v1871, 0
        %v1919 = vsel %vm436, %v1872, 0
        %v1922 = vsel %vm436, %v1873, 0
        %v1925 = vsel %vm704, %v1875, 0
        %1927 = vmatpush.bf16.msra.mxu0 0
        %1928 = vmatpush.bf16.msra.mxu0 0
        %1929 = vmatpush.bf16.msra.mxu0 0
        %1930 = vmatpush.bf16.msra.mxu0 0
        %1931 = vmatpush.bf16.msra.mxu0 0
        %1932 = vmatpush.bf16.msra.mxu0 0
        %1933 = vmatpush.bf16.msra.mxu0 0
        %1934 = vmatpush.bf16.msra.mxu0 %v1925
        %1935 = vmatmul.bf16.gmra.mxu0 %v1877
        %v1936 = vpop.f32.mrf.mxu0
        %v1937 = vadd.f32 0.0, %v1936
        %v1938 = vpop.f32.mrf.mxu0
        %v1939 = vadd.f32 0.0, %v1938
        %1940 = vmatmul.bf16.gmra.mxu0 %v1880
        %v1941 = vpop.f32.mrf.mxu0
        %v1942 = vadd.f32 0.0, %v1941
        %v1943 = vpop.f32.mrf.mxu0
        %v1944 = vadd.f32 0.0, %v1943
        %1945 = vmatmul.bf16.gmra.mxu0 %v1883
        %v1946 = vpop.f32.mrf.mxu0
        %v1947 = vadd.f32 0.0, %v1946
        %v1948 = vpop.f32.mrf.mxu0
        %v1949 = vadd.f32 0.0, %v1948
        %1950 = vmatmul.bf16.gmra.mxu0 %v1886
        %v1951 = vpop.f32.mrf.mxu0
        %v1952 = vadd.f32 0.0, %v1951
        %v1953 = vpop.f32.mrf.mxu0
        %v1954 = vadd.f32 0.0, %v1953
        %1955 = vmatmul.bf16.gmra.mxu0 %v1889
        %v1956 = vpop.f32.mrf.mxu0
        %v1957 = vadd.f32 0.0, %v1956
        %v1958 = vpop.f32.mrf.mxu0
        %v1959 = vadd.f32 0.0, %v1958
        %1960 = vmatmul.bf16.gmra.mxu0 %v1892
        %v1961 = vpop.f32.mrf.mxu0
        %v1962 = vadd.f32 0.0, %v1961
        %v1963 = vpop.f32.mrf.mxu0
        %v1964 = vadd.f32 0.0, %v1963
        %1965 = vmatmul.bf16.gmra.mxu0 %v1895
        %v1966 = vpop.f32.mrf.mxu0
        %v1967 = vadd.f32 0.0, %v1966
        %v1968 = vpop.f32.mrf.mxu0
        %v1969 = vadd.f32 0.0, %v1968
        %1970 = vmatmul.bf16.gmra.mxu0 %v1898
        %v1971 = vpop.f32.mrf.mxu0
        %v1972 = vadd.f32 0.0, %v1971
        %v1973 = vpop.f32.mrf.mxu0
        %v1974 = vadd.f32 0.0, %v1973
        %1975 = vmatmul.bf16.gmra.mxu0 %v1901
        %v1976 = vpop.f32.mrf.mxu0
        %v1977 = vadd.f32 0.0, %v1976
        %v1978 = vpop.f32.mrf.mxu0
        %v1979 = vadd.f32 0.0, %v1978
        %1980 = vmatmul.bf16.gmra.mxu0 %v1904
        %v1981 = vpop.f32.mrf.mxu0
        %v1982 = vadd.f32 0.0, %v1981
        %v1983 = vpop.f32.mrf.mxu0
        %v1984 = vadd.f32 0.0, %v1983
        %1985 = vmatmul.bf16.gmra.mxu0 %v1907
        %v1986 = vpop.f32.mrf.mxu0
        %v1987 = vadd.f32 0.0, %v1986
        %v1988 = vpop.f32.mrf.mxu0
        %v1989 = vadd.f32 0.0, %v1988
        %1990 = vmatmul.bf16.gmra.mxu0 %v1910
        %v1991 = vpop.f32.mrf.mxu0
        %v1992 = vadd.f32 0.0, %v1991
        %v1993 = vpop.f32.mrf.mxu0
        %v1994 = vadd.f32 0.0, %v1993
        %1995 = vmatmul.bf16.gmra.mxu0 %v1913
        %v1996 = vpop.f32.mrf.mxu0
        %v1997 = vadd.f32 0.0, %v1996
        %v1998 = vpop.f32.mrf.mxu0
        %v1999 = vadd.f32 0.0, %v1998
        %2000 = vmatmul.bf16.gmra.mxu0 %v1916
        %v2001 = vpop.f32.mrf.mxu0
        %v2002 = vadd.f32 0.0, %v2001
        %v2003 = vpop.f32.mrf.mxu0
        %v2004 = vadd.f32 0.0, %v2003
        %2005 = vmatmul.bf16.gmra.mxu0 %v1919
        %v2006 = vpop.f32.mrf.mxu0
        %v2007 = vadd.f32 0.0, %v2006
        %v2008 = vpop.f32.mrf.mxu0
        %v2009 = vadd.f32 0.0, %v2008
        %2010 = vmatmul.bf16.gmra.mxu0 %v1922
        %v2011 = vpop.f32.mrf.mxu0
        %v2012 = vadd.f32 0.0, %v2011
        %v2013 = vpop.f32.mrf.mxu0
        %v2014 = vadd.f32 0.0, %v2013
        %2015 = vdwg.mxu0
        %v2016 = vadd.f32 %v1793, %v1937
        %v2017 = vadd.f32 %v1794, %v1939
        %v2018 = vadd.f32 %v1795, %v1942
        %v2019 = vadd.f32 %v1796, %v1944
        %v2020 = vadd.f32 %v1797, %v1947
        %v2021 = vadd.f32 %v1798, %v1949
        %v2022 = vadd.f32 %v1799, %v1952
        %v2023 = vadd.f32 %v1800, %v1954
        %v2024 = vadd.f32 %v1801, %v1957
        %v2025 = vadd.f32 %v1802, %v1959
        %v2026 = vadd.f32 %v1803, %v1962
        %v2027 = vadd.f32 %v1804, %v1964
        %v2028 = vadd.f32 %v1805, %v1967
        %v2029 = vadd.f32 %v1806, %v1969
        %v2030 = vadd.f32 %v1807, %v1972
        %v2031 = vadd.f32 %v1808, %v1974
        %v2032 = vadd.f32 %v1809, %v1977
        %v2033 = vadd.f32 %v1810, %v1979
        %v2034 = vadd.f32 %v1811, %v1982
        %v2035 = vadd.f32 %v1812, %v1984
        %v2036 = vadd.f32 %v1813, %v1987
        %v2037 = vadd.f32 %v1814, %v1989
        %v2038 = vadd.f32 %v1815, %v1992
        %v2039 = vadd.f32 %v1816, %v1994
        %v2040 = vadd.f32 %v1817, %v1997
        %v2041 = vadd.f32 %v1818, %v1999
        %v2042 = vadd.f32 %v1819, %v2002
        %v2043 = vadd.f32 %v1820, %v2004
        %v2044 = vadd.f32 %v1821, %v2007
        %v2045 = vadd.f32 %v1822, %v2009
        %v2046 = vadd.f32 %v1823, %v2012
        %v2047 = vadd.f32 %v1824, %v2014
        %v2048 = vld [vmem:[%s1825 + $0x1] sm:$0xff]
        %v2049 = vld [vmem:[%s1825 + $0x9] sm:$0xff]
        %v2050 = vld [vmem:[%s1825 + $0x19] sm:$0xff]
        %v2051 = vld [vmem:[%s1825 + $0x21] sm:$0xff]
        %v2052 = vld [vmem:[%s1825 + $0x31] sm:$0xff]
        %v2053 = vld [vmem:[%s1825 + $0x39] sm:$0xff]
        %v2054 = vld [vmem:[%s1825 + $0x49] sm:$0xff]
        %v2055 = vld [vmem:[%s1825 + $0x51] sm:$0xff]
        %v2056 = vld [vmem:[%s1825 + $0x61] sm:$0xff]
        %v2057 = vld [vmem:[%s1825 + $0x69] sm:$0xff]
        %v2058 = vld [vmem:[%s1825 + $0x79] sm:$0xff]
        %v2059 = vld [vmem:[%s1825 + $0x81] sm:$0xff]
        %v2060 = vld [vmem:[%s1825 + $0x91] sm:$0xff]
        %v2061 = vld [vmem:[%s1825 + $0x99] sm:$0xff]
        %v2062 = vld [vmem:[%s1825 + $0xa9] sm:$0xff]
        %v2063 = vld [vmem:[%s1825 + $0xb1] sm:$0xff]
        %v2064 = vld [vmem:[%s1825 + $0xc1] sm:$0xff]
        %v2065 = vld [vmem:[%s1825 + $0xc9] sm:$0xff]
        %v2066 = vld [vmem:[%s1825 + $0xd9] sm:$0xff]
        %v2067 = vld [vmem:[%s1825 + $0xe1] sm:$0xff]
        %v2068 = vld [vmem:[%s1825 + $0xf1] sm:$0xff]
        %v2069 = vld [vmem:[%s1825 + $0xf9] sm:$0xff]
        %v2070 = vld [vmem:[%s1825 + $0x109] sm:$0xff]
        %v2071 = vld [vmem:[%s1825 + $0x111] sm:$0xff]
        %v2072 = vld [vmem:[%s1825 + $0x121] sm:$0xff]
        %v2073 = vld [vmem:[%s1825 + $0x129] sm:$0xff]
        %v2074 = vld [vmem:[%s1825 + $0x139] sm:$0xff]
        %v2075 = vld [vmem:[%s1825 + $0x141] sm:$0xff]
        %v2076 = vld [vmem:[%s1825 + $0x151] sm:$0xff]
        %v2077 = vld [vmem:[%s1825 + $0x159] sm:$0xff]
        %v2078 = vld [vmem:[%s1825 + $0x169] sm:$0xff]
        %v2079 = vld [vmem:[%s1825 + $0x171] sm:$0xff]
        %v2080 = vpack.c.bf16 %v2049, %v2048
        %v2081 = vpack.c.bf16 %v2051, %v2050
        %v2082 = vpack.c.bf16 %v2053, %v2052
        %v2083 = vpack.c.bf16 %v2055, %v2054
        %v2084 = vpack.c.bf16 %v2057, %v2056
        %v2085 = vpack.c.bf16 %v2059, %v2058
        %v2086 = vpack.c.bf16 %v2061, %v2060
        %v2087 = vpack.c.bf16 %v2063, %v2062
        %v2088 = vpack.c.bf16 %v2065, %v2064
        %v2089 = vpack.c.bf16 %v2067, %v2066
        %v2090 = vpack.c.bf16 %v2069, %v2068
        %v2091 = vpack.c.bf16 %v2071, %v2070
        %v2092 = vpack.c.bf16 %v2073, %v2072
        %v2093 = vpack.c.bf16 %v2075, %v2074
        %v2094 = vpack.c.bf16 %v2077, %v2076
        %v2095 = vpack.c.bf16 %v2079, %v2078
        %s2096 = scalar_lea.vmem [#allocation5], 28
        %v2097 = vld [vmem:[%s2096] sm:$0xf]
        %v2099 = vsel %vm436, %v2080, 0
        %v2102 = vsel %vm436, %v2081, 0
        %v2105 = vsel %vm436, %v2082, 0
        %v2108 = vsel %vm436, %v2083, 0
        %v2111 = vsel %vm436, %v2084, 0
        %v2114 = vsel %vm436, %v2085, 0
        %v2117 = vsel %vm436, %v2086, 0
        %v2120 = vsel %vm436, %v2087, 0
        %v2123 = vsel %vm436, %v2088, 0
        %v2126 = vsel %vm436, %v2089, 0
        %v2129 = vsel %vm436, %v2090, 0
        %v2132 = vsel %vm436, %v2091, 0
        %v2135 = vsel %vm436, %v2092, 0
        %v2138 = vsel %vm436, %v2093, 0
        %v2141 = vsel %vm436, %v2094, 0
        %v2144 = vsel %vm436, %v2095, 0
        %v2147 = vsel %vm704, %v2097, 0
        %2149 = vmatpush.bf16.msra.mxu0 0
        %2150 = vmatpush.bf16.msra.mxu0 0
        %2151 = vmatpush.bf16.msra.mxu0 0
        %2152 = vmatpush.bf16.msra.mxu0 0
        %2153 = vmatpush.bf16.msra.mxu0 0
        %2154 = vmatpush.bf16.msra.mxu0 0
        %2155 = vmatpush.bf16.msra.mxu0 0
        %2156 = vmatpush.bf16.msra.mxu0 %v2147
        %2157 = vmatmul.bf16.gmra.mxu0 %v2099
        %v2158 = vpop.f32.mrf.mxu0
        %v2159 = vadd.f32 0.0, %v2158
        %v2160 = vpop.f32.mrf.mxu0
        %v2161 = vadd.f32 0.0, %v2160
        %2162 = vmatmul.bf16.gmra.mxu0 %v2102
        %v2163 = vpop.f32.mrf.mxu0
        %v2164 = vadd.f32 0.0, %v2163
        %v2165 = vpop.f32.mrf.mxu0
        %v2166 = vadd.f32 0.0, %v2165
        %2167 = vmatmul.bf16.gmra.mxu0 %v2105
        %v2168 = vpop.f32.mrf.mxu0
        %v2169 = vadd.f32 0.0, %v2168
        %v2170 = vpop.f32.mrf.mxu0
        %v2171 = vadd.f32 0.0, %v2170
        %2172 = vmatmul.bf16.gmra.mxu0 %v2108
        %v2173 = vpop.f32.mrf.mxu0
        %v2174 = vadd.f32 0.0, %v2173
        %v2175 = vpop.f32.mrf.mxu0
        %v2176 = vadd.f32 0.0, %v2175
        %2177 = vmatmul.bf16.gmra.mxu0 %v2111
        %v2178 = vpop.f32.mrf.mxu0
        %v2179 = vadd.f32 0.0, %v2178
        %v2180 = vpop.f32.mrf.mxu0
        %v2181 = vadd.f32 0.0, %v2180
        %2182 = vmatmul.bf16.gmra.mxu0 %v2114
        %v2183 = vpop.f32.mrf.mxu0
        %v2184 = vadd.f32 0.0, %v2183
        %v2185 = vpop.f32.mrf.mxu0
        %v2186 = vadd.f32 0.0, %v2185
        %2187 = vmatmul.bf16.gmra.mxu0 %v2117
        %v2188 = vpop.f32.mrf.mxu0
        %v2189 = vadd.f32 0.0, %v2188
        %v2190 = vpop.f32.mrf.mxu0
        %v2191 = vadd.f32 0.0, %v2190
        %2192 = vmatmul.bf16.gmra.mxu0 %v2120
        %v2193 = vpop.f32.mrf.mxu0
        %v2194 = vadd.f32 0.0, %v2193
        %v2195 = vpop.f32.mrf.mxu0
        %v2196 = vadd.f32 0.0, %v2195
        %2197 = vmatmul.bf16.gmra.mxu0 %v2123
        %v2198 = vpop.f32.mrf.mxu0
        %v2199 = vadd.f32 0.0, %v2198
        %v2200 = vpop.f32.mrf.mxu0
        %v2201 = vadd.f32 0.0, %v2200
        %2202 = vmatmul.bf16.gmra.mxu0 %v2126
        %v2203 = vpop.f32.mrf.mxu0
        %v2204 = vadd.f32 0.0, %v2203
        %v2205 = vpop.f32.mrf.mxu0
        %v2206 = vadd.f32 0.0, %v2205
        %2207 = vmatmul.bf16.gmra.mxu0 %v2129
        %v2208 = vpop.f32.mrf.mxu0
        %v2209 = vadd.f32 0.0, %v2208
        %v2210 = vpop.f32.mrf.mxu0
        %v2211 = vadd.f32 0.0, %v2210
        %2212 = vmatmul.bf16.gmra.mxu0 %v2132
        %v2213 = vpop.f32.mrf.mxu0
        %v2214 = vadd.f32 0.0, %v2213
        %v2215 = vpop.f32.mrf.mxu0
        %v2216 = vadd.f32 0.0, %v2215
        %2217 = vmatmul.bf16.gmra.mxu0 %v2135
        %v2218 = vpop.f32.mrf.mxu0
        %v2219 = vadd.f32 0.0, %v2218
        %v2220 = vpop.f32.mrf.mxu0
        %v2221 = vadd.f32 0.0, %v2220
        %2222 = vmatmul.bf16.gmra.mxu0 %v2138
        %v2223 = vpop.f32.mrf.mxu0
        %v2224 = vadd.f32 0.0, %v2223
        %v2225 = vpop.f32.mrf.mxu0
        %v2226 = vadd.f32 0.0, %v2225
        %2227 = vmatmul.bf16.gmra.mxu0 %v2141
        %v2228 = vpop.f32.mrf.mxu0
        %v2229 = vadd.f32 0.0, %v2228
        %v2230 = vpop.f32.mrf.mxu0
        %v2231 = vadd.f32 0.0, %v2230
        %2232 = vmatmul.bf16.gmra.mxu0 %v2144
        %v2233 = vpop.f32.mrf.mxu0
        %v2234 = vadd.f32 0.0, %v2233
        %v2235 = vpop.f32.mrf.mxu0
        %v2236 = vadd.f32 0.0, %v2235
        %2237 = vdwg.mxu0
        %v2238 = vadd.f32 %v2016, %v2159
        %v2239 = vadd.f32 %v2017, %v2161
        %v2240 = vadd.f32 %v2018, %v2164
        %v2241 = vadd.f32 %v2019, %v2166
        %v2242 = vadd.f32 %v2020, %v2169
        %v2243 = vadd.f32 %v2021, %v2171
        %v2244 = vadd.f32 %v2022, %v2174
        %v2245 = vadd.f32 %v2023, %v2176
        %v2246 = vadd.f32 %v2024, %v2179
        %v2247 = vadd.f32 %v2025, %v2181
        %v2248 = vadd.f32 %v2026, %v2184
        %v2249 = vadd.f32 %v2027, %v2186
        %v2250 = vadd.f32 %v2028, %v2189
        %v2251 = vadd.f32 %v2029, %v2191
        %v2252 = vadd.f32 %v2030, %v2194
        %v2253 = vadd.f32 %v2031, %v2196
        %v2254 = vadd.f32 %v2032, %v2199
        %v2255 = vadd.f32 %v2033, %v2201
        %v2256 = vadd.f32 %v2034, %v2204
        %v2257 = vadd.f32 %v2035, %v2206
        %v2258 = vadd.f32 %v2036, %v2209
        %v2259 = vadd.f32 %v2037, %v2211
        %v2260 = vadd.f32 %v2038, %v2214
        %v2261 = vadd.f32 %v2039, %v2216
        %v2262 = vadd.f32 %v2040, %v2219
        %v2263 = vadd.f32 %v2041, %v2221
        %v2264 = vadd.f32 %v2042, %v2224
        %v2265 = vadd.f32 %v2043, %v2226
        %v2266 = vadd.f32 %v2044, %v2229
        %v2267 = vadd.f32 %v2045, %v2231
        %v2268 = vadd.f32 %v2046, %v2234
        %v2269 = vadd.f32 %v2047, %v2236
        %v2270 = vld [vmem:[%s1825 + $0x2] sm:$0xff]
        %v2271 = vld [vmem:[%s1825 + $0xa] sm:$0xff]
        %v2272 = vld [vmem:[%s1825 + $0x1a] sm:$0xff]
        %v2273 = vld [vmem:[%s1825 + $0x22] sm:$0xff]
        %v2274 = vld [vmem:[%s1825 + $0x32] sm:$0xff]
        %v2275 = vld [vmem:[%s1825 + $0x3a] sm:$0xff]
        %v2276 = vld [vmem:[%s1825 + $0x4a] sm:$0xff]
        %v2277 = vld [vmem:[%s1825 + $0x52] sm:$0xff]
        %v2278 = vld [vmem:[%s1825 + $0x62] sm:$0xff]
        %v2279 = vld [vmem:[%s1825 + $0x6a] sm:$0xff]
        %v2280 = vld [vmem:[%s1825 + $0x7a] sm:$0xff]
        %v2281 = vld [vmem:[%s1825 + $0x82] sm:$0xff]
        %v2282 = vld [vmem:[%s1825 + $0x92] sm:$0xff]
        %v2283 = vld [vmem:[%s1825 + $0x9a] sm:$0xff]
        %v2284 = vld [vmem:[%s1825 + $0xaa] sm:$0xff]
        %v2285 = vld [vmem:[%s1825 + $0xb2] sm:$0xff]
        %v2286 = vld [vmem:[%s1825 + $0xc2] sm:$0xff]
        %v2287 = vld [vmem:[%s1825 + $0xca] sm:$0xff]
        %v2288 = vld [vmem:[%s1825 + $0xda] sm:$0xff]
        %v2289 = vld [vmem:[%s1825 + $0xe2] sm:$0xff]
        %v2290 = vld [vmem:[%s1825 + $0xf2] sm:$0xff]
        %v2291 = vld [vmem:[%s1825 + $0xfa] sm:$0xff]
        %v2292 = vld [vmem:[%s1825 + $0x10a] sm:$0xff]
        %v2293 = vld [vmem:[%s1825 + $0x112] sm:$0xff]
        %v2294 = vld [vmem:[%s1825 + $0x122] sm:$0xff]
        %v2295 = vld [vmem:[%s1825 + $0x12a] sm:$0xff]
        %v2296 = vld [vmem:[%s1825 + $0x13a] sm:$0xff]
        %v2297 = vld [vmem:[%s1825 + $0x142] sm:$0xff]
        %v2298 = vld [vmem:[%s1825 + $0x152] sm:$0xff]
        %v2299 = vld [vmem:[%s1825 + $0x15a] sm:$0xff]
        %v2300 = vld [vmem:[%s1825 + $0x16a] sm:$0xff]
        %v2301 = vld [vmem:[%s1825 + $0x172] sm:$0xff]
        %v2302 = vpack.c.bf16 %v2271, %v2270
        %v2303 = vpack.c.bf16 %v2273, %v2272
        %v2304 = vpack.c.bf16 %v2275, %v2274
        %v2305 = vpack.c.bf16 %v2277, %v2276
        %v2306 = vpack.c.bf16 %v2279, %v2278
        %v2307 = vpack.c.bf16 %v2281, %v2280
        %v2308 = vpack.c.bf16 %v2283, %v2282
        %v2309 = vpack.c.bf16 %v2285, %v2284
        %v2310 = vpack.c.bf16 %v2287, %v2286
        %v2311 = vpack.c.bf16 %v2289, %v2288
        %v2312 = vpack.c.bf16 %v2291, %v2290
        %v2313 = vpack.c.bf16 %v2293, %v2292
        %v2314 = vpack.c.bf16 %v2295, %v2294
        %v2315 = vpack.c.bf16 %v2297, %v2296
        %v2316 = vpack.c.bf16 %v2299, %v2298
        %v2317 = vpack.c.bf16 %v2301, %v2300
        %s2318 = scalar_lea.vmem [#allocation5], 32
        %v2319 = vld [vmem:[%s2318] sm:$0xf]
        %v2321 = vsel %vm436, %v2302, 0
        %v2324 = vsel %vm436, %v2303, 0
        %v2327 = vsel %vm436, %v2304, 0
        %v2330 = vsel %vm436, %v2305, 0
        %v2333 = vsel %vm436, %v2306, 0
        %v2336 = vsel %vm436, %v2307, 0
        %v2339 = vsel %vm436, %v2308, 0
        %v2342 = vsel %vm436, %v2309, 0
        %v2345 = vsel %vm436, %v2310, 0
        %v2348 = vsel %vm436, %v2311, 0
        %v2351 = vsel %vm436, %v2312, 0
        %v2354 = vsel %vm436, %v2313, 0
        %v2357 = vsel %vm436, %v2314, 0
        %v2360 = vsel %vm436, %v2315, 0
        %v2363 = vsel %vm436, %v2316, 0
        %v2366 = vsel %vm436, %v2317, 0
        %v2369 = vsel %vm704, %v2319, 0
        %2371 = vmatpush.bf16.msra.mxu0 0
        %2372 = vmatpush.bf16.msra.mxu0 0
        %2373 = vmatpush.bf16.msra.mxu0 0
        %2374 = vmatpush.bf16.msra.mxu0 0
        %2375 = vmatpush.bf16.msra.mxu0 0
        %2376 = vmatpush.bf16.msra.mxu0 0
        %2377 = vmatpush.bf16.msra.mxu0 0
        %2378 = vmatpush.bf16.msra.mxu0 %v2369
        %2379 = vmatmul.bf16.gmra.mxu0 %v2321
        %v2380 = vpop.f32.mrf.mxu0
        %v2381 = vadd.f32 0.0, %v2380
        %v2382 = vpop.f32.mrf.mxu0
        %v2383 = vadd.f32 0.0, %v2382
        %2384 = vmatmul.bf16.gmra.mxu0 %v2324
        %v2385 = vpop.f32.mrf.mxu0
        %v2386 = vadd.f32 0.0, %v2385
        %v2387 = vpop.f32.mrf.mxu0
        %v2388 = vadd.f32 0.0, %v2387
        %2389 = vmatmul.bf16.gmra.mxu0 %v2327
        %v2390 = vpop.f32.mrf.mxu0
        %v2391 = vadd.f32 0.0, %v2390
        %v2392 = vpop.f32.mrf.mxu0
        %v2393 = vadd.f32 0.0, %v2392
        %2394 = vmatmul.bf16.gmra.mxu0 %v2330
        %v2395 = vpop.f32.mrf.mxu0
        %v2396 = vadd.f32 0.0, %v2395
        %v2397 = vpop.f32.mrf.mxu0
        %v2398 = vadd.f32 0.0, %v2397
        %2399 = vmatmul.bf16.gmra.mxu0 %v2333
        %v2400 = vpop.f32.mrf.mxu0
        %v2401 = vadd.f32 0.0, %v2400
        %v2402 = vpop.f32.mrf.mxu0
        %v2403 = vadd.f32 0.0, %v2402
        %2404 = vmatmul.bf16.gmra.mxu0 %v2336
        %v2405 = vpop.f32.mrf.mxu0
        %v2406 = vadd.f32 0.0, %v2405
        %v2407 = vpop.f32.mrf.mxu0
        %v2408 = vadd.f32 0.0, %v2407
        %2409 = vmatmul.bf16.gmra.mxu0 %v2339
        %v2410 = vpop.f32.mrf.mxu0
        %v2411 = vadd.f32 0.0, %v2410
        %v2412 = vpop.f32.mrf.mxu0
        %v2413 = vadd.f32 0.0, %v2412
        %2414 = vmatmul.bf16.gmra.mxu0 %v2342
        %v2415 = vpop.f32.mrf.mxu0
        %v2416 = vadd.f32 0.0, %v2415
        %v2417 = vpop.f32.mrf.mxu0
        %v2418 = vadd.f32 0.0, %v2417
        %2419 = vmatmul.bf16.gmra.mxu0 %v2345
        %v2420 = vpop.f32.mrf.mxu0
        %v2421 = vadd.f32 0.0, %v2420
        %v2422 = vpop.f32.mrf.mxu0
        %v2423 = vadd.f32 0.0, %v2422
        %2424 = vmatmul.bf16.gmra.mxu0 %v2348
        %v2425 = vpop.f32.mrf.mxu0
        %v2426 = vadd.f32 0.0, %v2425
        %v2427 = vpop.f32.mrf.mxu0
        %v2428 = vadd.f32 0.0, %v2427
        %2429 = vmatmul.bf16.gmra.mxu0 %v2351
        %v2430 = vpop.f32.mrf.mxu0
        %v2431 = vadd.f32 0.0, %v2430
        %v2432 = vpop.f32.mrf.mxu0
        %v2433 = vadd.f32 0.0, %v2432
        %2434 = vmatmul.bf16.gmra.mxu0 %v2354
        %v2435 = vpop.f32.mrf.mxu0
        %v2436 = vadd.f32 0.0, %v2435
        %v2437 = vpop.f32.mrf.mxu0
        %v2438 = vadd.f32 0.0, %v2437
        %2439 = vmatmul.bf16.gmra.mxu0 %v2357
        %v2440 = vpop.f32.mrf.mxu0
        %v2441 = vadd.f32 0.0, %v2440
        %v2442 = vpop.f32.mrf.mxu0
        %v2443 = vadd.f32 0.0, %v2442
        %2444 = vmatmul.bf16.gmra.mxu0 %v2360
        %v2445 = vpop.f32.mrf.mxu0
        %v2446 = vadd.f32 0.0, %v2445
        %v2447 = vpop.f32.mrf.mxu0
        %v2448 = vadd.f32 0.0, %v2447
        %2449 = vmatmul.bf16.gmra.mxu0 %v2363
        %v2450 = vpop.f32.mrf.mxu0
        %v2451 = vadd.f32 0.0, %v2450
        %v2452 = vpop.f32.mrf.mxu0
        %v2453 = vadd.f32 0.0, %v2452
        %2454 = vmatmul.bf16.gmra.mxu0 %v2366
        %v2455 = vpop.f32.mrf.mxu0
        %v2456 = vadd.f32 0.0, %v2455
        %v2457 = vpop.f32.mrf.mxu0
        %v2458 = vadd.f32 0.0, %v2457
        %2459 = vdwg.mxu0
        %v2460 = vadd.f32 %v2238, %v2381
        %v2461 = vadd.f32 %v2239, %v2383
        %v2462 = vadd.f32 %v2240, %v2386
        %v2463 = vadd.f32 %v2241, %v2388
        %v2464 = vadd.f32 %v2242, %v2391
        %v2465 = vadd.f32 %v2243, %v2393
        %v2466 = vadd.f32 %v2244, %v2396
        %v2467 = vadd.f32 %v2245, %v2398
        %v2468 = vadd.f32 %v2246, %v2401
        %v2469 = vadd.f32 %v2247, %v2403
        %v2470 = vadd.f32 %v2248, %v2406
        %v2471 = vadd.f32 %v2249, %v2408
        %v2472 = vadd.f32 %v2250, %v2411
        %v2473 = vadd.f32 %v2251, %v2413
        %v2474 = vadd.f32 %v2252, %v2416
        %v2475 = vadd.f32 %v2253, %v2418
        %v2476 = vadd.f32 %v2254, %v2421
        %v2477 = vadd.f32 %v2255, %v2423
        %v2478 = vadd.f32 %v2256, %v2426
        %v2479 = vadd.f32 %v2257, %v2428
        %v2480 = vadd.f32 %v2258, %v2431
        %v2481 = vadd.f32 %v2259, %v2433
        %v2482 = vadd.f32 %v2260, %v2436
        %v2483 = vadd.f32 %v2261, %v2438
        %v2484 = vadd.f32 %v2262, %v2441
        %v2485 = vadd.f32 %v2263, %v2443
        %v2486 = vadd.f32 %v2264, %v2446
        %v2487 = vadd.f32 %v2265, %v2448
        %v2488 = vadd.f32 %v2266, %v2451
        %v2489 = vadd.f32 %v2267, %v2453
        %v2490 = vadd.f32 %v2268, %v2456
        %v2491 = vadd.f32 %v2269, %v2458
        %v2492 = vld [vmem:[%s2] sm:$0x1]
        %v2494 = vperm.slane %v2492, 0
        %v2496 = vadd.f32 %v2460, %v2494
        %v2497 = vadd.f32 %v2461, %v2494
        %v2498 = vadd.f32 %v2462, %v2494
        %v2499 = vadd.f32 %v2463, %v2494
        %v2500 = vadd.f32 %v2464, %v2494
        %v2501 = vadd.f32 %v2465, %v2494
        %v2502 = vadd.f32 %v2466, %v2494
        %v2503 = vadd.f32 %v2467, %v2494
        %v2504 = vadd.f32 %v2468, %v2494
        %v2505 = vadd.f32 %v2469, %v2494
        %v2506 = vadd.f32 %v2470, %v2494
        %v2507 = vadd.f32 %v2471, %v2494
        %v2508 = vadd.f32 %v2472, %v2494
        %v2509 = vadd.f32 %v2473, %v2494
        %v2510 = vadd.f32 %v2474, %v2494
        %v2511 = vadd.f32 %v2475, %v2494
        %v2512 = vadd.f32 %v2476, %v2494
        %v2513 = vadd.f32 %v2477, %v2494
        %v2514 = vadd.f32 %v2478, %v2494
        %v2515 = vadd.f32 %v2479, %v2494
        %v2516 = vadd.f32 %v2480, %v2494
        %v2517 = vadd.f32 %v2481, %v2494
        %v2518 = vadd.f32 %v2482, %v2494
        %v2519 = vadd.f32 %v2483, %v2494
        %v2520 = vadd.f32 %v2484, %v2494
        %v2521 = vadd.f32 %v2485, %v2494
        %v2522 = vadd.f32 %v2486, %v2494
        %v2523 = vadd.f32 %v2487, %v2494
        %v2524 = vadd.f32 %v2488, %v2494
        %v2525 = vadd.f32 %v2489, %v2494
        %v2526 = vadd.f32 %v2490, %v2494
        %v2527 = vadd.f32 %v2491, %v2494
        %v2528 = vmax.f32 %v2496, 0.0
        %v2529 = vmax.f32 %v2497, 0.0
        %v2530 = vmax.f32 %v2498, 0.0
        %v2531 = vmax.f32 %v2499, 0.0
        %v2532 = vmax.f32 %v2500, 0.0
        %v2533 = vmax.f32 %v2501, 0.0
        %v2534 = vmax.f32 %v2502, 0.0
        %v2535 = vmax.f32 %v2503, 0.0
        %v2536 = vmax.f32 %v2504, 0.0
        %v2537 = vmax.f32 %v2505, 0.0
        %v2538 = vmax.f32 %v2506, 0.0
        %v2539 = vmax.f32 %v2507, 0.0
        %v2540 = vmax.f32 %v2508, 0.0
        %v2541 = vmax.f32 %v2509, 0.0
        %v2542 = vmax.f32 %v2510, 0.0
        %v2543 = vmax.f32 %v2511, 0.0
        %v2544 = vmax.f32 %v2512, 0.0
        %v2545 = vmax.f32 %v2513, 0.0
        %v2546 = vmax.f32 %v2514, 0.0
        %v2547 = vmax.f32 %v2515, 0.0
        %v2548 = vmax.f32 %v2516, 0.0
        %v2549 = vmax.f32 %v2517, 0.0
        %v2550 = vmax.f32 %v2518, 0.0
        %v2551 = vmax.f32 %v2519, 0.0
        %v2552 = vmax.f32 %v2520, 0.0
        %v2553 = vmax.f32 %v2521, 0.0
        %v2554 = vmax.f32 %v2522, 0.0
        %v2555 = vmax.f32 %v2523, 0.0
        %v2556 = vmax.f32 %v2524, 0.0
        %v2557 = vmax.f32 %v2525, 0.0
        %v2558 = vmax.f32 %v2526, 0.0
        %v2559 = vmax.f32 %v2527, 0.0
        %v2560 = vld [vmem:[#allocation7] sm:$0xff]
        %v2561 = vld [vmem:[#allocation7 + $0x8] sm:$0xff]
        %v2562 = vld [vmem:[#allocation7 + $0x10] sm:$0xff]
        %v2563 = vld [vmem:[#allocation7 + $0x18] sm:$0xff]
        %v2564 = vld [vmem:[#allocation7 + $0x20] sm:$0xff]
        %v2565 = vld [vmem:[#allocation7 + $0x28] sm:$0xff]
        %v2566 = vld [vmem:[#allocation7 + $0x30] sm:$0xff]
        %v2567 = vld [vmem:[#allocation7 + $0x38] sm:$0xff]
        %v2568 = vld [vmem:[#allocation7 + $0x40] sm:$0xff]
        %v2569 = vld [vmem:[#allocation7 + $0x48] sm:$0xff]
        %v2570 = vld [vmem:[#allocation7 + $0x50] sm:$0xff]
        %v2571 = vld [vmem:[#allocation7 + $0x58] sm:$0xff]
        %v2572 = vld [vmem:[#allocation7 + $0x60] sm:$0xff]
        %v2573 = vld [vmem:[#allocation7 + $0x68] sm:$0xff]
        %v2574 = vld [vmem:[#allocation7 + $0x70] sm:$0xff]
        %v2575 = vld [vmem:[#allocation7 + $0x78] sm:$0xff]
        %v2576 = vld [vmem:[#allocation7 + $0x80] sm:$0xff]
        %v2577 = vld [vmem:[#allocation7 + $0x88] sm:$0xff]
        %v2578 = vld [vmem:[#allocation7 + $0x90] sm:$0xff]
        %v2579 = vld [vmem:[#allocation7 + $0x98] sm:$0xff]
        %v2580 = vld [vmem:[#allocation7 + $0xa0] sm:$0xff]
        %v2581 = vld [vmem:[#allocation7 + $0xa8] sm:$0xff]
        %v2582 = vld [vmem:[#allocation7 + $0xb0] sm:$0xff]
        %v2583 = vld [vmem:[#allocation7 + $0xb8] sm:$0xff]
        %v2584 = vld [vmem:[#allocation7 + $0xc0] sm:$0xff]
        %v2585 = vld [vmem:[#allocation7 + $0xc8] sm:$0xff]
        %v2586 = vld [vmem:[#allocation7 + $0xd0] sm:$0xff]
        %v2587 = vld [vmem:[#allocation7 + $0xd8] sm:$0xff]
        %v2588 = vld [vmem:[#allocation7 + $0xe0] sm:$0xff]
        %v2589 = vld [vmem:[#allocation7 + $0xe8] sm:$0xff]
        %v2590 = vld [vmem:[#allocation7 + $0xf0] sm:$0xff]
        %v2591 = vld [vmem:[#allocation7 + $0xf8] sm:$0xff]
        %v2592 = vld [vmem:[#allocation7 + $0x100] sm:$0xff]
        %v2593 = vld [vmem:[#allocation7 + $0x108] sm:$0xff]
        %v2594 = vld [vmem:[#allocation7 + $0x110] sm:$0xff]
        %v2595 = vld [vmem:[#allocation7 + $0x118] sm:$0xff]
        %v2596 = vld [vmem:[#allocation7 + $0x120] sm:$0xff]
        %v2597 = vld [vmem:[#allocation7 + $0x128] sm:$0xff]
        %v2598 = vld [vmem:[#allocation7 + $0x130] sm:$0xff]
        %v2599 = vld [vmem:[#allocation7 + $0x138] sm:$0xff]
        %v2600 = vld [vmem:[#allocation7 + $0x140] sm:$0xff]
        %v2601 = vld [vmem:[#allocation7 + $0x148] sm:$0xff]
        %v2602 = vld [vmem:[#allocation7 + $0x150] sm:$0xff]
        %v2603 = vld [vmem:[#allocation7 + $0x158] sm:$0xff]
        %v2604 = vld [vmem:[#allocation7 + $0x160] sm:$0xff]
        %v2605 = vld [vmem:[#allocation7 + $0x168] sm:$0xff]
        %v2606 = vld [vmem:[#allocation7 + $0x170] sm:$0xff]
        %v2607 = vld [vmem:[#allocation7 + $0x178] sm:$0xff]
        %v2608 = vld [vmem:[#allocation7 + $0x180] sm:$0xff]
        %v2609 = vld [vmem:[#allocation7 + $0x188] sm:$0xff]
        %v2610 = vld [vmem:[#allocation7 + $0x190] sm:$0xff]
        %v2611 = vld [vmem:[#allocation7 + $0x198] sm:$0xff]
        %v2612 = vld [vmem:[#allocation7 + $0x1a0] sm:$0xff]
        %v2613 = vld [vmem:[#allocation7 + $0x1a8] sm:$0xff]
        %v2614 = vld [vmem:[#allocation7 + $0x1b0] sm:$0xff]
        %v2615 = vld [vmem:[#allocation7 + $0x1b8] sm:$0xff]
        %v2616 = vld [vmem:[#allocation7 + $0x1c0] sm:$0xff]
        %v2617 = vld [vmem:[#allocation7 + $0x1c8] sm:$0xff]
        %v2618 = vld [vmem:[#allocation7 + $0x1d0] sm:$0xff]
        %v2619 = vld [vmem:[#allocation7 + $0x1d8] sm:$0xff]
        %v2620 = vld [vmem:[#allocation7 + $0x1e0] sm:$0xff]
        %v2621 = vld [vmem:[#allocation7 + $0x1e8] sm:$0xff]
        %v2622 = vld [vmem:[#allocation7 + $0x1f0] sm:$0xff]
        %v2623 = vld [vmem:[#allocation7 + $0x1f8] sm:$0xff]
        %2624 = vmatpush.msra.mxu0 %v2543
        %2625 = vmatpush.msra.mxu0 %v2542
        %2626 = vmatpush.msra.mxu0 %v2541
        %2627 = vmatpush.msra.mxu0 %v2540
        %2628 = vmatpush.msra.mxu0 %v2539
        %2629 = vmatpush.msra.mxu0 %v2538
        %2630 = vmatpush.msra.mxu0 %v2537
        %2631 = vmatpush.msra.mxu0 %v2536
        %2632 = vmatpush.msra.mxu0 %v2535
        %2633 = vmatpush.msra.mxu0 %v2534
        %2634 = vmatpush.msra.mxu0 %v2533
        %2635 = vmatpush.msra.mxu0 %v2532
        %2636 = vmatpush.msra.mxu0 %v2531
        %2637 = vmatpush.msra.mxu0 %v2530
        %2638 = vmatpush.msra.mxu0 %v2529
        %2639 = vmatpush.msra.mxu0 %v2528
        %2640 = vmatmul.f32.gmra.mxu0 %v2560
        %v2641 = vpop.f32.mrf.mxu0
        %v2642 = vadd.f32 0.0, %v2641
        %2643 = vmatmul.f32.gmra.mxu0 %v2562
        %v2644 = vpop.f32.mrf.mxu0
        %v2645 = vadd.f32 0.0, %v2644
        %2646 = vmatmul.f32.gmra.mxu0 %v2564
        %v2647 = vpop.f32.mrf.mxu0
        %v2648 = vadd.f32 0.0, %v2647
        %2649 = vmatmul.f32.gmra.mxu0 %v2566
        %v2650 = vpop.f32.mrf.mxu0
        %v2651 = vadd.f32 0.0, %v2650
        %2652 = vmatmul.f32.gmra.mxu0 %v2568
        %v2653 = vpop.f32.mrf.mxu0
        %v2654 = vadd.f32 0.0, %v2653
        %2655 = vmatmul.f32.gmra.mxu0 %v2570
        %v2656 = vpop.f32.mrf.mxu0
        %v2657 = vadd.f32 0.0, %v2656
        %2658 = vmatmul.f32.gmra.mxu0 %v2572
        %v2659 = vpop.f32.mrf.mxu0
        %v2660 = vadd.f32 0.0, %v2659
        %2661 = vmatmul.f32.gmra.mxu0 %v2574
        %v2662 = vpop.f32.mrf.mxu0
        %v2663 = vadd.f32 0.0, %v2662
        %2664 = vmatmul.f32.gmra.mxu0 %v2576
        %v2665 = vpop.f32.mrf.mxu0
        %v2666 = vadd.f32 0.0, %v2665
        %2667 = vmatmul.f32.gmra.mxu0 %v2578
        %v2668 = vpop.f32.mrf.mxu0
        %v2669 = vadd.f32 0.0, %v2668
        %2670 = vmatmul.f32.gmra.mxu0 %v2580
        %v2671 = vpop.f32.mrf.mxu0
        %v2672 = vadd.f32 0.0, %v2671
        %2673 = vmatmul.f32.gmra.mxu0 %v2582
        %v2674 = vpop.f32.mrf.mxu0
        %v2675 = vadd.f32 0.0, %v2674
        %2676 = vmatmul.f32.gmra.mxu0 %v2584
        %v2677 = vpop.f32.mrf.mxu0
        %v2678 = vadd.f32 0.0, %v2677
        %2679 = vmatmul.f32.gmra.mxu0 %v2586
        %v2680 = vpop.f32.mrf.mxu0
        %v2681 = vadd.f32 0.0, %v2680
        %2682 = vmatmul.f32.gmra.mxu0 %v2588
        %v2683 = vpop.f32.mrf.mxu0
        %v2684 = vadd.f32 0.0, %v2683
        %2685 = vmatmul.f32.gmra.mxu0 %v2590
        %v2686 = vpop.f32.mrf.mxu0
        %v2687 = vadd.f32 0.0, %v2686
        %2688 = vmatmul.f32.gmra.mxu0 %v2592
        %v2689 = vpop.f32.mrf.mxu0
        %v2690 = vadd.f32 0.0, %v2689
        %2691 = vmatmul.f32.gmra.mxu0 %v2594
        %v2692 = vpop.f32.mrf.mxu0
        %v2693 = vadd.f32 0.0, %v2692
        %2694 = vmatmul.f32.gmra.mxu0 %v2596
        %v2695 = vpop.f32.mrf.mxu0
        %v2696 = vadd.f32 0.0, %v2695
        %2697 = vmatmul.f32.gmra.mxu0 %v2598
        %v2698 = vpop.f32.mrf.mxu0
        %v2699 = vadd.f32 0.0, %v2698
        %2700 = vmatmul.f32.gmra.mxu0 %v2600
        %v2701 = vpop.f32.mrf.mxu0
        %v2702 = vadd.f32 0.0, %v2701
        %2703 = vmatmul.f32.gmra.mxu0 %v2602
        %v2704 = vpop.f32.mrf.mxu0
        %v2705 = vadd.f32 0.0, %v2704
        %2706 = vmatmul.f32.gmra.mxu0 %v2604
        %v2707 = vpop.f32.mrf.mxu0
        %v2708 = vadd.f32 0.0, %v2707
        %2709 = vmatmul.f32.gmra.mxu0 %v2606
        %v2710 = vpop.f32.mrf.mxu0
        %v2711 = vadd.f32 0.0, %v2710
        %2712 = vmatmul.f32.gmra.mxu0 %v2608
        %v2713 = vpop.f32.mrf.mxu0
        %v2714 = vadd.f32 0.0, %v2713
        %2715 = vmatmul.f32.gmra.mxu0 %v2610
        %v2716 = vpop.f32.mrf.mxu0
        %v2717 = vadd.f32 0.0, %v2716
        %2718 = vmatmul.f32.gmra.mxu0 %v2612
        %v2719 = vpop.f32.mrf.mxu0
        %v2720 = vadd.f32 0.0, %v2719
        %2721 = vmatmul.f32.gmra.mxu0 %v2614
        %v2722 = vpop.f32.mrf.mxu0
        %v2723 = vadd.f32 0.0, %v2722
        %2724 = vmatmul.f32.gmra.mxu0 %v2616
        %v2725 = vpop.f32.mrf.mxu0
        %v2726 = vadd.f32 0.0, %v2725
        %2727 = vmatmul.f32.gmra.mxu0 %v2618
        %v2728 = vpop.f32.mrf.mxu0
        %v2729 = vadd.f32 0.0, %v2728
        %2730 = vmatmul.f32.gmra.mxu0 %v2620
        %v2731 = vpop.f32.mrf.mxu0
        %v2732 = vadd.f32 0.0, %v2731
        %2733 = vmatmul.f32.gmra.mxu0 %v2622
        %v2734 = vpop.f32.mrf.mxu0
        %v2735 = vadd.f32 0.0, %v2734
        %2736 = vdwg.mxu0
        %2737 = vmatpush.msra.mxu0 %v2559
        %2738 = vmatpush.msra.mxu0 %v2558
        %2739 = vmatpush.msra.mxu0 %v2557
        %2740 = vmatpush.msra.mxu0 %v2556
        %2741 = vmatpush.msra.mxu0 %v2555
        %2742 = vmatpush.msra.mxu0 %v2554
        %2743 = vmatpush.msra.mxu0 %v2553
        %2744 = vmatpush.msra.mxu0 %v2552
        %2745 = vmatpush.msra.mxu0 %v2551
        %2746 = vmatpush.msra.mxu0 %v2550
        %2747 = vmatpush.msra.mxu0 %v2549
        %2748 = vmatpush.msra.mxu0 %v2548
        %2749 = vmatpush.msra.mxu0 %v2547
        %2750 = vmatpush.msra.mxu0 %v2546
        %2751 = vmatpush.msra.mxu0 %v2545
        %2752 = vmatpush.msra.mxu0 %v2544
        %2753 = vmatmul.f32.gmra.mxu0 %v2561
        %v2754 = vpop.f32.mrf.mxu0
        %v2755 = vadd.f32 %v2642, %v2754
        %2756 = vmatmul.f32.gmra.mxu0 %v2563
        %v2757 = vpop.f32.mrf.mxu0
        %v2758 = vadd.f32 %v2645, %v2757
        %2759 = vmatmul.f32.gmra.mxu0 %v2565
        %v2760 = vpop.f32.mrf.mxu0
        %v2761 = vadd.f32 %v2648, %v2760
        %2762 = vmatmul.f32.gmra.mxu0 %v2567
        %v2763 = vpop.f32.mrf.mxu0
        %v2764 = vadd.f32 %v2651, %v2763
        %2765 = vmatmul.f32.gmra.mxu0 %v2569
        %v2766 = vpop.f32.mrf.mxu0
        %v2767 = vadd.f32 %v2654, %v2766
        %2768 = vmatmul.f32.gmra.mxu0 %v2571
        %v2769 = vpop.f32.mrf.mxu0
        %v2770 = vadd.f32 %v2657, %v2769
        %2771 = vmatmul.f32.gmra.mxu0 %v2573
        %v2772 = vpop.f32.mrf.mxu0
        %v2773 = vadd.f32 %v2660, %v2772
        %2774 = vmatmul.f32.gmra.mxu0 %v2575
        %v2775 = vpop.f32.mrf.mxu0
        %v2776 = vadd.f32 %v2663, %v2775
        %2777 = vmatmul.f32.gmra.mxu0 %v2577
        %v2778 = vpop.f32.mrf.mxu0
        %v2779 = vadd.f32 %v2666, %v2778
        %2780 = vmatmul.f32.gmra.mxu0 %v2579
        %v2781 = vpop.f32.mrf.mxu0
        %v2782 = vadd.f32 %v2669, %v2781
        %2783 = vmatmul.f32.gmra.mxu0 %v2581
        %v2784 = vpop.f32.mrf.mxu0
        %v2785 = vadd.f32 %v2672, %v2784
        %2786 = vmatmul.f32.gmra.mxu0 %v2583
        %v2787 = vpop.f32.mrf.mxu0
        %v2788 = vadd.f32 %v2675, %v2787
        %2789 = vmatmul.f32.gmra.mxu0 %v2585
        %v2790 = vpop.f32.mrf.mxu0
        %v2791 = vadd.f32 %v2678, %v2790
        %2792 = vmatmul.f32.gmra.mxu0 %v2587
        %v2793 = vpop.f32.mrf.mxu0
        %v2794 = vadd.f32 %v2681, %v2793
        %2795 = vmatmul.f32.gmra.mxu0 %v2589
        %v2796 = vpop.f32.mrf.mxu0
        %v2797 = vadd.f32 %v2684, %v2796
        %2798 = vmatmul.f32.gmra.mxu0 %v2591
        %v2799 = vpop.f32.mrf.mxu0
        %v2800 = vadd.f32 %v2687, %v2799
        %2801 = vmatmul.f32.gmra.mxu0 %v2593
        %v2802 = vpop.f32.mrf.mxu0
        %v2803 = vadd.f32 %v2690, %v2802
        %2804 = vmatmul.f32.gmra.mxu0 %v2595
        %v2805 = vpop.f32.mrf.mxu0
        %v2806 = vadd.f32 %v2693, %v2805
        %2807 = vmatmul.f32.gmra.mxu0 %v2597
        %v2808 = vpop.f32.mrf.mxu0
        %v2809 = vadd.f32 %v2696, %v2808
        %2810 = vmatmul.f32.gmra.mxu0 %v2599
        %v2811 = vpop.f32.mrf.mxu0
        %v2812 = vadd.f32 %v2699, %v2811
        %2813 = vmatmul.f32.gmra.mxu0 %v2601
        %v2814 = vpop.f32.mrf.mxu0
        %v2815 = vadd.f32 %v2702, %v2814
        %2816 = vmatmul.f32.gmra.mxu0 %v2603
        %v2817 = vpop.f32.mrf.mxu0
        %v2818 = vadd.f32 %v2705, %v2817
        %2819 = vmatmul.f32.gmra.mxu0 %v2605
        %v2820 = vpop.f32.mrf.mxu0
        %v2821 = vadd.f32 %v2708, %v2820
        %2822 = vmatmul.f32.gmra.mxu0 %v2607
        %v2823 = vpop.f32.mrf.mxu0
        %v2824 = vadd.f32 %v2711, %v2823
        %2825 = vmatmul.f32.gmra.mxu0 %v2609
        %v2826 = vpop.f32.mrf.mxu0
        %v2827 = vadd.f32 %v2714, %v2826
        %2828 = vmatmul.f32.gmra.mxu0 %v2611
        %v2829 = vpop.f32.mrf.mxu0
        %v2830 = vadd.f32 %v2717, %v2829
        %2831 = vmatmul.f32.gmra.mxu0 %v2613
        %v2832 = vpop.f32.mrf.mxu0
        %v2833 = vadd.f32 %v2720, %v2832
        %2834 = vmatmul.f32.gmra.mxu0 %v2615
        %v2835 = vpop.f32.mrf.mxu0
        %v2836 = vadd.f32 %v2723, %v2835
        %2837 = vmatmul.f32.gmra.mxu0 %v2617
        %v2838 = vpop.f32.mrf.mxu0
        %v2839 = vadd.f32 %v2726, %v2838
        %2840 = vmatmul.f32.gmra.mxu0 %v2619
        %v2841 = vpop.f32.mrf.mxu0
        %v2842 = vadd.f32 %v2729, %v2841
        %2843 = vmatmul.f32.gmra.mxu0 %v2621
        %v2844 = vpop.f32.mrf.mxu0
        %v2845 = vadd.f32 %v2732, %v2844
        %2846 = vmatmul.f32.gmra.mxu0 %v2623
        %v2847 = vpop.f32.mrf.mxu0
        %v2848 = vadd.f32 %v2735, %v2847
        %2849 = vdwg.mxu0
        %v2850 = vmax.f32 %v2755, %v2779
        %v2851 = vmax.f32 %v2758, %v2782
        %v2852 = vmax.f32 %v2761, %v2785
        %v2853 = vmax.f32 %v2764, %v2788
        %v2854 = vmax.f32 %v2767, %v2791
        %v2855 = vmax.f32 %v2770, %v2794
        %v2856 = vmax.f32 %v2773, %v2797
        %v2857 = vmax.f32 %v2776, %v2800
        %v2858 = vmax.f32 %v2803, %v2827
        %v2859 = vmax.f32 %v2806, %v2830
        %v2860 = vmax.f32 %v2809, %v2833
        %v2861 = vmax.f32 %v2812, %v2836
        %v2862 = vmax.f32 %v2815, %v2839
        %v2863 = vmax.f32 %v2818, %v2842
        %v2864 = vmax.f32 %v2821, %v2845
        %v2865 = vmax.f32 %v2824, %v2848
        %v2866 = vmax.f32 %v2850, %v2858
        %v2867 = vmax.f32 %v2851, %v2859
        %v2868 = vmax.f32 %v2852, %v2860
        %v2869 = vmax.f32 %v2853, %v2861
        %v2870 = vmax.f32 %v2854, %v2862
        %v2871 = vmax.f32 %v2855, %v2863
        %v2872 = vmax.f32 %v2856, %v2864
        %v2873 = vmax.f32 %v2857, %v2865
        %2874 = vst [vmem:[#allocation3] sm:$0xff] 0.0
        %2875 = vst [vmem:[#allocation3 + $0x8] sm:$0x3] 0.0
        %2876 = vst [vmem:[#allocation3 + $0x10] sm:$0xff] 0.0
        %2877 = vst [vmem:[#allocation3 + $0x18] sm:$0x3] 0.0
        %2878 = vst [vmem:[#allocation3 + $0x20] sm:$0xff] 0.0
        %2879 = vst [vmem:[#allocation3 + $0x28] sm:$0x3] 0.0
        %2880 = vst [vmem:[#allocation3 + $0x30] sm:$0xff] 0.0
        %2881 = vst [vmem:[#allocation3 + $0x38] sm:$0x3] 0.0
        %2882 = vst [vmem:[#allocation3 + $0x40] sm:$0xff] 0.0
        %2883 = vst [vmem:[#allocation3 + $0x48] sm:$0x3] 0.0
        %2884 = vst [vmem:[#allocation3 + $0x50] sm:$0xff] 0.0
        %2885 = vst [vmem:[#allocation3 + $0x58] sm:$0x3] 0.0
        %2886 = vst [vmem:[#allocation3 + $0x60] sm:$0xff] 0.0
        %2887 = vst [vmem:[#allocation3 + $0x68] sm:$0x3] 0.0
        %2888 = vst [vmem:[#allocation3 + $0x70] sm:$0xff] 0.0
        %2889 = vst [vmem:[#allocation3 + $0x78] sm:$0x3] 0.0
        %2890 = vst [vmem:[#allocation3 + $0x80] sm:$0xff] 0.0
        %2891 = vst [vmem:[#allocation3 + $0x88] sm:$0x3] 0.0
        %2892 = vst [vmem:[#allocation3 + $0x90] sm:$0xff] 0.0
        %2893 = vst [vmem:[#allocation3 + $0x98] sm:$0x3] 0.0
        %s2894 = scalar_lea.vmem [#allocation3], 16
        %2895 = vst [vmem:[%s2894 + $0x1] sm:$0xff] %v2866
        %2896 = vst [vmem:[%s2894 + $0x11] sm:$0xff] %v2867
        %2897 = vst [vmem:[%s2894 + $0x21] sm:$0xff] %v2868
        %2898 = vst [vmem:[%s2894 + $0x31] sm:$0xff] %v2869
        %2899 = vst [vmem:[%s2894 + $0x41] sm:$0xff] %v2870
        %2900 = vst [vmem:[%s2894 + $0x51] sm:$0xff] %v2871
        %2901 = vst [vmem:[%s2894 + $0x61] sm:$0xff] %v2872
        %2902 = vst [vmem:[%s2894 + $0x71] sm:$0xff] %v2873
        %v2903 = vld [vmem:[#allocation3] sm:$0xff]
        %v2904 = vld [vmem:[#allocation3 + $0x10] sm:$0xff]
        %v2905 = vld [vmem:[#allocation3 + $0x20] sm:$0xff]
        %v2906 = vld [vmem:[#allocation3 + $0x30] sm:$0xff]
        %v2907 = vld [vmem:[#allocation3 + $0x40] sm:$0xff]
        %v2908 = vld [vmem:[#allocation3 + $0x50] sm:$0xff]
        %v2909 = vld [vmem:[#allocation3 + $0x60] sm:$0xff]
        %v2910 = vld [vmem:[#allocation3 + $0x70] sm:$0xff]
        %v2911 = vpack.c.bf16 %v2904, %v2903
        %v2912 = vpack.c.bf16 %v2906, %v2905
        %v2913 = vpack.c.bf16 %v2908, %v2907
        %v2914 = vpack.c.bf16 %v2910, %v2909
        %v2915 = vld [vmem:[%s4] sm:$0xf]
        %v2916 = vld [vmem:[%s4 + $0x4] sm:$0xf]
        %v2917 = vld [vmem:[%s4 + $0x8] sm:$0xf]
        %v2918 = vld [vmem:[%s4 + $0xc] sm:$0xf]
        %v2919 = vld [vmem:[%s4 + $0x10] sm:$0xf]
        %v2920 = vld [vmem:[%s4 + $0x14] sm:$0xf]
        %v2921 = vld [vmem:[%s4 + $0x18] sm:$0xf]
        %v2922 = vld [vmem:[%s4 + $0x1c] sm:$0xf]
        %v2923 = vld [vmem:[%s4 + $0x20] sm:$0xf]
        %v2924 = vld [vmem:[%s4 + $0x24] sm:$0xf]
        %v2925 = vld [vmem:[%s4 + $0x28] sm:$0xf]
        %v2926 = vld [vmem:[%s4 + $0x2c] sm:$0xf]
        %v2927 = vld [vmem:[%s4 + $0x30] sm:$0xf]
        %v2928 = vld [vmem:[%s4 + $0x34] sm:$0xf]
        %v2929 = vld [vmem:[%s4 + $0x38] sm:$0xf]
        %v2930 = vld [vmem:[%s4 + $0x3c] sm:$0xf]
        %v2931 = vld [vmem:[#allocation3 + $0x1] sm:$0xff]
        %v2932 = vld [vmem:[#allocation3 + $0x11] sm:$0xff]
        %v2933 = vld [vmem:[#allocation3 + $0x21] sm:$0xff]
        %v2934 = vld [vmem:[#allocation3 + $0x31] sm:$0xff]
        %v2935 = vld [vmem:[#allocation3 + $0x41] sm:$0xff]
        %v2936 = vld [vmem:[#allocation3 + $0x51] sm:$0xff]
        %v2937 = vld [vmem:[#allocation3 + $0x61] sm:$0xff]
        %v2938 = vld [vmem:[#allocation3 + $0x71] sm:$0xff]
        %v2939 = vpack.c.bf16 %v2932, %v2931
        %v2940 = vpack.c.bf16 %v2934, %v2933
        %v2941 = vpack.c.bf16 %v2936, %v2935
        %v2942 = vpack.c.bf16 %v2938, %v2937
        %s2943 = scalar_lea.vmem %s4, 64
        %v2944 = vld [vmem:[%s2943] sm:$0xf]
        %v2945 = vld [vmem:[%s2943 + $0x4] sm:$0xf]
        %v2946 = vld [vmem:[%s2943 + $0x8] sm:$0xf]
        %v2947 = vld [vmem:[%s2943 + $0xc] sm:$0xf]
        %v2948 = vld [vmem:[%s2943 + $0x10] sm:$0xf]
        %v2949 = vld [vmem:[%s2943 + $0x14] sm:$0xf]
        %v2950 = vld [vmem:[%s2943 + $0x18] sm:$0xf]
        %v2951 = vld [vmem:[%s2943 + $0x1c] sm:$0xf]
        %v2952 = vld [vmem:[%s2943 + $0x20] sm:$0xf]
        %v2953 = vld [vmem:[%s2943 + $0x24] sm:$0xf]
        %v2954 = vld [vmem:[%s2943 + $0x28] sm:$0xf]
        %v2955 = vld [vmem:[%s2943 + $0x2c] sm:$0xf]
        %v2956 = vld [vmem:[%s2943 + $0x30] sm:$0xf]
        %v2957 = vld [vmem:[%s2943 + $0x34] sm:$0xf]
        %v2958 = vld [vmem:[%s2943 + $0x38] sm:$0xf]
        %v2959 = vld [vmem:[%s2943 + $0x3c] sm:$0xf]
        %v2976 = vunpack.c.l.b16 %v2944
        %v2977 = vunpack.c.l.b16 %v2945
        %v2978 = vunpack.c.l.b16 %v2946
        %v2979 = vunpack.c.l.b16 %v2947
        %v2980 = vunpack.c.l.b16 %v2948
        %v2981 = vunpack.c.l.b16 %v2949
        %v2982 = vunpack.c.l.b16 %v2950
        %v2983 = vunpack.c.l.b16 %v2951
        %v2984 = vunpack.c.l.b16 %v2952
        %v2985 = vunpack.c.l.b16 %v2953
        %v2986 = vunpack.c.l.b16 %v2954
        %v2987 = vunpack.c.l.b16 %v2955
        %v2988 = vunpack.c.l.b16 %v2956
        %v2989 = vunpack.c.l.b16 %v2957
        %v2990 = vunpack.c.l.b16 %v2958
        %v2991 = vunpack.c.l.b16 %v2959
        %v2992 = vpack.c.b16 %v2977, %v2976
        %v2993 = vpack.c.b16 %v2979, %v2978
        %v2994 = vpack.c.b16 %v2981, %v2980
        %v2995 = vpack.c.b16 %v2983, %v2982
        %v2996 = vpack.c.b16 %v2985, %v2984
        %v2997 = vpack.c.b16 %v2987, %v2986
        %v2998 = vpack.c.b16 %v2989, %v2988
        %v2999 = vpack.c.b16 %v2991, %v2990
        %3008 = vmatpush.bf16.msra.mxu0 %v2999
        %3009 = vmatpush.bf16.msra.mxu0 %v2998
        %3010 = vmatpush.bf16.msra.mxu0 %v2997
        %3011 = vmatpush.bf16.msra.mxu0 %v2996
        %3012 = vmatpush.bf16.msra.mxu0 %v2995
        %3013 = vmatpush.bf16.msra.mxu0 %v2994
        %3014 = vmatpush.bf16.msra.mxu0 %v2993
        %3015 = vmatpush.bf16.msra.mxu0 %v2992
        %3016 = vmatmul.bf16.gmra.mxu0 %v2939
        %v3017 = vpop.f32.mrf.mxu0
        %v3018 = vadd.f32 0.0, %v3017
        %v3019 = vpop.f32.mrf.mxu0
        %v3020 = vadd.f32 0.0, %v3019
        %3021 = vmatmul.bf16.gmra.mxu0 %v2940
        %v3022 = vpop.f32.mrf.mxu0
        %v3023 = vadd.f32 0.0, %v3022
        %v3024 = vpop.f32.mrf.mxu0
        %v3025 = vadd.f32 0.0, %v3024
        %3026 = vmatmul.bf16.gmra.mxu0 %v2941
        %v3027 = vpop.f32.mrf.mxu0
        %v3028 = vadd.f32 0.0, %v3027
        %v3029 = vpop.f32.mrf.mxu0
        %v3030 = vadd.f32 0.0, %v3029
        %3031 = vmatmul.bf16.gmra.mxu0 %v2942
        %v3032 = vpop.f32.mrf.mxu0
        %v3033 = vadd.f32 0.0, %v3032
        %v3034 = vpop.f32.mrf.mxu0
        %v3035 = vadd.f32 0.0, %v3034
        %3036 = vdwg.mxu0
        %v3053 = vunpack.c.l.b16 %v2915
        %v3054 = vunpack.c.l.b16 %v2916
        %v3055 = vunpack.c.l.b16 %v2917
        %v3056 = vunpack.c.l.b16 %v2918
        %v3057 = vunpack.c.l.b16 %v2919
        %v3058 = vunpack.c.l.b16 %v2920
        %v3059 = vunpack.c.l.b16 %v2921
        %v3060 = vunpack.c.l.b16 %v2922
        %v3061 = vunpack.c.l.b16 %v2923
        %v3062 = vunpack.c.l.b16 %v2924
        %v3063 = vunpack.c.l.b16 %v2925
        %v3064 = vunpack.c.l.b16 %v2926
        %v3065 = vunpack.c.l.b16 %v2927
        %v3066 = vunpack.c.l.b16 %v2928
        %v3067 = vunpack.c.l.b16 %v2929
        %v3068 = vunpack.c.l.b16 %v2930
        %v3069 = vpack.c.b16 %v3054, %v3053
        %v3070 = vpack.c.b16 %v3056, %v3055
        %v3071 = vpack.c.b16 %v3058, %v3057
        %v3072 = vpack.c.b16 %v3060, %v3059
        %v3073 = vpack.c.b16 %v3062, %v3061
        %v3074 = vpack.c.b16 %v3064, %v3063
        %v3075 = vpack.c.b16 %v3066, %v3065
        %v3076 = vpack.c.b16 %v3068, %v3067
        %3085 = vmatpush.bf16.msra.mxu0 %v3076
        %3086 = vmatpush.bf16.msra.mxu0 %v3075
        %3087 = vmatpush.bf16.msra.mxu0 %v3074
        %3088 = vmatpush.bf16.msra.mxu0 %v3073
        %3089 = vmatpush.bf16.msra.mxu0 %v3072
        %3090 = vmatpush.bf16.msra.mxu0 %v3071
        %3091 = vmatpush.bf16.msra.mxu0 %v3070
        %3092 = vmatpush.bf16.msra.mxu0 %v3069
        %3093 = vmatmul.bf16.gmra.mxu0 %v2911
        %v3094 = vpop.f32.mrf.mxu0
        %v3095 = vadd.f32 %v3018, %v3094
        %v3096 = vpop.f32.mrf.mxu0
        %v3097 = vadd.f32 %v3020, %v3096
        %3098 = vmatmul.bf16.gmra.mxu0 %v2912
        %v3099 = vpop.f32.mrf.mxu0
        %v3100 = vadd.f32 %v3023, %v3099
        %v3101 = vpop.f32.mrf.mxu0
        %v3102 = vadd.f32 %v3025, %v3101
        %3103 = vmatmul.bf16.gmra.mxu0 %v2913
        %v3104 = vpop.f32.mrf.mxu0
        %v3105 = vadd.f32 %v3028, %v3104
        %v3106 = vpop.f32.mrf.mxu0
        %v3107 = vadd.f32 %v3030, %v3106
        %3108 = vmatmul.bf16.gmra.mxu0 %v2914
        %v3109 = vpop.f32.mrf.mxu0
        %v3110 = vadd.f32 %v3033, %v3109
        %v3111 = vpop.f32.mrf.mxu0
        %v3112 = vadd.f32 %v3035, %v3111
        %3113 = vdwg.mxu0
        %v3114 = vld [vmem:[#allocation3 + $0x2] sm:$0xff]
        %v3115 = vld [vmem:[#allocation3 + $0x12] sm:$0xff]
        %v3116 = vld [vmem:[#allocation3 + $0x22] sm:$0xff]
        %v3117 = vld [vmem:[#allocation3 + $0x32] sm:$0xff]
        %v3118 = vld [vmem:[#allocation3 + $0x42] sm:$0xff]
        %v3119 = vld [vmem:[#allocation3 + $0x52] sm:$0xff]
        %v3120 = vld [vmem:[#allocation3 + $0x62] sm:$0xff]
        %v3121 = vld [vmem:[#allocation3 + $0x72] sm:$0xff]
        %v3122 = vpack.c.bf16 %v3115, %v3114
        %v3123 = vpack.c.bf16 %v3117, %v3116
        %v3124 = vpack.c.bf16 %v3119, %v3118
        %v3125 = vpack.c.bf16 %v3121, %v3120
        %s3126 = scalar_lea.vmem %s4, 128
        %v3127 = vld [vmem:[%s3126] sm:$0xf]
        %v3128 = vld [vmem:[%s3126 + $0x4] sm:$0xf]
        %v3129 = vld [vmem:[%s3126 + $0x8] sm:$0xf]
        %v3130 = vld [vmem:[%s3126 + $0xc] sm:$0xf]
        %v3131 = vld [vmem:[%s3126 + $0x10] sm:$0xf]
        %v3132 = vld [vmem:[%s3126 + $0x14] sm:$0xf]
        %v3133 = vld [vmem:[%s3126 + $0x18] sm:$0xf]
        %v3134 = vld [vmem:[%s3126 + $0x1c] sm:$0xf]
        %v3135 = vld [vmem:[%s3126 + $0x20] sm:$0xf]
        %v3136 = vld [vmem:[%s3126 + $0x24] sm:$0xf]
        %v3137 = vld [vmem:[%s3126 + $0x28] sm:$0xf]
        %v3138 = vld [vmem:[%s3126 + $0x2c] sm:$0xf]
        %v3139 = vld [vmem:[%s3126 + $0x30] sm:$0xf]
        %v3140 = vld [vmem:[%s3126 + $0x34] sm:$0xf]
        %v3141 = vld [vmem:[%s3126 + $0x38] sm:$0xf]
        %v3142 = vld [vmem:[%s3126 + $0x3c] sm:$0xf]
        %v3159 = vunpack.c.l.b16 %v3127
        %v3160 = vunpack.c.l.b16 %v3128
        %v3161 = vunpack.c.l.b16 %v3129
        %v3162 = vunpack.c.l.b16 %v3130
        %v3163 = vunpack.c.l.b16 %v3131
        %v3164 = vunpack.c.l.b16 %v3132
        %v3165 = vunpack.c.l.b16 %v3133
        %v3166 = vunpack.c.l.b16 %v3134
        %v3167 = vunpack.c.l.b16 %v3135
        %v3168 = vunpack.c.l.b16 %v3136
        %v3169 = vunpack.c.l.b16 %v3137
        %v3170 = vunpack.c.l.b16 %v3138
        %v3171 = vunpack.c.l.b16 %v3139
        %v3172 = vunpack.c.l.b16 %v3140
        %v3173 = vunpack.c.l.b16 %v3141
        %v3174 = vunpack.c.l.b16 %v3142
        %v3175 = vpack.c.b16 %v3160, %v3159
        %v3176 = vpack.c.b16 %v3162, %v3161
        %v3177 = vpack.c.b16 %v3164, %v3163
        %v3178 = vpack.c.b16 %v3166, %v3165
        %v3179 = vpack.c.b16 %v3168, %v3167
        %v3180 = vpack.c.b16 %v3170, %v3169
        %v3181 = vpack.c.b16 %v3172, %v3171
        %v3182 = vpack.c.b16 %v3174, %v3173
        %3191 = vmatpush.bf16.msra.mxu0 %v3182
        %3192 = vmatpush.bf16.msra.mxu0 %v3181
        %3193 = vmatpush.bf16.msra.mxu0 %v3180
        %3194 = vmatpush.bf16.msra.mxu0 %v3179
        %3195 = vmatpush.bf16.msra.mxu0 %v3178
        %3196 = vmatpush.bf16.msra.mxu0 %v3177
        %3197 = vmatpush.bf16.msra.mxu0 %v3176
        %3198 = vmatpush.bf16.msra.mxu0 %v3175
        %3199 = vmatmul.bf16.gmra.mxu0 %v3122
        %v3200 = vpop.f32.mrf.mxu0
        %v3201 = vadd.f32 0.0, %v3200
        %v3202 = vpop.f32.mrf.mxu0
        %v3203 = vadd.f32 0.0, %v3202
        %3204 = vmatmul.bf16.gmra.mxu0 %v3123
        %v3205 = vpop.f32.mrf.mxu0
        %v3206 = vadd.f32 0.0, %v3205
        %v3207 = vpop.f32.mrf.mxu0
        %v3208 = vadd.f32 0.0, %v3207
        %3209 = vmatmul.bf16.gmra.mxu0 %v3124
        %v3210 = vpop.f32.mrf.mxu0
        %v3211 = vadd.f32 0.0, %v3210
        %v3212 = vpop.f32.mrf.mxu0
        %v3213 = vadd.f32 0.0, %v3212
        %3214 = vmatmul.bf16.gmra.mxu0 %v3125
        %v3215 = vpop.f32.mrf.mxu0
        %v3216 = vadd.f32 0.0, %v3215
        %v3217 = vpop.f32.mrf.mxu0
        %v3218 = vadd.f32 0.0, %v3217
        %3219 = vdwg.mxu0
        %v3220 = vadd.f32 %v3095, %v3201
        %v3221 = vadd.f32 %v3097, %v3203
        %v3222 = vadd.f32 %v3100, %v3206
        %v3223 = vadd.f32 %v3102, %v3208
        %v3224 = vadd.f32 %v3105, %v3211
        %v3225 = vadd.f32 %v3107, %v3213
        %v3226 = vadd.f32 %v3110, %v3216
        %v3227 = vadd.f32 %v3112, %v3218
        %v3228 = vld [vmem:[%s2894] sm:$0xff]
        %v3229 = vld [vmem:[%s2894 + $0x10] sm:$0xff]
        %v3230 = vld [vmem:[%s2894 + $0x20] sm:$0xff]
        %v3231 = vld [vmem:[%s2894 + $0x30] sm:$0xff]
        %v3232 = vld [vmem:[%s2894 + $0x40] sm:$0xff]
        %v3233 = vld [vmem:[%s2894 + $0x50] sm:$0xff]
        %v3234 = vld [vmem:[%s2894 + $0x60] sm:$0xff]
        %v3235 = vld [vmem:[%s2894 + $0x70] sm:$0xff]
        %v3236 = vpack.c.bf16 %v3229, %v3228
        %v3237 = vpack.c.bf16 %v3231, %v3230
        %v3238 = vpack.c.bf16 %v3233, %v3232
        %v3239 = vpack.c.bf16 %v3235, %v3234
        %s3240 = scalar_lea.vmem %s4, 192
        %v3241 = vld [vmem:[%s3240] sm:$0xf]
        %v3242 = vld [vmem:[%s3240 + $0x4] sm:$0xf]
        %v3243 = vld [vmem:[%s3240 + $0x8] sm:$0xf]
        %v3244 = vld [vmem:[%s3240 + $0xc] sm:$0xf]
        %v3245 = vld [vmem:[%s3240 + $0x10] sm:$0xf]
        %v3246 = vld [vmem:[%s3240 + $0x14] sm:$0xf]
        %v3247 = vld [vmem:[%s3240 + $0x18] sm:$0xf]
        %v3248 = vld [vmem:[%s3240 + $0x1c] sm:$0xf]
        %v3249 = vld [vmem:[%s3240 + $0x20] sm:$0xf]
        %v3250 = vld [vmem:[%s3240 + $0x24] sm:$0xf]
        %v3251 = vld [vmem:[%s3240 + $0x28] sm:$0xf]
        %v3252 = vld [vmem:[%s3240 + $0x2c] sm:$0xf]
        %v3253 = vld [vmem:[%s3240 + $0x30] sm:$0xf]
        %v3254 = vld [vmem:[%s3240 + $0x34] sm:$0xf]
        %v3255 = vld [vmem:[%s3240 + $0x38] sm:$0xf]
        %v3256 = vld [vmem:[%s3240 + $0x3c] sm:$0xf]
        %v3273 = vunpack.c.l.b16 %v3241
        %v3274 = vunpack.c.l.b16 %v3242
        %v3275 = vunpack.c.l.b16 %v3243
        %v3276 = vunpack.c.l.b16 %v3244
        %v3277 = vunpack.c.l.b16 %v3245
        %v3278 = vunpack.c.l.b16 %v3246
        %v3279 = vunpack.c.l.b16 %v3247
        %v3280 = vunpack.c.l.b16 %v3248
        %v3281 = vunpack.c.l.b16 %v3249
        %v3282 = vunpack.c.l.b16 %v3250
        %v3283 = vunpack.c.l.b16 %v3251
        %v3284 = vunpack.c.l.b16 %v3252
        %v3285 = vunpack.c.l.b16 %v3253
        %v3286 = vunpack.c.l.b16 %v3254
        %v3287 = vunpack.c.l.b16 %v3255
        %v3288 = vunpack.c.l.b16 %v3256
        %v3289 = vpack.c.b16 %v3274, %v3273
        %v3290 = vpack.c.b16 %v3276, %v3275
        %v3291 = vpack.c.b16 %v3278, %v3277
        %v3292 = vpack.c.b16 %v3280, %v3279
        %v3293 = vpack.c.b16 %v3282, %v3281
        %v3294 = vpack.c.b16 %v3284, %v3283
        %v3295 = vpack.c.b16 %v3286, %v3285
        %v3296 = vpack.c.b16 %v3288, %v3287
        %3305 = vmatpush.bf16.msra.mxu0 %v3296
        %3306 = vmatpush.bf16.msra.mxu0 %v3295
        %3307 = vmatpush.bf16.msra.mxu0 %v3294
        %3308 = vmatpush.bf16.msra.mxu0 %v3293
        %3309 = vmatpush.bf16.msra.mxu0 %v3292
        %3310 = vmatpush.bf16.msra.mxu0 %v3291
        %3311 = vmatpush.bf16.msra.mxu0 %v3290
        %3312 = vmatpush.bf16.msra.mxu0 %v3289
        %3313 = vmatmul.bf16.gmra.mxu0 %v3236
        %v3314 = vpop.f32.mrf.mxu0
        %v3315 = vadd.f32 0.0, %v3314
        %v3316 = vpop.f32.mrf.mxu0
        %v3317 = vadd.f32 0.0, %v3316
        %3318 = vmatmul.bf16.gmra.mxu0 %v3237
        %v3319 = vpop.f32.mrf.mxu0
        %v3320 = vadd.f32 0.0, %v3319
        %v3321 = vpop.f32.mrf.mxu0
        %v3322 = vadd.f32 0.0, %v3321
        %3323 = vmatmul.bf16.gmra.mxu0 %v3238
        %v3324 = vpop.f32.mrf.mxu0
        %v3325 = vadd.f32 0.0, %v3324
        %v3326 = vpop.f32.mrf.mxu0
        %v3327 = vadd.f32 0.0, %v3326
        %3328 = vmatmul.bf16.gmra.mxu0 %v3239
        %v3329 = vpop.f32.mrf.mxu0
        %v3330 = vadd.f32 0.0, %v3329
        %v3331 = vpop.f32.mrf.mxu0
        %v3332 = vadd.f32 0.0, %v3331
        %3333 = vdwg.mxu0
        %v3334 = vadd.f32 %v3220, %v3315
        %v3335 = vadd.f32 %v3221, %v3317
        %v3336 = vadd.f32 %v3222, %v3320
        %v3337 = vadd.f32 %v3223, %v3322
        %v3338 = vadd.f32 %v3224, %v3325
        %v3339 = vadd.f32 %v3225, %v3327
        %v3340 = vadd.f32 %v3226, %v3330
        %v3341 = vadd.f32 %v3227, %v3332
        %v3342 = vld [vmem:[%s2894 + $0x1] sm:$0xff]
        %v3343 = vld [vmem:[%s2894 + $0x11] sm:$0xff]
        %v3344 = vld [vmem:[%s2894 + $0x21] sm:$0xff]
        %v3345 = vld [vmem:[%s2894 + $0x31] sm:$0xff]
        %v3346 = vld [vmem:[%s2894 + $0x41] sm:$0xff]
        %v3347 = vld [vmem:[%s2894 + $0x51] sm:$0xff]
        %v3348 = vld [vmem:[%s2894 + $0x61] sm:$0xff]
        %v3349 = vld [vmem:[%s2894 + $0x71] sm:$0xff]
        %v3350 = vpack.c.bf16 %v3343, %v3342
        %v3351 = vpack.c.bf16 %v3345, %v3344
        %v3352 = vpack.c.bf16 %v3347, %v3346
        %v3353 = vpack.c.bf16 %v3349, %v3348
        %s3354 = scalar_lea.vmem %s4, 256
        %v3355 = vld [vmem:[%s3354] sm:$0xf]
        %v3356 = vld [vmem:[%s3354 + $0x4] sm:$0xf]
        %v3357 = vld [vmem:[%s3354 + $0x8] sm:$0xf]
        %v3358 = vld [vmem:[%s3354 + $0xc] sm:$0xf]
        %v3359 = vld [vmem:[%s3354 + $0x10] sm:$0xf]
        %v3360 = vld [vmem:[%s3354 + $0x14] sm:$0xf]
        %v3361 = vld [vmem:[%s3354 + $0x18] sm:$0xf]
        %v3362 = vld [vmem:[%s3354 + $0x1c] sm:$0xf]
        %v3363 = vld [vmem:[%s3354 + $0x20] sm:$0xf]
        %v3364 = vld [vmem:[%s3354 + $0x24] sm:$0xf]
        %v3365 = vld [vmem:[%s3354 + $0x28] sm:$0xf]
        %v3366 = vld [vmem:[%s3354 + $0x2c] sm:$0xf]
        %v3367 = vld [vmem:[%s3354 + $0x30] sm:$0xf]
        %v3368 = vld [vmem:[%s3354 + $0x34] sm:$0xf]
        %v3369 = vld [vmem:[%s3354 + $0x38] sm:$0xf]
        %v3370 = vld [vmem:[%s3354 + $0x3c] sm:$0xf]
        %v3387 = vunpack.c.l.b16 %v3355
        %v3388 = vunpack.c.l.b16 %v3356
        %v3389 = vunpack.c.l.b16 %v3357
        %v3390 = vunpack.c.l.b16 %v3358
        %v3391 = vunpack.c.l.b16 %v3359
        %v3392 = vunpack.c.l.b16 %v3360
        %v3393 = vunpack.c.l.b16 %v3361
        %v3394 = vunpack.c.l.b16 %v3362
        %v3395 = vunpack.c.l.b16 %v3363
        %v3396 = vunpack.c.l.b16 %v3364
        %v3397 = vunpack.c.l.b16 %v3365
        %v3398 = vunpack.c.l.b16 %v3366
        %v3399 = vunpack.c.l.b16 %v3367
        %v3400 = vunpack.c.l.b16 %v3368
        %v3401 = vunpack.c.l.b16 %v3369
        %v3402 = vunpack.c.l.b16 %v3370
        %v3403 = vpack.c.b16 %v3388, %v3387
        %v3404 = vpack.c.b16 %v3390, %v3389
        %v3405 = vpack.c.b16 %v3392, %v3391
        %v3406 = vpack.c.b16 %v3394, %v3393
        %v3407 = vpack.c.b16 %v3396, %v3395
        %v3408 = vpack.c.b16 %v3398, %v3397
        %v3409 = vpack.c.b16 %v3400, %v3399
        %v3410 = vpack.c.b16 %v3402, %v3401
        %3419 = vmatpush.bf16.msra.mxu0 %v3410
        %3420 = vmatpush.bf16.msra.mxu0 %v3409
        %3421 = vmatpush.bf16.msra.mxu0 %v3408
        %3422 = vmatpush.bf16.msra.mxu0 %v3407
        %3423 = vmatpush.bf16.msra.mxu0 %v3406
        %3424 = vmatpush.bf16.msra.mxu0 %v3405
        %3425 = vmatpush.bf16.msra.mxu0 %v3404
        %3426 = vmatpush.bf16.msra.mxu0 %v3403
        %3427 = vmatmul.bf16.gmra.mxu0 %v3350
        %v3428 = vpop.f32.mrf.mxu0
        %v3429 = vadd.f32 0.0, %v3428
        %v3430 = vpop.f32.mrf.mxu0
        %v3431 = vadd.f32 0.0, %v3430
        %3432 = vmatmul.bf16.gmra.mxu0 %v3351
        %v3433 = vpop.f32.mrf.mxu0
        %v3434 = vadd.f32 0.0, %v3433
        %v3435 = vpop.f32.mrf.mxu0
        %v3436 = vadd.f32 0.0, %v3435
        %3437 = vmatmul.bf16.gmra.mxu0 %v3352
        %v3438 = vpop.f32.mrf.mxu0
        %v3439 = vadd.f32 0.0, %v3438
        %v3440 = vpop.f32.mrf.mxu0
        %v3441 = vadd.f32 0.0, %v3440
        %3442 = vmatmul.bf16.gmra.mxu0 %v3353
        %v3443 = vpop.f32.mrf.mxu0
        %v3444 = vadd.f32 0.0, %v3443
        %v3445 = vpop.f32.mrf.mxu0
        %v3446 = vadd.f32 0.0, %v3445
        %3447 = vdwg.mxu0
        %v3448 = vadd.f32 %v3334, %v3429
        %v3449 = vadd.f32 %v3335, %v3431
        %v3450 = vadd.f32 %v3336, %v3434
        %v3451 = vadd.f32 %v3337, %v3436
        %v3452 = vadd.f32 %v3338, %v3439
        %v3453 = vadd.f32 %v3339, %v3441
        %v3454 = vadd.f32 %v3340, %v3444
        %v3455 = vadd.f32 %v3341, %v3446
        %v3456 = vld [vmem:[%s2894 + $0x2] sm:$0xff]
        %v3457 = vld [vmem:[%s2894 + $0x12] sm:$0xff]
        %v3458 = vld [vmem:[%s2894 + $0x22] sm:$0xff]
        %v3459 = vld [vmem:[%s2894 + $0x32] sm:$0xff]
        %v3460 = vld [vmem:[%s2894 + $0x42] sm:$0xff]
        %v3461 = vld [vmem:[%s2894 + $0x52] sm:$0xff]
        %v3462 = vld [vmem:[%s2894 + $0x62] sm:$0xff]
        %v3463 = vld [vmem:[%s2894 + $0x72] sm:$0xff]
        %v3464 = vpack.c.bf16 %v3457, %v3456
        %v3465 = vpack.c.bf16 %v3459, %v3458
        %v3466 = vpack.c.bf16 %v3461, %v3460
        %v3467 = vpack.c.bf16 %v3463, %v3462
        %s3468 = scalar_lea.vmem %s4, 320
        %v3469 = vld [vmem:[%s3468] sm:$0xf]
        %v3470 = vld [vmem:[%s3468 + $0x4] sm:$0xf]
        %v3471 = vld [vmem:[%s3468 + $0x8] sm:$0xf]
        %v3472 = vld [vmem:[%s3468 + $0xc] sm:$0xf]
        %v3473 = vld [vmem:[%s3468 + $0x10] sm:$0xf]
        %v3474 = vld [vmem:[%s3468 + $0x14] sm:$0xf]
        %v3475 = vld [vmem:[%s3468 + $0x18] sm:$0xf]
        %v3476 = vld [vmem:[%s3468 + $0x1c] sm:$0xf]
        %v3477 = vld [vmem:[%s3468 + $0x20] sm:$0xf]
        %v3478 = vld [vmem:[%s3468 + $0x24] sm:$0xf]
        %v3479 = vld [vmem:[%s3468 + $0x28] sm:$0xf]
        %v3480 = vld [vmem:[%s3468 + $0x2c] sm:$0xf]
        %v3481 = vld [vmem:[%s3468 + $0x30] sm:$0xf]
        %v3482 = vld [vmem:[%s3468 + $0x34] sm:$0xf]
        %v3483 = vld [vmem:[%s3468 + $0x38] sm:$0xf]
        %v3484 = vld [vmem:[%s3468 + $0x3c] sm:$0xf]
        %v3501 = vunpack.c.l.b16 %v3469
        %v3502 = vunpack.c.l.b16 %v3470
        %v3503 = vunpack.c.l.b16 %v3471
        %v3504 = vunpack.c.l.b16 %v3472
        %v3505 = vunpack.c.l.b16 %v3473
        %v3506 = vunpack.c.l.b16 %v3474
        %v3507 = vunpack.c.l.b16 %v3475
        %v3508 = vunpack.c.l.b16 %v3476
        %v3509 = vunpack.c.l.b16 %v3477
        %v3510 = vunpack.c.l.b16 %v3478
        %v3511 = vunpack.c.l.b16 %v3479
        %v3512 = vunpack.c.l.b16 %v3480
        %v3513 = vunpack.c.l.b16 %v3481
        %v3514 = vunpack.c.l.b16 %v3482
        %v3515 = vunpack.c.l.b16 %v3483
        %v3516 = vunpack.c.l.b16 %v3484
        %v3517 = vpack.c.b16 %v3502, %v3501
        %v3518 = vpack.c.b16 %v3504, %v3503
        %v3519 = vpack.c.b16 %v3506, %v3505
        %v3520 = vpack.c.b16 %v3508, %v3507
        %v3521 = vpack.c.b16 %v3510, %v3509
        %v3522 = vpack.c.b16 %v3512, %v3511
        %v3523 = vpack.c.b16 %v3514, %v3513
        %v3524 = vpack.c.b16 %v3516, %v3515
        %3533 = vmatpush.bf16.msra.mxu0 %v3524
        %3534 = vmatpush.bf16.msra.mxu0 %v3523
        %3535 = vmatpush.bf16.msra.mxu0 %v3522
        %3536 = vmatpush.bf16.msra.mxu0 %v3521
        %3537 = vmatpush.bf16.msra.mxu0 %v3520
        %3538 = vmatpush.bf16.msra.mxu0 %v3519
        %3539 = vmatpush.bf16.msra.mxu0 %v3518
        %3540 = vmatpush.bf16.msra.mxu0 %v3517
        %3541 = vmatmul.bf16.gmra.mxu0 %v3464
        %v3542 = vpop.f32.mrf.mxu0
        %v3543 = vadd.f32 0.0, %v3542
        %v3544 = vpop.f32.mrf.mxu0
        %v3545 = vadd.f32 0.0, %v3544
        %3546 = vmatmul.bf16.gmra.mxu0 %v3465
        %v3547 = vpop.f32.mrf.mxu0
        %v3548 = vadd.f32 0.0, %v3547
        %v3549 = vpop.f32.mrf.mxu0
        %v3550 = vadd.f32 0.0, %v3549
        %3551 = vmatmul.bf16.gmra.mxu0 %v3466
        %v3552 = vpop.f32.mrf.mxu0
        %v3553 = vadd.f32 0.0, %v3552
        %v3554 = vpop.f32.mrf.mxu0
        %v3555 = vadd.f32 0.0, %v3554
        %3556 = vmatmul.bf16.gmra.mxu0 %v3467
        %v3557 = vpop.f32.mrf.mxu0
        %v3558 = vadd.f32 0.0, %v3557
        %v3559 = vpop.f32.mrf.mxu0
        %v3560 = vadd.f32 0.0, %v3559
        %3561 = vdwg.mxu0
        %v3562 = vadd.f32 %v3448, %v3543
        %v3563 = vadd.f32 %v3449, %v3545
        %v3564 = vadd.f32 %v3450, %v3548
        %v3565 = vadd.f32 %v3451, %v3550
        %v3566 = vadd.f32 %v3452, %v3553
        %v3567 = vadd.f32 %v3453, %v3555
        %v3568 = vadd.f32 %v3454, %v3558
        %v3569 = vadd.f32 %v3455, %v3560
        %s3570 = scalar_lea.vmem [#allocation3], 32
        %v3571 = vld [vmem:[%s3570] sm:$0xff]
        %v3572 = vld [vmem:[%s3570 + $0x10] sm:$0xff]
        %v3573 = vld [vmem:[%s3570 + $0x20] sm:$0xff]
        %v3574 = vld [vmem:[%s3570 + $0x30] sm:$0xff]
        %v3575 = vld [vmem:[%s3570 + $0x40] sm:$0xff]
        %v3576 = vld [vmem:[%s3570 + $0x50] sm:$0xff]
        %v3577 = vld [vmem:[%s3570 + $0x60] sm:$0xff]
        %v3578 = vld [vmem:[%s3570 + $0x70] sm:$0xff]
        %v3579 = vpack.c.bf16 %v3572, %v3571
        %v3580 = vpack.c.bf16 %v3574, %v3573
        %v3581 = vpack.c.bf16 %v3576, %v3575
        %v3582 = vpack.c.bf16 %v3578, %v3577
        %s3583 = scalar_lea.vmem %s4, 384
        %v3584 = vld [vmem:[%s3583] sm:$0xf]
        %v3585 = vld [vmem:[%s3583 + $0x4] sm:$0xf]
        %v3586 = vld [vmem:[%s3583 + $0x8] sm:$0xf]
        %v3587 = vld [vmem:[%s3583 + $0xc] sm:$0xf]
        %v3588 = vld [vmem:[%s3583 + $0x10] sm:$0xf]
        %v3589 = vld [vmem:[%s3583 + $0x14] sm:$0xf]
        %v3590 = vld [vmem:[%s3583 + $0x18] sm:$0xf]
        %v3591 = vld [vmem:[%s3583 + $0x1c] sm:$0xf]
        %v3592 = vld [vmem:[%s3583 + $0x20] sm:$0xf]
        %v3593 = vld [vmem:[%s3583 + $0x24] sm:$0xf]
        %v3594 = vld [vmem:[%s3583 + $0x28] sm:$0xf]
        %v3595 = vld [vmem:[%s3583 + $0x2c] sm:$0xf]
        %v3596 = vld [vmem:[%s3583 + $0x30] sm:$0xf]
        %v3597 = vld [vmem:[%s3583 + $0x34] sm:$0xf]
        %v3598 = vld [vmem:[%s3583 + $0x38] sm:$0xf]
        %v3599 = vld [vmem:[%s3583 + $0x3c] sm:$0xf]
        %v3616 = vunpack.c.l.b16 %v3584
        %v3617 = vunpack.c.l.b16 %v3585
        %v3618 = vunpack.c.l.b16 %v3586
        %v3619 = vunpack.c.l.b16 %v3587
        %v3620 = vunpack.c.l.b16 %v3588
        %v3621 = vunpack.c.l.b16 %v3589
        %v3622 = vunpack.c.l.b16 %v3590
        %v3623 = vunpack.c.l.b16 %v3591
        %v3624 = vunpack.c.l.b16 %v3592
        %v3625 = vunpack.c.l.b16 %v3593
        %v3626 = vunpack.c.l.b16 %v3594
        %v3627 = vunpack.c.l.b16 %v3595
        %v3628 = vunpack.c.l.b16 %v3596
        %v3629 = vunpack.c.l.b16 %v3597
        %v3630 = vunpack.c.l.b16 %v3598
        %v3631 = vunpack.c.l.b16 %v3599
        %v3632 = vpack.c.b16 %v3617, %v3616
        %v3633 = vpack.c.b16 %v3619, %v3618
        %v3634 = vpack.c.b16 %v3621, %v3620
        %v3635 = vpack.c.b16 %v3623, %v3622
        %v3636 = vpack.c.b16 %v3625, %v3624
        %v3637 = vpack.c.b16 %v3627, %v3626
        %v3638 = vpack.c.b16 %v3629, %v3628
        %v3639 = vpack.c.b16 %v3631, %v3630
        %3648 = vmatpush.bf16.msra.mxu0 %v3639
        %3649 = vmatpush.bf16.msra.mxu0 %v3638
        %3650 = vmatpush.bf16.msra.mxu0 %v3637
        %3651 = vmatpush.bf16.msra.mxu0 %v3636
        %3652 = vmatpush.bf16.msra.mxu0 %v3635
        %3653 = vmatpush.bf16.msra.mxu0 %v3634
        %3654 = vmatpush.bf16.msra.mxu0 %v3633
        %3655 = vmatpush.bf16.msra.mxu0 %v3632
        %3656 = vmatmul.bf16.gmra.mxu0 %v3579
        %v3657 = vpop.f32.mrf.mxu0
        %v3658 = vadd.f32 0.0, %v3657
        %v3659 = vpop.f32.mrf.mxu0
        %v3660 = vadd.f32 0.0, %v3659
        %3661 = vmatmul.bf16.gmra.mxu0 %v3580
        %v3662 = vpop.f32.mrf.mxu0
        %v3663 = vadd.f32 0.0, %v3662
        %v3664 = vpop.f32.mrf.mxu0
        %v3665 = vadd.f32 0.0, %v3664
        %3666 = vmatmul.bf16.gmra.mxu0 %v3581
        %v3667 = vpop.f32.mrf.mxu0
        %v3668 = vadd.f32 0.0, %v3667
        %v3669 = vpop.f32.mrf.mxu0
        %v3670 = vadd.f32 0.0, %v3669
        %3671 = vmatmul.bf16.gmra.mxu0 %v3582
        %v3672 = vpop.f32.mrf.mxu0
        %v3673 = vadd.f32 0.0, %v3672
        %v3674 = vpop.f32.mrf.mxu0
        %v3675 = vadd.f32 0.0, %v3674
        %3676 = vdwg.mxu0
        %v3677 = vadd.f32 %v3562, %v3658
        %v3678 = vadd.f32 %v3563, %v3660
        %v3679 = vadd.f32 %v3564, %v3663
        %v3680 = vadd.f32 %v3565, %v3665
        %v3681 = vadd.f32 %v3566, %v3668
        %v3682 = vadd.f32 %v3567, %v3670
        %v3683 = vadd.f32 %v3568, %v3673
        %v3684 = vadd.f32 %v3569, %v3675
        %v3685 = vld [vmem:[%s3570 + $0x1] sm:$0xff]
        %v3686 = vld [vmem:[%s3570 + $0x11] sm:$0xff]
        %v3687 = vld [vmem:[%s3570 + $0x21] sm:$0xff]
        %v3688 = vld [vmem:[%s3570 + $0x31] sm:$0xff]
        %v3689 = vld [vmem:[%s3570 + $0x41] sm:$0xff]
        %v3690 = vld [vmem:[%s3570 + $0x51] sm:$0xff]
        %v3691 = vld [vmem:[%s3570 + $0x61] sm:$0xff]
        %v3692 = vld [vmem:[%s3570 + $0x71] sm:$0xff]
        %v3693 = vpack.c.bf16 %v3686, %v3685
        %v3694 = vpack.c.bf16 %v3688, %v3687
        %v3695 = vpack.c.bf16 %v3690, %v3689
        %v3696 = vpack.c.bf16 %v3692, %v3691
        %s3697 = scalar_lea.vmem %s4, 448
        %v3698 = vld [vmem:[%s3697] sm:$0xf]
        %v3699 = vld [vmem:[%s3697 + $0x4] sm:$0xf]
        %v3700 = vld [vmem:[%s3697 + $0x8] sm:$0xf]
        %v3701 = vld [vmem:[%s3697 + $0xc] sm:$0xf]
        %v3702 = vld [vmem:[%s3697 + $0x10] sm:$0xf]
        %v3703 = vld [vmem:[%s3697 + $0x14] sm:$0xf]
        %v3704 = vld [vmem:[%s3697 + $0x18] sm:$0xf]
        %v3705 = vld [vmem:[%s3697 + $0x1c] sm:$0xf]
        %v3706 = vld [vmem:[%s3697 + $0x20] sm:$0xf]
        %v3707 = vld [vmem:[%s3697 + $0x24] sm:$0xf]
        %v3708 = vld [vmem:[%s3697 + $0x28] sm:$0xf]
        %v3709 = vld [vmem:[%s3697 + $0x2c] sm:$0xf]
        %v3710 = vld [vmem:[%s3697 + $0x30] sm:$0xf]
        %v3711 = vld [vmem:[%s3697 + $0x34] sm:$0xf]
        %v3712 = vld [vmem:[%s3697 + $0x38] sm:$0xf]
        %v3713 = vld [vmem:[%s3697 + $0x3c] sm:$0xf]
        %v3730 = vunpack.c.l.b16 %v3698
        %v3731 = vunpack.c.l.b16 %v3699
        %v3732 = vunpack.c.l.b16 %v3700
        %v3733 = vunpack.c.l.b16 %v3701
        %v3734 = vunpack.c.l.b16 %v3702
        %v3735 = vunpack.c.l.b16 %v3703
        %v3736 = vunpack.c.l.b16 %v3704
        %v3737 = vunpack.c.l.b16 %v3705
        %v3738 = vunpack.c.l.b16 %v3706
        %v3739 = vunpack.c.l.b16 %v3707
        %v3740 = vunpack.c.l.b16 %v3708
        %v3741 = vunpack.c.l.b16 %v3709
        %v3742 = vunpack.c.l.b16 %v3710
        %v3743 = vunpack.c.l.b16 %v3711
        %v3744 = vunpack.c.l.b16 %v3712
        %v3745 = vunpack.c.l.b16 %v3713
        %v3746 = vpack.c.b16 %v3731, %v3730
        %v3747 = vpack.c.b16 %v3733, %v3732
        %v3748 = vpack.c.b16 %v3735, %v3734
        %v3749 = vpack.c.b16 %v3737, %v3736
        %v3750 = vpack.c.b16 %v3739, %v3738
        %v3751 = vpack.c.b16 %v3741, %v3740
        %v3752 = vpack.c.b16 %v3743, %v3742
        %v3753 = vpack.c.b16 %v3745, %v3744
        %3762 = vmatpush.bf16.msra.mxu0 %v3753
        %3763 = vmatpush.bf16.msra.mxu0 %v3752
        %3764 = vmatpush.bf16.msra.mxu0 %v3751
        %3765 = vmatpush.bf16.msra.mxu0 %v3750
        %3766 = vmatpush.bf16.msra.mxu0 %v3749
        %3767 = vmatpush.bf16.msra.mxu0 %v3748
        %3768 = vmatpush.bf16.msra.mxu0 %v3747
        %3769 = vmatpush.bf16.msra.mxu0 %v3746
        %3770 = vmatmul.bf16.gmra.mxu0 %v3693
        %v3771 = vpop.f32.mrf.mxu0
        %v3772 = vadd.f32 0.0, %v3771
        %v3773 = vpop.f32.mrf.mxu0
        %v3774 = vadd.f32 0.0, %v3773
        %3775 = vmatmul.bf16.gmra.mxu0 %v3694
        %v3776 = vpop.f32.mrf.mxu0
        %v3777 = vadd.f32 0.0, %v3776
        %v3778 = vpop.f32.mrf.mxu0
        %v3779 = vadd.f32 0.0, %v3778
        %3780 = vmatmul.bf16.gmra.mxu0 %v3695
        %v3781 = vpop.f32.mrf.mxu0
        %v3782 = vadd.f32 0.0, %v3781
        %v3783 = vpop.f32.mrf.mxu0
        %v3784 = vadd.f32 0.0, %v3783
        %3785 = vmatmul.bf16.gmra.mxu0 %v3696
        %v3786 = vpop.f32.mrf.mxu0
        %v3787 = vadd.f32 0.0, %v3786
        %v3788 = vpop.f32.mrf.mxu0
        %v3789 = vadd.f32 0.0, %v3788
        %3790 = vdwg.mxu0
        %v3791 = vadd.f32 %v3677, %v3772
        %v3792 = vadd.f32 %v3678, %v3774
        %v3793 = vadd.f32 %v3679, %v3777
        %v3794 = vadd.f32 %v3680, %v3779
        %v3795 = vadd.f32 %v3681, %v3782
        %v3796 = vadd.f32 %v3682, %v3784
        %v3797 = vadd.f32 %v3683, %v3787
        %v3798 = vadd.f32 %v3684, %v3789
        %v3799 = vld [vmem:[%s3570 + $0x2] sm:$0xff]
        %v3800 = vld [vmem:[%s3570 + $0x12] sm:$0xff]
        %v3801 = vld [vmem:[%s3570 + $0x22] sm:$0xff]
        %v3802 = vld [vmem:[%s3570 + $0x32] sm:$0xff]
        %v3803 = vld [vmem:[%s3570 + $0x42] sm:$0xff]
        %v3804 = vld [vmem:[%s3570 + $0x52] sm:$0xff]
        %v3805 = vld [vmem:[%s3570 + $0x62] sm:$0xff]
        %v3806 = vld [vmem:[%s3570 + $0x72] sm:$0xff]
        %v3807 = vpack.c.bf16 %v3800, %v3799
        %v3808 = vpack.c.bf16 %v3802, %v3801
        %v3809 = vpack.c.bf16 %v3804, %v3803
        %v3810 = vpack.c.bf16 %v3806, %v3805
        %s3811 = scalar_lea.vmem %s4, 512
        %v3812 = vld [vmem:[%s3811] sm:$0xf]
        %v3813 = vld [vmem:[%s3811 + $0x4] sm:$0xf]
        %v3814 = vld [vmem:[%s3811 + $0x8] sm:$0xf]
        %v3815 = vld [vmem:[%s3811 + $0xc] sm:$0xf]
        %v3816 = vld [vmem:[%s3811 + $0x10] sm:$0xf]
        %v3817 = vld [vmem:[%s3811 + $0x14] sm:$0xf]
        %v3818 = vld [vmem:[%s3811 + $0x18] sm:$0xf]
        %v3819 = vld [vmem:[%s3811 + $0x1c] sm:$0xf]
        %v3820 = vld [vmem:[%s3811 + $0x20] sm:$0xf]
        %v3821 = vld [vmem:[%s3811 + $0x24] sm:$0xf]
        %v3822 = vld [vmem:[%s3811 + $0x28] sm:$0xf]
        %v3823 = vld [vmem:[%s3811 + $0x2c] sm:$0xf]
        %v3824 = vld [vmem:[%s3811 + $0x30] sm:$0xf]
        %v3825 = vld [vmem:[%s3811 + $0x34] sm:$0xf]
        %v3826 = vld [vmem:[%s3811 + $0x38] sm:$0xf]
        %v3827 = vld [vmem:[%s3811 + $0x3c] sm:$0xf]
        %v3844 = vunpack.c.l.b16 %v3812
        %v3845 = vunpack.c.l.b16 %v3813
        %v3846 = vunpack.c.l.b16 %v3814
        %v3847 = vunpack.c.l.b16 %v3815
        %v3848 = vunpack.c.l.b16 %v3816
        %v3849 = vunpack.c.l.b16 %v3817
        %v3850 = vunpack.c.l.b16 %v3818
        %v3851 = vunpack.c.l.b16 %v3819
        %v3852 = vunpack.c.l.b16 %v3820
        %v3853 = vunpack.c.l.b16 %v3821
        %v3854 = vunpack.c.l.b16 %v3822
        %v3855 = vunpack.c.l.b16 %v3823
        %v3856 = vunpack.c.l.b16 %v3824
        %v3857 = vunpack.c.l.b16 %v3825
        %v3858 = vunpack.c.l.b16 %v3826
        %v3859 = vunpack.c.l.b16 %v3827
        %v3860 = vpack.c.b16 %v3845, %v3844
        %v3861 = vpack.c.b16 %v3847, %v3846
        %v3862 = vpack.c.b16 %v3849, %v3848
        %v3863 = vpack.c.b16 %v3851, %v3850
        %v3864 = vpack.c.b16 %v3853, %v3852
        %v3865 = vpack.c.b16 %v3855, %v3854
        %v3866 = vpack.c.b16 %v3857, %v3856
        %v3867 = vpack.c.b16 %v3859, %v3858
        %3876 = vmatpush.bf16.msra.mxu0 %v3867
        %3877 = vmatpush.bf16.msra.mxu0 %v3866
        %3878 = vmatpush.bf16.msra.mxu0 %v3865
        %3879 = vmatpush.bf16.msra.mxu0 %v3864
        %3880 = vmatpush.bf16.msra.mxu0 %v3863
        %3881 = vmatpush.bf16.msra.mxu0 %v3862
        %3882 = vmatpush.bf16.msra.mxu0 %v3861
        %3883 = vmatpush.bf16.msra.mxu0 %v3860
        %3884 = vmatmul.bf16.gmra.mxu0 %v3807
        %v3885 = vpop.f32.mrf.mxu0
        %v3886 = vadd.f32 0.0, %v3885
        %v3887 = vpop.f32.mrf.mxu0
        %v3888 = vadd.f32 0.0, %v3887
        %3889 = vmatmul.bf16.gmra.mxu0 %v3808
        %v3890 = vpop.f32.mrf.mxu0
        %v3891 = vadd.f32 0.0, %v3890
        %v3892 = vpop.f32.mrf.mxu0
        %v3893 = vadd.f32 0.0, %v3892
        %3894 = vmatmul.bf16.gmra.mxu0 %v3809
        %v3895 = vpop.f32.mrf.mxu0
        %v3896 = vadd.f32 0.0, %v3895
        %v3897 = vpop.f32.mrf.mxu0
        %v3898 = vadd.f32 0.0, %v3897
        %3899 = vmatmul.bf16.gmra.mxu0 %v3810
        %v3900 = vpop.f32.mrf.mxu0
        %v3901 = vadd.f32 0.0, %v3900
        %v3902 = vpop.f32.mrf.mxu0
        %v3903 = vadd.f32 0.0, %v3902
        %3904 = vdwg.mxu0
        %v3905 = vadd.f32 %v3791, %v3886
        %v3906 = vadd.f32 %v3792, %v3888
        %v3907 = vadd.f32 %v3793, %v3891
        %v3908 = vadd.f32 %v3794, %v3893
        %v3909 = vadd.f32 %v3795, %v3896
        %v3910 = vadd.f32 %v3796, %v3898
        %v3911 = vadd.f32 %v3797, %v3901
        %v3912 = vadd.f32 %v3798, %v3903
        %v3913 = vld [vmem:[%s5] sm:$0x1]
        %v3915 = vperm.slane %v3913, 0
        %v3917 = vadd.f32 %v3905, %v3915
        %v3918 = vadd.f32 %v3906, %v3915
        %v3919 = vadd.f32 %v3907, %v3915
        %v3920 = vadd.f32 %v3908, %v3915
        %v3921 = vadd.f32 %v3909, %v3915
        %v3922 = vadd.f32 %v3910, %v3915
        %v3923 = vadd.f32 %v3911, %v3915
        %v3924 = vadd.f32 %v3912, %v3915
        %v3925 = vmax.f32 %v3917, 0.0
        %v3926 = vmax.f32 %v3918, 0.0
        %v3927 = vmax.f32 %v3919, 0.0
        %v3928 = vmax.f32 %v3920, 0.0
        %v3929 = vmax.f32 %v3921, 0.0
        %v3930 = vmax.f32 %v3922, 0.0
        %v3931 = vmax.f32 %v3923, 0.0
        %v3932 = vmax.f32 %v3924, 0.0
        %v3933 = vld [vmem:[#allocation9] sm:$0xff]
        %v3934 = vld [vmem:[#allocation9 + $0x8] sm:$0xff]
        %v3935 = vld [vmem:[#allocation9 + $0x10] sm:$0xff]
        %v3936 = vld [vmem:[#allocation9 + $0x18] sm:$0xff]
        %v3937 = vld [vmem:[#allocation9 + $0x20] sm:$0xff]
        %v3938 = vld [vmem:[#allocation9 + $0x28] sm:$0xff]
        %v3939 = vld [vmem:[#allocation9 + $0x30] sm:$0xff]
        %v3940 = vld [vmem:[#allocation9 + $0x38] sm:$0xff]
        %vm3941 = vcmask 523264
        %v3943 = vsel %vm3941, %v3933, 0
        %v3946 = vsel %vm3941, %v3934, 0
        %v3949 = vsel %vm3941, %v3935, 0
        %v3952 = vsel %vm3941, %v3936, 0
        %v3955 = vsel %vm3941, %v3937, 0
        %v3958 = vsel %vm3941, %v3938, 0
        %v3961 = vsel %vm3941, %v3939, 0
        %v3964 = vsel %vm3941, %v3940, 0
        %3966 = vmatpush.msra.mxu0 0.0
        %3967 = vmatpush.msra.mxu0 0.0
        %3968 = vmatpush.msra.mxu0 0.0
        %3969 = vmatpush.msra.mxu0 0.0
        %3970 = vmatpush.msra.mxu0 0.0
        %3971 = vmatpush.msra.mxu0 0.0
        %3972 = vmatpush.msra.mxu0 0.0
        %3973 = vmatpush.msra.mxu0 0.0
        %3974 = vmatpush.msra.mxu0 %v3932
        %3975 = vmatpush.msra.mxu0 %v3931
        %3976 = vmatpush.msra.mxu0 %v3930
        %3977 = vmatpush.msra.mxu0 %v3929
        %3978 = vmatpush.msra.mxu0 %v3928
        %3979 = vmatpush.msra.mxu0 %v3927
        %3980 = vmatpush.msra.mxu0 %v3926
        %3981 = vmatpush.msra.mxu0 %v3925
        %3982 = vmatmul.f32.gmra.mxu0 %v3943
        %v3983 = vpop.f32.mrf.mxu0
        %v3984 = vadd.f32 0.0, %v3983
        %3985 = vmatmul.f32.gmra.mxu0 %v3946
        %v3986 = vpop.f32.mrf.mxu0
        %v3987 = vadd.f32 0.0, %v3986
        %3988 = vmatmul.f32.gmra.mxu0 %v3949
        %v3989 = vpop.f32.mrf.mxu0
        %v3990 = vadd.f32 0.0, %v3989
        %3991 = vmatmul.f32.gmra.mxu0 %v3952
        %v3992 = vpop.f32.mrf.mxu0
        %v3993 = vadd.f32 0.0, %v3992
        %3994 = vmatmul.f32.gmra.mxu0 %v3955
        %v3995 = vpop.f32.mrf.mxu0
        %v3996 = vadd.f32 0.0, %v3995
        %3997 = vmatmul.f32.gmra.mxu0 %v3958
        %v3998 = vpop.f32.mrf.mxu0
        %v3999 = vadd.f32 0.0, %v3998
        %4000 = vmatmul.f32.gmra.mxu0 %v3961
        %v4001 = vpop.f32.mrf.mxu0
        %v4002 = vadd.f32 0.0, %v4001
        %4003 = vmatmul.f32.gmra.mxu0 %v3964
        %v4004 = vpop.f32.mrf.mxu0
        %v4005 = vadd.f32 0.0, %v4004
        %4006 = vdwg.mxu0
        %v4007 = vmax.f32 %v3984, %v3990
        %v4008 = vmax.f32 %v3987, %v3993
        %v4009 = vmax.f32 %v3996, %v4002
        %v4010 = vmax.f32 %v3999, %v4005
        %v4011 = vmax.f32 %v4007, %v4009
        %v4012 = vmax.f32 %v4008, %v4010
        %4013 = vst [vmem:[#allocation4] sm:$0xff] %v4011
        %4014 = vst [vmem:[#allocation4 + $0x8] sm:$0xff] %v4012
        %v4015 = vld [vmem:[%s8] sm:$0x1]
        %v4016 = vld [vmem:[#allocation4] sm:$0x1]
        %v4017 = vpack.c.bf16 %v4016, %v4016
        %v4018 = vld [vmem:[%s7] sm:$0xf]
        %v4019 = vld [vmem:[%s7 + $0x4] sm:$0xf]
        %v4020 = vld [vmem:[%s7 + $0x8] sm:$0xf]
        %v4021 = vld [vmem:[%s7 + $0xc] sm:$0xf]
        %v4022 = vld [vmem:[%s7 + $0x10] sm:$0xf]
        %v4023 = vld [vmem:[%s7 + $0x14] sm:$0xf]
        %v4024 = vld [vmem:[%s7 + $0x18] sm:$0xf]
        %v4025 = vld [vmem:[%s7 + $0x1c] sm:$0xf]
        %v4026 = vld [vmem:[%s7 + $0x20] sm:$0xf]
        %v4027 = vld [vmem:[%s7 + $0x24] sm:$0xf]
        %v4028 = vld [vmem:[%s7 + $0x28] sm:$0xf]
        %v4029 = vld [vmem:[%s7 + $0x2c] sm:$0xf]
        %v4030 = vld [vmem:[%s7 + $0x30] sm:$0xf]
        %v4031 = vld [vmem:[%s7 + $0x34] sm:$0xf]
        %v4032 = vld [vmem:[%s7 + $0x38] sm:$0xf]
        %v4033 = vld [vmem:[%s7 + $0x3c] sm:$0xf]
        %v4050 = vunpack.c.l.b16 %v4018
        %v4051 = vunpack.c.l.b16 %v4019
        %v4052 = vunpack.c.l.b16 %v4020
        %v4053 = vunpack.c.l.b16 %v4021
        %v4054 = vunpack.c.l.b16 %v4022
        %v4055 = vunpack.c.l.b16 %v4023
        %v4056 = vunpack.c.l.b16 %v4024
        %v4057 = vunpack.c.l.b16 %v4025
        %v4058 = vunpack.c.l.b16 %v4026
        %v4059 = vunpack.c.l.b16 %v4027
        %v4060 = vunpack.c.l.b16 %v4028
        %v4061 = vunpack.c.l.b16 %v4029
        %v4062 = vunpack.c.l.b16 %v4030
        %v4063 = vunpack.c.l.b16 %v4031
        %v4064 = vunpack.c.l.b16 %v4032
        %v4065 = vunpack.c.l.b16 %v4033
        %v4066 = vpack.c.b16 %v4051, %v4050
        %v4067 = vpack.c.b16 %v4053, %v4052
        %v4068 = vpack.c.b16 %v4055, %v4054
        %v4069 = vpack.c.b16 %v4057, %v4056
        %v4070 = vpack.c.b16 %v4059, %v4058
        %v4071 = vpack.c.b16 %v4061, %v4060
        %v4072 = vpack.c.b16 %v4063, %v4062
        %v4073 = vpack.c.b16 %v4065, %v4064
        %4082 = vmatpush.bf16.msra.mxu0 %v4073
        %4083 = vmatpush.bf16.msra.mxu0 %v4072
        %4084 = vmatpush.bf16.msra.mxu0 %v4071
        %4085 = vmatpush.bf16.msra.mxu0 %v4070
        %4086 = vmatpush.bf16.msra.mxu0 %v4069
        %4087 = vmatpush.bf16.msra.mxu0 %v4068
        %4088 = vmatpush.bf16.msra.mxu0 %v4067
        %4089 = vmatpush.bf16.msra.mxu0 %v4066
        %4090 = vmatmul.bf16.gmra.mxu0 %v4017
        %v4091 = vpop.f32.mrf.mxu0
        %v4092 = vadd.f32 0.0, %v4091
        %v4093 = vpop.f32.mrf.mxu0
        %4094 = vdwg.mxu0
        %v4095 = vadd.f32 %v4015, %v4092
        %v4096 = vld [vmem:[#allocation4 + $0x1] sm:$0x1]
        %v4097 = vpack.c.bf16 %v4096, %v4096
        %s4098 = scalar_lea.vmem %s7, 64
        %v4099 = vld [vmem:[%s4098] sm:$0xf]
        %v4100 = vld [vmem:[%s4098 + $0x4] sm:$0xf]
        %v4101 = vld [vmem:[%s4098 + $0x8] sm:$0xf]
        %v4102 = vld [vmem:[%s4098 + $0xc] sm:$0xf]
        %v4103 = vld [vmem:[%s4098 + $0x10] sm:$0xf]
        %v4104 = vld [vmem:[%s4098 + $0x14] sm:$0xf]
        %v4105 = vld [vmem:[%s4098 + $0x18] sm:$0xf]
        %v4106 = vld [vmem:[%s4098 + $0x1c] sm:$0xf]
        %v4107 = vld [vmem:[%s4098 + $0x20] sm:$0xf]
        %v4108 = vld [vmem:[%s4098 + $0x24] sm:$0xf]
        %v4109 = vld [vmem:[%s4098 + $0x28] sm:$0xf]
        %v4110 = vld [vmem:[%s4098 + $0x2c] sm:$0xf]
        %v4111 = vld [vmem:[%s4098 + $0x30] sm:$0xf]
        %v4112 = vld [vmem:[%s4098 + $0x34] sm:$0xf]
        %v4113 = vld [vmem:[%s4098 + $0x38] sm:$0xf]
        %v4114 = vld [vmem:[%s4098 + $0x3c] sm:$0xf]
        %v4131 = vunpack.c.l.b16 %v4099
        %v4132 = vunpack.c.l.b16 %v4100
        %v4133 = vunpack.c.l.b16 %v4101
        %v4134 = vunpack.c.l.b16 %v4102
        %v4135 = vunpack.c.l.b16 %v4103
        %v4136 = vunpack.c.l.b16 %v4104
        %v4137 = vunpack.c.l.b16 %v4105
        %v4138 = vunpack.c.l.b16 %v4106
        %v4139 = vunpack.c.l.b16 %v4107
        %v4140 = vunpack.c.l.b16 %v4108
        %v4141 = vunpack.c.l.b16 %v4109
        %v4142 = vunpack.c.l.b16 %v4110
        %v4143 = vunpack.c.l.b16 %v4111
        %v4144 = vunpack.c.l.b16 %v4112
        %v4145 = vunpack.c.l.b16 %v4113
        %v4146 = vunpack.c.l.b16 %v4114
        %v4147 = vpack.c.b16 %v4132, %v4131
        %v4148 = vpack.c.b16 %v4134, %v4133
        %v4149 = vpack.c.b16 %v4136, %v4135
        %v4150 = vpack.c.b16 %v4138, %v4137
        %v4151 = vpack.c.b16 %v4140, %v4139
        %v4152 = vpack.c.b16 %v4142, %v4141
        %v4153 = vpack.c.b16 %v4144, %v4143
        %v4154 = vpack.c.b16 %v4146, %v4145
        %4163 = vmatpush.bf16.msra.mxu0 %v4154
        %4164 = vmatpush.bf16.msra.mxu0 %v4153
        %4165 = vmatpush.bf16.msra.mxu0 %v4152
        %4166 = vmatpush.bf16.msra.mxu0 %v4151
        %4167 = vmatpush.bf16.msra.mxu0 %v4150
        %4168 = vmatpush.bf16.msra.mxu0 %v4149
        %4169 = vmatpush.bf16.msra.mxu0 %v4148
        %4170 = vmatpush.bf16.msra.mxu0 %v4147
        %4171 = vmatmul.bf16.gmra.mxu0 %v4097
        %v4172 = vpop.f32.mrf.mxu0
        %v4173 = vadd.f32 0.0, %v4172
        %v4174 = vpop.f32.mrf.mxu0
        %4175 = vdwg.mxu0
        %v4176 = vadd.f32 %v4095, %v4173
        %v4177 = vld [vmem:[#allocation4 + $0x2] sm:$0x1]
        %v4178 = vpack.c.bf16 %v4177, %v4177
        %s4179 = scalar_lea.vmem %s7, 128
        %v4180 = vld [vmem:[%s4179] sm:$0xf]
        %v4181 = vld [vmem:[%s4179 + $0x4] sm:$0xf]
        %v4182 = vld [vmem:[%s4179 + $0x8] sm:$0xf]
        %v4183 = vld [vmem:[%s4179 + $0xc] sm:$0xf]
        %v4184 = vld [vmem:[%s4179 + $0x10] sm:$0xf]
        %v4185 = vld [vmem:[%s4179 + $0x14] sm:$0xf]
        %v4186 = vld [vmem:[%s4179 + $0x18] sm:$0xf]
        %v4187 = vld [vmem:[%s4179 + $0x1c] sm:$0xf]
        %v4188 = vld [vmem:[%s4179 + $0x20] sm:$0xf]
        %v4189 = vld [vmem:[%s4179 + $0x24] sm:$0xf]
        %v4190 = vld [vmem:[%s4179 + $0x28] sm:$0xf]
        %v4191 = vld [vmem:[%s4179 + $0x2c] sm:$0xf]
        %v4192 = vld [vmem:[%s4179 + $0x30] sm:$0xf]
        %v4193 = vld [vmem:[%s4179 + $0x34] sm:$0xf]
        %v4194 = vld [vmem:[%s4179 + $0x38] sm:$0xf]
        %v4195 = vld [vmem:[%s4179 + $0x3c] sm:$0xf]
        %v4212 = vunpack.c.l.b16 %v4180
        %v4213 = vunpack.c.l.b16 %v4181
        %v4214 = vunpack.c.l.b16 %v4182
        %v4215 = vunpack.c.l.b16 %v4183
        %v4216 = vunpack.c.l.b16 %v4184
        %v4217 = vunpack.c.l.b16 %v4185
        %v4218 = vunpack.c.l.b16 %v4186
        %v4219 = vunpack.c.l.b16 %v4187
        %v4220 = vunpack.c.l.b16 %v4188
        %v4221 = vunpack.c.l.b16 %v4189
        %v4222 = vunpack.c.l.b16 %v4190
        %v4223 = vunpack.c.l.b16 %v4191
        %v4224 = vunpack.c.l.b16 %v4192
        %v4225 = vunpack.c.l.b16 %v4193
        %v4226 = vunpack.c.l.b16 %v4194
        %v4227 = vunpack.c.l.b16 %v4195
        %v4228 = vpack.c.b16 %v4213, %v4212
        %v4229 = vpack.c.b16 %v4215, %v4214
        %v4230 = vpack.c.b16 %v4217, %v4216
        %v4231 = vpack.c.b16 %v4219, %v4218
        %v4232 = vpack.c.b16 %v4221, %v4220
        %v4233 = vpack.c.b16 %v4223, %v4222
        %v4234 = vpack.c.b16 %v4225, %v4224
        %v4235 = vpack.c.b16 %v4227, %v4226
        %4244 = vmatpush.bf16.msra.mxu0 %v4235
        %4245 = vmatpush.bf16.msra.mxu0 %v4234
        %4246 = vmatpush.bf16.msra.mxu0 %v4233
        %4247 = vmatpush.bf16.msra.mxu0 %v4232
        %4248 = vmatpush.bf16.msra.mxu0 %v4231
        %4249 = vmatpush.bf16.msra.mxu0 %v4230
        %4250 = vmatpush.bf16.msra.mxu0 %v4229
        %4251 = vmatpush.bf16.msra.mxu0 %v4228
        %4252 = vmatmul.bf16.gmra.mxu0 %v4178
        %v4253 = vpop.f32.mrf.mxu0
        %v4254 = vadd.f32 0.0, %v4253
        %v4255 = vpop.f32.mrf.mxu0
        %4256 = vdwg.mxu0
        %v4257 = vadd.f32 %v4176, %v4254
        %v4258 = vld [vmem:[#allocation4 + $0x3] sm:$0x1]
        %v4259 = vpack.c.bf16 %v4258, %v4258
        %s4260 = scalar_lea.vmem %s7, 192
        %v4261 = vld [vmem:[%s4260] sm:$0xf]
        %v4262 = vld [vmem:[%s4260 + $0x4] sm:$0xf]
        %v4263 = vld [vmem:[%s4260 + $0x8] sm:$0xf]
        %v4264 = vld [vmem:[%s4260 + $0xc] sm:$0xf]
        %v4265 = vld [vmem:[%s4260 + $0x10] sm:$0xf]
        %v4266 = vld [vmem:[%s4260 + $0x14] sm:$0xf]
        %v4267 = vld [vmem:[%s4260 + $0x18] sm:$0xf]
        %v4268 = vld [vmem:[%s4260 + $0x1c] sm:$0xf]
        %v4269 = vld [vmem:[%s4260 + $0x20] sm:$0xf]
        %v4270 = vld [vmem:[%s4260 + $0x24] sm:$0xf]
        %v4271 = vld [vmem:[%s4260 + $0x28] sm:$0xf]
        %v4272 = vld [vmem:[%s4260 + $0x2c] sm:$0xf]
        %v4273 = vld [vmem:[%s4260 + $0x30] sm:$0xf]
        %v4274 = vld [vmem:[%s4260 + $0x34] sm:$0xf]
        %v4275 = vld [vmem:[%s4260 + $0x38] sm:$0xf]
        %v4276 = vld [vmem:[%s4260 + $0x3c] sm:$0xf]
        %v4293 = vunpack.c.l.b16 %v4261
        %v4294 = vunpack.c.l.b16 %v4262
        %v4295 = vunpack.c.l.b16 %v4263
        %v4296 = vunpack.c.l.b16 %v4264
        %v4297 = vunpack.c.l.b16 %v4265
        %v4298 = vunpack.c.l.b16 %v4266
        %v4299 = vunpack.c.l.b16 %v4267
        %v4300 = vunpack.c.l.b16 %v4268
        %v4301 = vunpack.c.l.b16 %v4269
        %v4302 = vunpack.c.l.b16 %v4270
        %v4303 = vunpack.c.l.b16 %v4271
        %v4304 = vunpack.c.l.b16 %v4272
        %v4305 = vunpack.c.l.b16 %v4273
        %v4306 = vunpack.c.l.b16 %v4274
        %v4307 = vunpack.c.l.b16 %v4275
        %v4308 = vunpack.c.l.b16 %v4276
        %v4309 = vpack.c.b16 %v4294, %v4293
        %v4310 = vpack.c.b16 %v4296, %v4295
        %v4311 = vpack.c.b16 %v4298, %v4297
        %v4312 = vpack.c.b16 %v4300, %v4299
        %v4313 = vpack.c.b16 %v4302, %v4301
        %v4314 = vpack.c.b16 %v4304, %v4303
        %v4315 = vpack.c.b16 %v4306, %v4305
        %v4316 = vpack.c.b16 %v4308, %v4307
        %4325 = vmatpush.bf16.msra.mxu0 %v4316
        %4326 = vmatpush.bf16.msra.mxu0 %v4315
        %4327 = vmatpush.bf16.msra.mxu0 %v4314
        %4328 = vmatpush.bf16.msra.mxu0 %v4313
        %4329 = vmatpush.bf16.msra.mxu0 %v4312
        %4330 = vmatpush.bf16.msra.mxu0 %v4311
        %4331 = vmatpush.bf16.msra.mxu0 %v4310
        %4332 = vmatpush.bf16.msra.mxu0 %v4309
        %4333 = vmatmul.bf16.gmra.mxu0 %v4259
        %v4334 = vpop.f32.mrf.mxu0
        %v4335 = vadd.f32 0.0, %v4334
        %v4336 = vpop.f32.mrf.mxu0
        %4337 = vdwg.mxu0
        %v4338 = vadd.f32 %v4257, %v4335
        %v4339 = vld [vmem:[#allocation4 + $0x4] sm:$0x1]
        %v4340 = vpack.c.bf16 %v4339, %v4339
        %s4341 = scalar_lea.vmem %s7, 256
        %v4342 = vld [vmem:[%s4341] sm:$0xf]
        %v4343 = vld [vmem:[%s4341 + $0x4] sm:$0xf]
        %v4344 = vld [vmem:[%s4341 + $0x8] sm:$0xf]
        %v4345 = vld [vmem:[%s4341 + $0xc] sm:$0xf]
        %v4346 = vld [vmem:[%s4341 + $0x10] sm:$0xf]
        %v4347 = vld [vmem:[%s4341 + $0x14] sm:$0xf]
        %v4348 = vld [vmem:[%s4341 + $0x18] sm:$0xf]
        %v4349 = vld [vmem:[%s4341 + $0x1c] sm:$0xf]
        %v4350 = vld [vmem:[%s4341 + $0x20] sm:$0xf]
        %v4351 = vld [vmem:[%s4341 + $0x24] sm:$0xf]
        %v4352 = vld [vmem:[%s4341 + $0x28] sm:$0xf]
        %v4353 = vld [vmem:[%s4341 + $0x2c] sm:$0xf]
        %v4354 = vld [vmem:[%s4341 + $0x30] sm:$0xf]
        %v4355 = vld [vmem:[%s4341 + $0x34] sm:$0xf]
        %v4356 = vld [vmem:[%s4341 + $0x38] sm:$0xf]
        %v4357 = vld [vmem:[%s4341 + $0x3c] sm:$0xf]
        %v4374 = vunpack.c.l.b16 %v4342
        %v4375 = vunpack.c.l.b16 %v4343
        %v4376 = vunpack.c.l.b16 %v4344
        %v4377 = vunpack.c.l.b16 %v4345
        %v4378 = vunpack.c.l.b16 %v4346
        %v4379 = vunpack.c.l.b16 %v4347
        %v4380 = vunpack.c.l.b16 %v4348
        %v4381 = vunpack.c.l.b16 %v4349
        %v4382 = vunpack.c.l.b16 %v4350
        %v4383 = vunpack.c.l.b16 %v4351
        %v4384 = vunpack.c.l.b16 %v4352
        %v4385 = vunpack.c.l.b16 %v4353
        %v4386 = vunpack.c.l.b16 %v4354
        %v4387 = vunpack.c.l.b16 %v4355
        %v4388 = vunpack.c.l.b16 %v4356
        %v4389 = vunpack.c.l.b16 %v4357
        %v4390 = vpack.c.b16 %v4375, %v4374
        %v4391 = vpack.c.b16 %v4377, %v4376
        %v4392 = vpack.c.b16 %v4379, %v4378
        %v4393 = vpack.c.b16 %v4381, %v4380
        %v4394 = vpack.c.b16 %v4383, %v4382
        %v4395 = vpack.c.b16 %v4385, %v4384
        %v4396 = vpack.c.b16 %v4387, %v4386
        %v4397 = vpack.c.b16 %v4389, %v4388
        %4406 = vmatpush.bf16.msra.mxu0 %v4397
        %4407 = vmatpush.bf16.msra.mxu0 %v4396
        %4408 = vmatpush.bf16.msra.mxu0 %v4395
        %4409 = vmatpush.bf16.msra.mxu0 %v4394
        %4410 = vmatpush.bf16.msra.mxu0 %v4393
        %4411 = vmatpush.bf16.msra.mxu0 %v4392
        %4412 = vmatpush.bf16.msra.mxu0 %v4391
        %4413 = vmatpush.bf16.msra.mxu0 %v4390
        %4414 = vmatmul.bf16.gmra.mxu0 %v4340
        %v4415 = vpop.f32.mrf.mxu0
        %v4416 = vadd.f32 0.0, %v4415
        %v4417 = vpop.f32.mrf.mxu0
        %4418 = vdwg.mxu0
        %v4419 = vadd.f32 %v4338, %v4416
        %v4420 = vld [vmem:[#allocation4 + $0x5] sm:$0x1]
        %v4421 = vpack.c.bf16 %v4420, %v4420
        %s4422 = scalar_lea.vmem %s7, 320
        %v4423 = vld [vmem:[%s4422] sm:$0xf]
        %v4424 = vld [vmem:[%s4422 + $0x4] sm:$0xf]
        %v4425 = vld [vmem:[%s4422 + $0x8] sm:$0xf]
        %v4426 = vld [vmem:[%s4422 + $0xc] sm:$0xf]
        %v4427 = vld [vmem:[%s4422 + $0x10] sm:$0xf]
        %v4428 = vld [vmem:[%s4422 + $0x14] sm:$0xf]
        %v4429 = vld [vmem:[%s4422 + $0x18] sm:$0xf]
        %v4430 = vld [vmem:[%s4422 + $0x1c] sm:$0xf]
        %v4431 = vld [vmem:[%s4422 + $0x20] sm:$0xf]
        %v4432 = vld [vmem:[%s4422 + $0x24] sm:$0xf]
        %v4433 = vld [vmem:[%s4422 + $0x28] sm:$0xf]
        %v4434 = vld [vmem:[%s4422 + $0x2c] sm:$0xf]
        %v4435 = vld [vmem:[%s4422 + $0x30] sm:$0xf]
        %v4436 = vld [vmem:[%s4422 + $0x34] sm:$0xf]
        %v4437 = vld [vmem:[%s4422 + $0x38] sm:$0xf]
        %v4438 = vld [vmem:[%s4422 + $0x3c] sm:$0xf]
        %v4455 = vunpack.c.l.b16 %v4423
        %v4456 = vunpack.c.l.b16 %v4424
        %v4457 = vunpack.c.l.b16 %v4425
        %v4458 = vunpack.c.l.b16 %v4426
        %v4459 = vunpack.c.l.b16 %v4427
        %v4460 = vunpack.c.l.b16 %v4428
        %v4461 = vunpack.c.l.b16 %v4429
        %v4462 = vunpack.c.l.b16 %v4430
        %v4463 = vunpack.c.l.b16 %v4431
        %v4464 = vunpack.c.l.b16 %v4432
        %v4465 = vunpack.c.l.b16 %v4433
        %v4466 = vunpack.c.l.b16 %v4434
        %v4467 = vunpack.c.l.b16 %v4435
        %v4468 = vunpack.c.l.b16 %v4436
        %v4469 = vunpack.c.l.b16 %v4437
        %v4470 = vunpack.c.l.b16 %v4438
        %v4471 = vpack.c.b16 %v4456, %v4455
        %v4472 = vpack.c.b16 %v4458, %v4457
        %v4473 = vpack.c.b16 %v4460, %v4459
        %v4474 = vpack.c.b16 %v4462, %v4461
        %v4475 = vpack.c.b16 %v4464, %v4463
        %v4476 = vpack.c.b16 %v4466, %v4465
        %v4477 = vpack.c.b16 %v4468, %v4467
        %v4478 = vpack.c.b16 %v4470, %v4469
        %4487 = vmatpush.bf16.msra.mxu0 %v4478
        %4488 = vmatpush.bf16.msra.mxu0 %v4477
        %4489 = vmatpush.bf16.msra.mxu0 %v4476
        %4490 = vmatpush.bf16.msra.mxu0 %v4475
        %4491 = vmatpush.bf16.msra.mxu0 %v4474
        %4492 = vmatpush.bf16.msra.mxu0 %v4473
        %4493 = vmatpush.bf16.msra.mxu0 %v4472
        %4494 = vmatpush.bf16.msra.mxu0 %v4471
        %4495 = vmatmul.bf16.gmra.mxu0 %v4421
        %v4496 = vpop.f32.mrf.mxu0
        %v4497 = vadd.f32 0.0, %v4496
        %v4498 = vpop.f32.mrf.mxu0
        %4499 = vdwg.mxu0
        %v4500 = vadd.f32 %v4419, %v4497
        %v4501 = vld [vmem:[#allocation4 + $0x6] sm:$0x1]
        %v4502 = vpack.c.bf16 %v4501, %v4501
        %s4503 = scalar_lea.vmem %s7, 384
        %v4504 = vld [vmem:[%s4503] sm:$0xf]
        %v4505 = vld [vmem:[%s4503 + $0x4] sm:$0xf]
        %v4506 = vld [vmem:[%s4503 + $0x8] sm:$0xf]
        %v4507 = vld [vmem:[%s4503 + $0xc] sm:$0xf]
        %v4508 = vld [vmem:[%s4503 + $0x10] sm:$0xf]
        %v4509 = vld [vmem:[%s4503 + $0x14] sm:$0xf]
        %v4510 = vld [vmem:[%s4503 + $0x18] sm:$0xf]
        %v4511 = vld [vmem:[%s4503 + $0x1c] sm:$0xf]
        %v4512 = vld [vmem:[%s4503 + $0x20] sm:$0xf]
        %v4513 = vld [vmem:[%s4503 + $0x24] sm:$0xf]
        %v4514 = vld [vmem:[%s4503 + $0x28] sm:$0xf]
        %v4515 = vld [vmem:[%s4503 + $0x2c] sm:$0xf]
        %v4516 = vld [vmem:[%s4503 + $0x30] sm:$0xf]
        %v4517 = vld [vmem:[%s4503 + $0x34] sm:$0xf]
        %v4518 = vld [vmem:[%s4503 + $0x38] sm:$0xf]
        %v4519 = vld [vmem:[%s4503 + $0x3c] sm:$0xf]
        %v4536 = vunpack.c.l.b16 %v4504
        %v4537 = vunpack.c.l.b16 %v4505
        %v4538 = vunpack.c.l.b16 %v4506
        %v4539 = vunpack.c.l.b16 %v4507
        %v4540 = vunpack.c.l.b16 %v4508
        %v4541 = vunpack.c.l.b16 %v4509
        %v4542 = vunpack.c.l.b16 %v4510
        %v4543 = vunpack.c.l.b16 %v4511
        %v4544 = vunpack.c.l.b16 %v4512
        %v4545 = vunpack.c.l.b16 %v4513
        %v4546 = vunpack.c.l.b16 %v4514
        %v4547 = vunpack.c.l.b16 %v4515
        %v4548 = vunpack.c.l.b16 %v4516
        %v4549 = vunpack.c.l.b16 %v4517
        %v4550 = vunpack.c.l.b16 %v4518
        %v4551 = vunpack.c.l.b16 %v4519
        %v4552 = vpack.c.b16 %v4537, %v4536
        %v4553 = vpack.c.b16 %v4539, %v4538
        %v4554 = vpack.c.b16 %v4541, %v4540
        %v4555 = vpack.c.b16 %v4543, %v4542
        %v4556 = vpack.c.b16 %v4545, %v4544
        %v4557 = vpack.c.b16 %v4547, %v4546
        %v4558 = vpack.c.b16 %v4549, %v4548
        %v4559 = vpack.c.b16 %v4551, %v4550
        %4568 = vmatpush.bf16.msra.mxu0 %v4559
        %4569 = vmatpush.bf16.msra.mxu0 %v4558
        %4570 = vmatpush.bf16.msra.mxu0 %v4557
        %4571 = vmatpush.bf16.msra.mxu0 %v4556
        %4572 = vmatpush.bf16.msra.mxu0 %v4555
        %4573 = vmatpush.bf16.msra.mxu0 %v4554
        %4574 = vmatpush.bf16.msra.mxu0 %v4553
        %4575 = vmatpush.bf16.msra.mxu0 %v4552
        %4576 = vmatmul.bf16.gmra.mxu0 %v4502
        %v4577 = vpop.f32.mrf.mxu0
        %v4578 = vadd.f32 0.0, %v4577
        %v4579 = vpop.f32.mrf.mxu0
        %4580 = vdwg.mxu0
        %v4581 = vadd.f32 %v4500, %v4578
        %v4582 = vld [vmem:[#allocation4 + $0x7] sm:$0x1]
        %v4583 = vpack.c.bf16 %v4582, %v4582
        %s4584 = scalar_lea.vmem %s7, 448
        %v4585 = vld [vmem:[%s4584] sm:$0xf]
        %v4586 = vld [vmem:[%s4584 + $0x4] sm:$0xf]
        %v4587 = vld [vmem:[%s4584 + $0x8] sm:$0xf]
        %v4588 = vld [vmem:[%s4584 + $0xc] sm:$0xf]
        %v4589 = vld [vmem:[%s4584 + $0x10] sm:$0xf]
        %v4590 = vld [vmem:[%s4584 + $0x14] sm:$0xf]
        %v4591 = vld [vmem:[%s4584 + $0x18] sm:$0xf]
        %v4592 = vld [vmem:[%s4584 + $0x1c] sm:$0xf]
        %v4593 = vld [vmem:[%s4584 + $0x20] sm:$0xf]
        %v4594 = vld [vmem:[%s4584 + $0x24] sm:$0xf]
        %v4595 = vld [vmem:[%s4584 + $0x28] sm:$0xf]
        %v4596 = vld [vmem:[%s4584 + $0x2c] sm:$0xf]
        %v4597 = vld [vmem:[%s4584 + $0x30] sm:$0xf]
        %v4598 = vld [vmem:[%s4584 + $0x34] sm:$0xf]
        %v4599 = vld [vmem:[%s4584 + $0x38] sm:$0xf]
        %v4600 = vld [vmem:[%s4584 + $0x3c] sm:$0xf]
        %v4617 = vunpack.c.l.b16 %v4585
        %v4618 = vunpack.c.l.b16 %v4586
        %v4619 = vunpack.c.l.b16 %v4587
        %v4620 = vunpack.c.l.b16 %v4588
        %v4621 = vunpack.c.l.b16 %v4589
        %v4622 = vunpack.c.l.b16 %v4590
        %v4623 = vunpack.c.l.b16 %v4591
        %v4624 = vunpack.c.l.b16 %v4592
        %v4625 = vunpack.c.l.b16 %v4593
        %v4626 = vunpack.c.l.b16 %v4594
        %v4627 = vunpack.c.l.b16 %v4595
        %v4628 = vunpack.c.l.b16 %v4596
        %v4629 = vunpack.c.l.b16 %v4597
        %v4630 = vunpack.c.l.b16 %v4598
        %v4631 = vunpack.c.l.b16 %v4599
        %v4632 = vunpack.c.l.b16 %v4600
        %v4633 = vpack.c.b16 %v4618, %v4617
        %v4634 = vpack.c.b16 %v4620, %v4619
        %v4635 = vpack.c.b16 %v4622, %v4621
        %v4636 = vpack.c.b16 %v4624, %v4623
        %v4637 = vpack.c.b16 %v4626, %v4625
        %v4638 = vpack.c.b16 %v4628, %v4627
        %v4639 = vpack.c.b16 %v4630, %v4629
        %v4640 = vpack.c.b16 %v4632, %v4631
        %4649 = vmatpush.bf16.msra.mxu0 %v4640
        %4650 = vmatpush.bf16.msra.mxu0 %v4639
        %4651 = vmatpush.bf16.msra.mxu0 %v4638
        %4652 = vmatpush.bf16.msra.mxu0 %v4637
        %4653 = vmatpush.bf16.msra.mxu0 %v4636
        %4654 = vmatpush.bf16.msra.mxu0 %v4635
        %4655 = vmatpush.bf16.msra.mxu0 %v4634
        %4656 = vmatpush.bf16.msra.mxu0 %v4633
        %4657 = vmatmul.bf16.gmra.mxu0 %v4583
        %v4658 = vpop.f32.mrf.mxu0
        %v4659 = vadd.f32 0.0, %v4658
        %v4660 = vpop.f32.mrf.mxu0
        %4661 = vdwg.mxu0
        %v4662 = vadd.f32 %v4581, %v4659
        %v4663 = vld [vmem:[#allocation4 + $0x8] sm:$0x1]
        %v4664 = vpack.c.bf16 %v4663, %v4663
        %s4665 = scalar_lea.vmem %s7, 512
        %v4666 = vld [vmem:[%s4665] sm:$0xf]
        %v4667 = vld [vmem:[%s4665 + $0x4] sm:$0xf]
        %v4668 = vld [vmem:[%s4665 + $0x8] sm:$0xf]
        %v4669 = vld [vmem:[%s4665 + $0xc] sm:$0xf]
        %v4670 = vld [vmem:[%s4665 + $0x10] sm:$0xf]
        %v4671 = vld [vmem:[%s4665 + $0x14] sm:$0xf]
        %v4672 = vld [vmem:[%s4665 + $0x18] sm:$0xf]
        %v4673 = vld [vmem:[%s4665 + $0x1c] sm:$0xf]
        %v4674 = vld [vmem:[%s4665 + $0x20] sm:$0xf]
        %v4675 = vld [vmem:[%s4665 + $0x24] sm:$0xf]
        %v4676 = vld [vmem:[%s4665 + $0x28] sm:$0xf]
        %v4677 = vld [vmem:[%s4665 + $0x2c] sm:$0xf]
        %v4678 = vld [vmem:[%s4665 + $0x30] sm:$0xf]
        %v4679 = vld [vmem:[%s4665 + $0x34] sm:$0xf]
        %v4680 = vld [vmem:[%s4665 + $0x38] sm:$0xf]
        %v4681 = vld [vmem:[%s4665 + $0x3c] sm:$0xf]
        %v4698 = vunpack.c.l.b16 %v4666
        %v4699 = vunpack.c.l.b16 %v4667
        %v4700 = vunpack.c.l.b16 %v4668
        %v4701 = vunpack.c.l.b16 %v4669
        %v4702 = vunpack.c.l.b16 %v4670
        %v4703 = vunpack.c.l.b16 %v4671
        %v4704 = vunpack.c.l.b16 %v4672
        %v4705 = vunpack.c.l.b16 %v4673
        %v4706 = vunpack.c.l.b16 %v4674
        %v4707 = vunpack.c.l.b16 %v4675
        %v4708 = vunpack.c.l.b16 %v4676
        %v4709 = vunpack.c.l.b16 %v4677
        %v4710 = vunpack.c.l.b16 %v4678
        %v4711 = vunpack.c.l.b16 %v4679
        %v4712 = vunpack.c.l.b16 %v4680
        %v4713 = vunpack.c.l.b16 %v4681
        %v4714 = vpack.c.b16 %v4699, %v4698
        %v4715 = vpack.c.b16 %v4701, %v4700
        %v4716 = vpack.c.b16 %v4703, %v4702
        %v4717 = vpack.c.b16 %v4705, %v4704
        %v4718 = vpack.c.b16 %v4707, %v4706
        %v4719 = vpack.c.b16 %v4709, %v4708
        %v4720 = vpack.c.b16 %v4711, %v4710
        %v4721 = vpack.c.b16 %v4713, %v4712
        %4730 = vmatpush.bf16.msra.mxu0 %v4721
        %4731 = vmatpush.bf16.msra.mxu0 %v4720
        %4732 = vmatpush.bf16.msra.mxu0 %v4719
        %4733 = vmatpush.bf16.msra.mxu0 %v4718
        %4734 = vmatpush.bf16.msra.mxu0 %v4717
        %4735 = vmatpush.bf16.msra.mxu0 %v4716
        %4736 = vmatpush.bf16.msra.mxu0 %v4715
        %4737 = vmatpush.bf16.msra.mxu0 %v4714
        %4738 = vmatmul.bf16.gmra.mxu0 %v4664
        %v4739 = vpop.f32.mrf.mxu0
        %v4740 = vadd.f32 0.0, %v4739
        %v4741 = vpop.f32.mrf.mxu0
        %4742 = vdwg.mxu0
        %v4743 = vadd.f32 %v4662, %v4740
        %v4744 = vld [vmem:[#allocation4 + $0x9] sm:$0x1]
        %v4745 = vpack.c.bf16 %v4744, %v4744
        %s4746 = scalar_lea.vmem %s7, 576
        %v4747 = vld [vmem:[%s4746] sm:$0xf]
        %v4748 = vld [vmem:[%s4746 + $0x4] sm:$0xf]
        %v4749 = vld [vmem:[%s4746 + $0x8] sm:$0xf]
        %v4750 = vld [vmem:[%s4746 + $0xc] sm:$0xf]
        %v4751 = vld [vmem:[%s4746 + $0x10] sm:$0xf]
        %v4752 = vld [vmem:[%s4746 + $0x14] sm:$0xf]
        %v4753 = vld [vmem:[%s4746 + $0x18] sm:$0xf]
        %v4754 = vld [vmem:[%s4746 + $0x1c] sm:$0xf]
        %v4755 = vld [vmem:[%s4746 + $0x20] sm:$0xf]
        %v4756 = vld [vmem:[%s4746 + $0x24] sm:$0xf]
        %v4757 = vld [vmem:[%s4746 + $0x28] sm:$0xf]
        %v4758 = vld [vmem:[%s4746 + $0x2c] sm:$0xf]
        %v4759 = vld [vmem:[%s4746 + $0x30] sm:$0xf]
        %v4760 = vld [vmem:[%s4746 + $0x34] sm:$0xf]
        %v4761 = vld [vmem:[%s4746 + $0x38] sm:$0xf]
        %v4762 = vld [vmem:[%s4746 + $0x3c] sm:$0xf]
        %v4779 = vunpack.c.l.b16 %v4747
        %v4780 = vunpack.c.l.b16 %v4748
        %v4781 = vunpack.c.l.b16 %v4749
        %v4782 = vunpack.c.l.b16 %v4750
        %v4783 = vunpack.c.l.b16 %v4751
        %v4784 = vunpack.c.l.b16 %v4752
        %v4785 = vunpack.c.l.b16 %v4753
        %v4786 = vunpack.c.l.b16 %v4754
        %v4787 = vunpack.c.l.b16 %v4755
        %v4788 = vunpack.c.l.b16 %v4756
        %v4789 = vunpack.c.l.b16 %v4757
        %v4790 = vunpack.c.l.b16 %v4758
        %v4791 = vunpack.c.l.b16 %v4759
        %v4792 = vunpack.c.l.b16 %v4760
        %v4793 = vunpack.c.l.b16 %v4761
        %v4794 = vunpack.c.l.b16 %v4762
        %v4795 = vpack.c.b16 %v4780, %v4779
        %v4796 = vpack.c.b16 %v4782, %v4781
        %v4797 = vpack.c.b16 %v4784, %v4783
        %v4798 = vpack.c.b16 %v4786, %v4785
        %v4799 = vpack.c.b16 %v4788, %v4787
        %v4800 = vpack.c.b16 %v4790, %v4789
        %v4801 = vpack.c.b16 %v4792, %v4791
        %v4802 = vpack.c.b16 %v4794, %v4793
        %4811 = vmatpush.bf16.msra.mxu0 %v4802
        %4812 = vmatpush.bf16.msra.mxu0 %v4801
        %4813 = vmatpush.bf16.msra.mxu0 %v4800
        %4814 = vmatpush.bf16.msra.mxu0 %v4799
        %4815 = vmatpush.bf16.msra.mxu0 %v4798
        %4816 = vmatpush.bf16.msra.mxu0 %v4797
        %4817 = vmatpush.bf16.msra.mxu0 %v4796
        %4818 = vmatpush.bf16.msra.mxu0 %v4795
        %4819 = vmatmul.bf16.gmra.mxu0 %v4745
        %v4820 = vpop.f32.mrf.mxu0
        %v4821 = vadd.f32 0.0, %v4820
        %v4822 = vpop.f32.mrf.mxu0
        %4823 = vdwg.mxu0
        %v4824 = vadd.f32 %v4743, %v4821
        %v4825 = vld [vmem:[#allocation4 + $0xa] sm:$0x1]
        %v4826 = vpack.c.bf16 %v4825, %v4825
        %s4827 = scalar_lea.vmem %s7, 640
        %v4828 = vld [vmem:[%s4827] sm:$0xf]
        %v4829 = vld [vmem:[%s4827 + $0x4] sm:$0xf]
        %v4830 = vld [vmem:[%s4827 + $0x8] sm:$0xf]
        %v4831 = vld [vmem:[%s4827 + $0xc] sm:$0xf]
        %v4832 = vld [vmem:[%s4827 + $0x10] sm:$0xf]
        %v4833 = vld [vmem:[%s4827 + $0x14] sm:$0xf]
        %v4834 = vld [vmem:[%s4827 + $0x18] sm:$0xf]
        %v4835 = vld [vmem:[%s4827 + $0x1c] sm:$0xf]
        %v4836 = vld [vmem:[%s4827 + $0x20] sm:$0xf]
        %v4837 = vld [vmem:[%s4827 + $0x24] sm:$0xf]
        %v4838 = vld [vmem:[%s4827 + $0x28] sm:$0xf]
        %v4839 = vld [vmem:[%s4827 + $0x2c] sm:$0xf]
        %v4840 = vld [vmem:[%s4827 + $0x30] sm:$0xf]
        %v4841 = vld [vmem:[%s4827 + $0x34] sm:$0xf]
        %v4842 = vld [vmem:[%s4827 + $0x38] sm:$0xf]
        %v4843 = vld [vmem:[%s4827 + $0x3c] sm:$0xf]
        %v4860 = vunpack.c.l.b16 %v4828
        %v4861 = vunpack.c.l.b16 %v4829
        %v4862 = vunpack.c.l.b16 %v4830
        %v4863 = vunpack.c.l.b16 %v4831
        %v4864 = vunpack.c.l.b16 %v4832
        %v4865 = vunpack.c.l.b16 %v4833
        %v4866 = vunpack.c.l.b16 %v4834
        %v4867 = vunpack.c.l.b16 %v4835
        %v4868 = vunpack.c.l.b16 %v4836
        %v4869 = vunpack.c.l.b16 %v4837
        %v4870 = vunpack.c.l.b16 %v4838
        %v4871 = vunpack.c.l.b16 %v4839
        %v4872 = vunpack.c.l.b16 %v4840
        %v4873 = vunpack.c.l.b16 %v4841
        %v4874 = vunpack.c.l.b16 %v4842
        %v4875 = vunpack.c.l.b16 %v4843
        %v4876 = vpack.c.b16 %v4861, %v4860
        %v4877 = vpack.c.b16 %v4863, %v4862
        %v4878 = vpack.c.b16 %v4865, %v4864
        %v4879 = vpack.c.b16 %v4867, %v4866
        %v4880 = vpack.c.b16 %v4869, %v4868
        %v4881 = vpack.c.b16 %v4871, %v4870
        %v4882 = vpack.c.b16 %v4873, %v4872
        %v4883 = vpack.c.b16 %v4875, %v4874
        %4892 = vmatpush.bf16.msra.mxu0 %v4883
        %4893 = vmatpush.bf16.msra.mxu0 %v4882
        %4894 = vmatpush.bf16.msra.mxu0 %v4881
        %4895 = vmatpush.bf16.msra.mxu0 %v4880
        %4896 = vmatpush.bf16.msra.mxu0 %v4879
        %4897 = vmatpush.bf16.msra.mxu0 %v4878
        %4898 = vmatpush.bf16.msra.mxu0 %v4877
        %4899 = vmatpush.bf16.msra.mxu0 %v4876
        %4900 = vmatmul.bf16.gmra.mxu0 %v4826
        %v4901 = vpop.f32.mrf.mxu0
        %v4902 = vadd.f32 0.0, %v4901
        %v4903 = vpop.f32.mrf.mxu0
        %4904 = vdwg.mxu0
        %v4905 = vadd.f32 %v4824, %v4902
        %v4906 = vld [vmem:[#allocation4 + $0xb] sm:$0x1]
        %v4907 = vpack.c.bf16 %v4906, %v4906
        %s4908 = scalar_lea.vmem %s7, 704
        %v4909 = vld [vmem:[%s4908] sm:$0xf]
        %v4910 = vld [vmem:[%s4908 + $0x4] sm:$0xf]
        %v4911 = vld [vmem:[%s4908 + $0x8] sm:$0xf]
        %v4912 = vld [vmem:[%s4908 + $0xc] sm:$0xf]
        %v4913 = vld [vmem:[%s4908 + $0x10] sm:$0xf]
        %v4914 = vld [vmem:[%s4908 + $0x14] sm:$0xf]
        %v4915 = vld [vmem:[%s4908 + $0x18] sm:$0xf]
        %v4916 = vld [vmem:[%s4908 + $0x1c] sm:$0xf]
        %v4917 = vld [vmem:[%s4908 + $0x20] sm:$0xf]
        %v4918 = vld [vmem:[%s4908 + $0x24] sm:$0xf]
        %v4919 = vld [vmem:[%s4908 + $0x28] sm:$0xf]
        %v4920 = vld [vmem:[%s4908 + $0x2c] sm:$0xf]
        %v4921 = vld [vmem:[%s4908 + $0x30] sm:$0xf]
        %v4922 = vld [vmem:[%s4908 + $0x34] sm:$0xf]
        %v4923 = vld [vmem:[%s4908 + $0x38] sm:$0xf]
        %v4924 = vld [vmem:[%s4908 + $0x3c] sm:$0xf]
        %v4941 = vunpack.c.l.b16 %v4909
        %v4942 = vunpack.c.l.b16 %v4910
        %v4943 = vunpack.c.l.b16 %v4911
        %v4944 = vunpack.c.l.b16 %v4912
        %v4945 = vunpack.c.l.b16 %v4913
        %v4946 = vunpack.c.l.b16 %v4914
        %v4947 = vunpack.c.l.b16 %v4915
        %v4948 = vunpack.c.l.b16 %v4916
        %v4949 = vunpack.c.l.b16 %v4917
        %v4950 = vunpack.c.l.b16 %v4918
        %v4951 = vunpack.c.l.b16 %v4919
        %v4952 = vunpack.c.l.b16 %v4920
        %v4953 = vunpack.c.l.b16 %v4921
        %v4954 = vunpack.c.l.b16 %v4922
        %v4955 = vunpack.c.l.b16 %v4923
        %v4956 = vunpack.c.l.b16 %v4924
        %v4957 = vpack.c.b16 %v4942, %v4941
        %v4958 = vpack.c.b16 %v4944, %v4943
        %v4959 = vpack.c.b16 %v4946, %v4945
        %v4960 = vpack.c.b16 %v4948, %v4947
        %v4961 = vpack.c.b16 %v4950, %v4949
        %v4962 = vpack.c.b16 %v4952, %v4951
        %v4963 = vpack.c.b16 %v4954, %v4953
        %v4964 = vpack.c.b16 %v4956, %v4955
        %4973 = vmatpush.bf16.msra.mxu0 %v4964
        %4974 = vmatpush.bf16.msra.mxu0 %v4963
        %4975 = vmatpush.bf16.msra.mxu0 %v4962
        %4976 = vmatpush.bf16.msra.mxu0 %v4961
        %4977 = vmatpush.bf16.msra.mxu0 %v4960
        %4978 = vmatpush.bf16.msra.mxu0 %v4959
        %4979 = vmatpush.bf16.msra.mxu0 %v4958
        %4980 = vmatpush.bf16.msra.mxu0 %v4957
        %4981 = vmatmul.bf16.gmra.mxu0 %v4907
        %v4982 = vpop.f32.mrf.mxu0
        %v4983 = vadd.f32 0.0, %v4982
        %v4984 = vpop.f32.mrf.mxu0
        %4985 = vdwg.mxu0
        %v4986 = vadd.f32 %v4905, %v4983
        %v4987 = vld [vmem:[#allocation4 + $0xc] sm:$0x1]
        %v4988 = vpack.c.bf16 %v4987, %v4987
        %s4989 = scalar_lea.vmem %s7, 768
        %v4990 = vld [vmem:[%s4989] sm:$0xf]
        %v4991 = vld [vmem:[%s4989 + $0x4] sm:$0xf]
        %v4992 = vld [vmem:[%s4989 + $0x8] sm:$0xf]
        %v4993 = vld [vmem:[%s4989 + $0xc] sm:$0xf]
        %v4994 = vld [vmem:[%s4989 + $0x10] sm:$0xf]
        %v4995 = vld [vmem:[%s4989 + $0x14] sm:$0xf]
        %v4996 = vld [vmem:[%s4989 + $0x18] sm:$0xf]
        %v4997 = vld [vmem:[%s4989 + $0x1c] sm:$0xf]
        %v4998 = vld [vmem:[%s4989 + $0x20] sm:$0xf]
        %v4999 = vld [vmem:[%s4989 + $0x24] sm:$0xf]
        %v5000 = vld [vmem:[%s4989 + $0x28] sm:$0xf]
        %v5001 = vld [vmem:[%s4989 + $0x2c] sm:$0xf]
        %v5002 = vld [vmem:[%s4989 + $0x30] sm:$0xf]
        %v5003 = vld [vmem:[%s4989 + $0x34] sm:$0xf]
        %v5004 = vld [vmem:[%s4989 + $0x38] sm:$0xf]
        %v5005 = vld [vmem:[%s4989 + $0x3c] sm:$0xf]
        %v5022 = vunpack.c.l.b16 %v4990
        %v5023 = vunpack.c.l.b16 %v4991
        %v5024 = vunpack.c.l.b16 %v4992
        %v5025 = vunpack.c.l.b16 %v4993
        %v5026 = vunpack.c.l.b16 %v4994
        %v5027 = vunpack.c.l.b16 %v4995
        %v5028 = vunpack.c.l.b16 %v4996
        %v5029 = vunpack.c.l.b16 %v4997
        %v5030 = vunpack.c.l.b16 %v4998
        %v5031 = vunpack.c.l.b16 %v4999
        %v5032 = vunpack.c.l.b16 %v5000
        %v5033 = vunpack.c.l.b16 %v5001
        %v5034 = vunpack.c.l.b16 %v5002
        %v5035 = vunpack.c.l.b16 %v5003
        %v5036 = vunpack.c.l.b16 %v5004
        %v5037 = vunpack.c.l.b16 %v5005
        %v5038 = vpack.c.b16 %v5023, %v5022
        %v5039 = vpack.c.b16 %v5025, %v5024
        %v5040 = vpack.c.b16 %v5027, %v5026
        %v5041 = vpack.c.b16 %v5029, %v5028
        %v5042 = vpack.c.b16 %v5031, %v5030
        %v5043 = vpack.c.b16 %v5033, %v5032
        %v5044 = vpack.c.b16 %v5035, %v5034
        %v5045 = vpack.c.b16 %v5037, %v5036
        %5054 = vmatpush.bf16.msra.mxu0 %v5045
        %5055 = vmatpush.bf16.msra.mxu0 %v5044
        %5056 = vmatpush.bf16.msra.mxu0 %v5043
        %5057 = vmatpush.bf16.msra.mxu0 %v5042
        %5058 = vmatpush.bf16.msra.mxu0 %v5041
        %5059 = vmatpush.bf16.msra.mxu0 %v5040
        %5060 = vmatpush.bf16.msra.mxu0 %v5039
        %5061 = vmatpush.bf16.msra.mxu0 %v5038
        %5062 = vmatmul.bf16.gmra.mxu0 %v4988
        %v5063 = vpop.f32.mrf.mxu0
        %v5064 = vadd.f32 0.0, %v5063
        %v5065 = vpop.f32.mrf.mxu0
        %5066 = vdwg.mxu0
        %v5067 = vadd.f32 %v4986, %v5064
        %v5068 = vld [vmem:[#allocation4 + $0xd] sm:$0x1]
        %v5069 = vpack.c.bf16 %v5068, %v5068
        %s5070 = scalar_lea.vmem %s7, 832
        %v5071 = vld [vmem:[%s5070] sm:$0xf]
        %v5072 = vld [vmem:[%s5070 + $0x4] sm:$0xf]
        %v5073 = vld [vmem:[%s5070 + $0x8] sm:$0xf]
        %v5074 = vld [vmem:[%s5070 + $0xc] sm:$0xf]
        %v5075 = vld [vmem:[%s5070 + $0x10] sm:$0xf]
        %v5076 = vld [vmem:[%s5070 + $0x14] sm:$0xf]
        %v5077 = vld [vmem:[%s5070 + $0x18] sm:$0xf]
        %v5078 = vld [vmem:[%s5070 + $0x1c] sm:$0xf]
        %v5079 = vld [vmem:[%s5070 + $0x20] sm:$0xf]
        %v5080 = vld [vmem:[%s5070 + $0x24] sm:$0xf]
        %v5081 = vld [vmem:[%s5070 + $0x28] sm:$0xf]
        %v5082 = vld [vmem:[%s5070 + $0x2c] sm:$0xf]
        %v5083 = vld [vmem:[%s5070 + $0x30] sm:$0xf]
        %v5084 = vld [vmem:[%s5070 + $0x34] sm:$0xf]
        %v5085 = vld [vmem:[%s5070 + $0x38] sm:$0xf]
        %v5086 = vld [vmem:[%s5070 + $0x3c] sm:$0xf]
        %v5103 = vunpack.c.l.b16 %v5071
        %v5104 = vunpack.c.l.b16 %v5072
        %v5105 = vunpack.c.l.b16 %v5073
        %v5106 = vunpack.c.l.b16 %v5074
        %v5107 = vunpack.c.l.b16 %v5075
        %v5108 = vunpack.c.l.b16 %v5076
        %v5109 = vunpack.c.l.b16 %v5077
        %v5110 = vunpack.c.l.b16 %v5078
        %v5111 = vunpack.c.l.b16 %v5079
        %v5112 = vunpack.c.l.b16 %v5080
        %v5113 = vunpack.c.l.b16 %v5081
        %v5114 = vunpack.c.l.b16 %v5082
        %v5115 = vunpack.c.l.b16 %v5083
        %v5116 = vunpack.c.l.b16 %v5084
        %v5117 = vunpack.c.l.b16 %v5085
        %v5118 = vunpack.c.l.b16 %v5086
        %v5119 = vpack.c.b16 %v5104, %v5103
        %v5120 = vpack.c.b16 %v5106, %v5105
        %v5121 = vpack.c.b16 %v5108, %v5107
        %v5122 = vpack.c.b16 %v5110, %v5109
        %v5123 = vpack.c.b16 %v5112, %v5111
        %v5124 = vpack.c.b16 %v5114, %v5113
        %v5125 = vpack.c.b16 %v5116, %v5115
        %v5126 = vpack.c.b16 %v5118, %v5117
        %5135 = vmatpush.bf16.msra.mxu0 %v5126
        %5136 = vmatpush.bf16.msra.mxu0 %v5125
        %5137 = vmatpush.bf16.msra.mxu0 %v5124
        %5138 = vmatpush.bf16.msra.mxu0 %v5123
        %5139 = vmatpush.bf16.msra.mxu0 %v5122
        %5140 = vmatpush.bf16.msra.mxu0 %v5121
        %5141 = vmatpush.bf16.msra.mxu0 %v5120
        %5142 = vmatpush.bf16.msra.mxu0 %v5119
        %5143 = vmatmul.bf16.gmra.mxu0 %v5069
        %v5144 = vpop.f32.mrf.mxu0
        %v5145 = vadd.f32 0.0, %v5144
        %v5146 = vpop.f32.mrf.mxu0
        %5147 = vdwg.mxu0
        %v5148 = vadd.f32 %v5067, %v5145
        %v5149 = vld [vmem:[#allocation4 + $0xe] sm:$0x1]
        %v5150 = vpack.c.bf16 %v5149, %v5149
        %s5151 = scalar_lea.vmem %s7, 896
        %v5152 = vld [vmem:[%s5151] sm:$0xf]
        %v5153 = vld [vmem:[%s5151 + $0x4] sm:$0xf]
        %v5154 = vld [vmem:[%s5151 + $0x8] sm:$0xf]
        %v5155 = vld [vmem:[%s5151 + $0xc] sm:$0xf]
        %v5156 = vld [vmem:[%s5151 + $0x10] sm:$0xf]
        %v5157 = vld [vmem:[%s5151 + $0x14] sm:$0xf]
        %v5158 = vld [vmem:[%s5151 + $0x18] sm:$0xf]
        %v5159 = vld [vmem:[%s5151 + $0x1c] sm:$0xf]
        %v5160 = vld [vmem:[%s5151 + $0x20] sm:$0xf]
        %v5161 = vld [vmem:[%s5151 + $0x24] sm:$0xf]
        %v5162 = vld [vmem:[%s5151 + $0x28] sm:$0xf]
        %v5163 = vld [vmem:[%s5151 + $0x2c] sm:$0xf]
        %v5164 = vld [vmem:[%s5151 + $0x30] sm:$0xf]
        %v5165 = vld [vmem:[%s5151 + $0x34] sm:$0xf]
        %v5166 = vld [vmem:[%s5151 + $0x38] sm:$0xf]
        %v5167 = vld [vmem:[%s5151 + $0x3c] sm:$0xf]
        %v5184 = vunpack.c.l.b16 %v5152
        %v5185 = vunpack.c.l.b16 %v5153
        %v5186 = vunpack.c.l.b16 %v5154
        %v5187 = vunpack.c.l.b16 %v5155
        %v5188 = vunpack.c.l.b16 %v5156
        %v5189 = vunpack.c.l.b16 %v5157
        %v5190 = vunpack.c.l.b16 %v5158
        %v5191 = vunpack.c.l.b16 %v5159
        %v5192 = vunpack.c.l.b16 %v5160
        %v5193 = vunpack.c.l.b16 %v5161
        %v5194 = vunpack.c.l.b16 %v5162
        %v5195 = vunpack.c.l.b16 %v5163
        %v5196 = vunpack.c.l.b16 %v5164
        %v5197 = vunpack.c.l.b16 %v5165
        %v5198 = vunpack.c.l.b16 %v5166
        %v5199 = vunpack.c.l.b16 %v5167
        %v5200 = vpack.c.b16 %v5185, %v5184
        %v5201 = vpack.c.b16 %v5187, %v5186
        %v5202 = vpack.c.b16 %v5189, %v5188
        %v5203 = vpack.c.b16 %v5191, %v5190
        %v5204 = vpack.c.b16 %v5193, %v5192
        %v5205 = vpack.c.b16 %v5195, %v5194
        %v5206 = vpack.c.b16 %v5197, %v5196
        %v5207 = vpack.c.b16 %v5199, %v5198
        %5216 = vmatpush.bf16.msra.mxu0 %v5207
        %5217 = vmatpush.bf16.msra.mxu0 %v5206
        %5218 = vmatpush.bf16.msra.mxu0 %v5205
        %5219 = vmatpush.bf16.msra.mxu0 %v5204
        %5220 = vmatpush.bf16.msra.mxu0 %v5203
        %5221 = vmatpush.bf16.msra.mxu0 %v5202
        %5222 = vmatpush.bf16.msra.mxu0 %v5201
        %5223 = vmatpush.bf16.msra.mxu0 %v5200
        %5224 = vmatmul.bf16.gmra.mxu0 %v5150
        %v5225 = vpop.f32.mrf.mxu0
        %v5226 = vadd.f32 0.0, %v5225
        %v5227 = vpop.f32.mrf.mxu0
        %5228 = vdwg.mxu0
        %v5229 = vadd.f32 %v5148, %v5226
        %v5230 = vld [vmem:[#allocation4 + $0xf] sm:$0x1]
        %v5231 = vpack.c.bf16 %v5230, %v5230
        %s5232 = scalar_lea.vmem %s7, 960
        %v5233 = vld [vmem:[%s5232] sm:$0xf]
        %v5234 = vld [vmem:[%s5232 + $0x4] sm:$0xf]
        %v5235 = vld [vmem:[%s5232 + $0x8] sm:$0xf]
        %v5236 = vld [vmem:[%s5232 + $0xc] sm:$0xf]
        %v5237 = vld [vmem:[%s5232 + $0x10] sm:$0xf]
        %v5238 = vld [vmem:[%s5232 + $0x14] sm:$0xf]
        %v5239 = vld [vmem:[%s5232 + $0x18] sm:$0xf]
        %v5240 = vld [vmem:[%s5232 + $0x1c] sm:$0xf]
        %v5241 = vld [vmem:[%s5232 + $0x20] sm:$0xf]
        %v5242 = vld [vmem:[%s5232 + $0x24] sm:$0xf]
        %v5243 = vld [vmem:[%s5232 + $0x28] sm:$0xf]
        %v5244 = vld [vmem:[%s5232 + $0x2c] sm:$0xf]
        %v5245 = vld [vmem:[%s5232 + $0x30] sm:$0xf]
        %v5246 = vld [vmem:[%s5232 + $0x34] sm:$0xf]
        %v5247 = vld [vmem:[%s5232 + $0x38] sm:$0xf]
        %v5248 = vld [vmem:[%s5232 + $0x3c] sm:$0xf]
        %v5265 = vunpack.c.l.b16 %v5233
        %v5266 = vunpack.c.l.b16 %v5234
        %v5267 = vunpack.c.l.b16 %v5235
        %v5268 = vunpack.c.l.b16 %v5236
        %v5269 = vunpack.c.l.b16 %v5237
        %v5270 = vunpack.c.l.b16 %v5238
        %v5271 = vunpack.c.l.b16 %v5239
        %v5272 = vunpack.c.l.b16 %v5240
        %v5273 = vunpack.c.l.b16 %v5241
        %v5274 = vunpack.c.l.b16 %v5242
        %v5275 = vunpack.c.l.b16 %v5243
        %v5276 = vunpack.c.l.b16 %v5244
        %v5277 = vunpack.c.l.b16 %v5245
        %v5278 = vunpack.c.l.b16 %v5246
        %v5279 = vunpack.c.l.b16 %v5247
        %v5280 = vunpack.c.l.b16 %v5248
        %v5281 = vpack.c.b16 %v5266, %v5265
        %v5282 = vpack.c.b16 %v5268, %v5267
        %v5283 = vpack.c.b16 %v5270, %v5269
        %v5284 = vpack.c.b16 %v5272, %v5271
        %v5285 = vpack.c.b16 %v5274, %v5273
        %v5286 = vpack.c.b16 %v5276, %v5275
        %v5287 = vpack.c.b16 %v5278, %v5277
        %v5288 = vpack.c.b16 %v5280, %v5279
        %5297 = vmatpush.bf16.msra.mxu0 %v5288
        %5298 = vmatpush.bf16.msra.mxu0 %v5287
        %5299 = vmatpush.bf16.msra.mxu0 %v5286
        %5300 = vmatpush.bf16.msra.mxu0 %v5285
        %5301 = vmatpush.bf16.msra.mxu0 %v5284
        %5302 = vmatpush.bf16.msra.mxu0 %v5283
        %5303 = vmatpush.bf16.msra.mxu0 %v5282
        %5304 = vmatpush.bf16.msra.mxu0 %v5281
        %5305 = vmatmul.bf16.gmra.mxu0 %v5231
        %v5306 = vpop.f32.mrf.mxu0
        %v5307 = vadd.f32 0.0, %v5306
        %v5308 = vpop.f32.mrf.mxu0
        %5309 = vdwg.mxu0
        %v5310 = vadd.f32 %v5229, %v5307
        %v5311 = vmax.f32 %v5310, 0.0
        %v5312 = vpack.c.bf16 %v5311, %v5311
        %v5313 = vld [vmem:[%s9] sm:$0xf]
        %v5314 = vld [vmem:[%s9 + $0x4] sm:$0xf]
        %v5315 = vld [vmem:[%s9 + $0x8] sm:$0xf]
        %v5316 = vld [vmem:[%s9 + $0xc] sm:$0xf]
        %v5317 = vld [vmem:[%s9 + $0x10] sm:$0xf]
        %v5318 = vld [vmem:[%s9 + $0x14] sm:$0xf]
        %v5319 = vld [vmem:[%s9 + $0x18] sm:$0xf]
        %v5320 = vld [vmem:[%s9 + $0x1c] sm:$0xf]
        %v5321 = vld [vmem:[%s9 + $0x20] sm:$0xf]
        %v5322 = vld [vmem:[%s9 + $0x24] sm:$0xf]
        %v5323 = vld [vmem:[%s9 + $0x28] sm:$0xf]
        %v5324 = vld [vmem:[%s9 + $0x2c] sm:$0xf]
        %v5325 = vld [vmem:[%s9 + $0x30] sm:$0xf]
        %v5326 = vld [vmem:[%s9 + $0x34] sm:$0xf]
        %v5327 = vld [vmem:[%s9 + $0x38] sm:$0xf]
        %v5328 = vld [vmem:[%s9 + $0x3c] sm:$0xf]
        %v5329 = vld [vmem:[%s10] sm:$0x1]
        %v5346 = vunpack.c.l.b16 %v5313
        %v5347 = vunpack.c.l.b16 %v5314
        %v5348 = vunpack.c.l.b16 %v5315
        %v5349 = vunpack.c.l.b16 %v5316
        %v5350 = vunpack.c.l.b16 %v5317
        %v5351 = vunpack.c.l.b16 %v5318
        %v5352 = vunpack.c.l.b16 %v5319
        %v5353 = vunpack.c.l.b16 %v5320
        %v5354 = vunpack.c.l.b16 %v5321
        %v5355 = vunpack.c.l.b16 %v5322
        %v5356 = vunpack.c.l.b16 %v5323
        %v5357 = vunpack.c.l.b16 %v5324
        %v5358 = vunpack.c.l.b16 %v5325
        %v5359 = vunpack.c.l.b16 %v5326
        %v5360 = vunpack.c.l.b16 %v5327
        %v5361 = vunpack.c.l.b16 %v5328
        %v5362 = vpack.c.b16 %v5347, %v5346
        %v5363 = vpack.c.b16 %v5349, %v5348
        %v5364 = vpack.c.b16 %v5351, %v5350
        %v5365 = vpack.c.b16 %v5353, %v5352
        %v5366 = vpack.c.b16 %v5355, %v5354
        %v5367 = vpack.c.b16 %v5357, %v5356
        %v5368 = vpack.c.b16 %v5359, %v5358
        %v5369 = vpack.c.b16 %v5361, %v5360
        %5378 = vmatpush.bf16.msra.mxu0 %v5369
        %5379 = vmatpush.bf16.msra.mxu0 %v5368
        %5380 = vmatpush.bf16.msra.mxu0 %v5367
        %5381 = vmatpush.bf16.msra.mxu0 %v5366
        %5382 = vmatpush.bf16.msra.mxu0 %v5365
        %5383 = vmatpush.bf16.msra.mxu0 %v5364
        %5384 = vmatpush.bf16.msra.mxu0 %v5363
        %5385 = vmatpush.bf16.msra.mxu0 %v5362
        %5386 = vmatmul.bf16.gmra.mxu0 %v5312
        %v5387 = vpop.f32.mrf.mxu0
        %v5388 = vadd.f32 %v5329, %v5387
        %v5389 = vpop.f32.mrf.mxu0
        %5390 = vdwg.mxu0
        %v5391 = vmax.f32 %v5388, 0.0
        %v5392 = vperm.slane %v5391, 0
        %5393 = vst [vmem:[%s434] sm:$0xff] %v5392
        %p5394 = scmp.lt.s32.totalorder %s24, 1
        %s5395 = scalar_select %p5394, %s24, 1
        %s5396 = smul.addr %s5395, 8
        %s5397 = scalar_lea.vmem %s11, %s5396
        // Predicated region
        $region77: #{_lambda_.1} parent=63 // pred_check
          %p5398 = pneg %p278
        $region78: #{_lambda_.1} parent=63 // pred_check_branch
          %5400 = sbr.rel (%p5398) target = $region80
        $region79: #{_lambda_.1} parent=63 // pred_region
          _
        $region80: #{_lambda_.1} parent=63 // pred_fallthru
          _
      $region64: #{_lambda_.1} parent=5 // pred_fallthru
        _
      %p5401 = scmp.le.s32.totalorder 2, %s19
      // Predicated region
      $region81: #{_lambda_.1} parent=5 // pred_check
        %p5402 = pneg %p5401
      $region82: #{_lambda_.1} parent=5 // pred_check_branch
        %5404 = sbr.rel (%p5402) target = $region84
      $region83: #{_lambda_.1} parent=5 // pred_region
        %s5405 = ssub.s32 %s19, 2
        // Predicated region
        $region85: #{_lambda_.1} parent=83 // pred_check
          %p5406 = pneg %p284
        $region86: #{_lambda_.1} parent=83 // pred_check_branch
          %5408 = sbr.rel (%p5406) target = $region88
        $region87: #{_lambda_.1} parent=83 // pred_region
          %p5409 = scmp.lt.s32.totalorder %s25, 1
          %s5410 = scalar_select %p5409, %s25, 1
          %s5411 = smul.addr %s5410, 8
          %s5412 = scalar_lea.vmem %s11, %s5411
        $region88: #{_lambda_.1} parent=83 // pred_fallthru
          _
      $region84: #{_lambda_.1} parent=5 // pred_fallthru
        _
    $region6: #{_lambda_.1} parent=1 // loop_footer
      %s23 = sadd.s32 1, %s19
    $region7: #{_lambda_.1} parent=1 // loop_footer_branch
      %18 = sbr.rel target = $region3
    $region8: #{_lambda_.1} parent=1 // loop_exit
      _
    %5413 = vsyncpa [#allocation6], 1
    %s5414 = scalar_lea.sflag [#allocation6], 1
    %5415 = vsyncpa %s5414, 1
    %5416 = vsyncpa [#allocation8], 1

</llo_original>
